<compile_context>
chip_gen: v6e
topology: v6e:2x2x1
jax: 0.10.0
libtpu: 0.0.40
codegen_flags: <defaults>
</compile_context>

<pallas_src>
import math

import jax
import jax.numpy as jnp
import numpy as np
from jax.experimental import pallas as pl
from jax.experimental.pallas import tpu as pltpu

_BN_EPS = 1e-5


# ----------------------------- Pallas kernel -----------------------------
def _min_of_rolls(r):
    """min over the two edge directions: min(roll(r,-1,axis=1), roll(r,+1,axis=1)),
    rolled per batch element along the point axis of a (TB, N, C) f32 array.
    The min is symmetric in the two directions, so the roll sign convention is irrelevant."""
    TB, N, C = r.shape
    if N % 8 == 0 and C % 128 == 0 and r.dtype.itemsize == 4:
        # (8,128)-aligned 32-bit tile: XLU sublane rotation, no load/store copy traffic.
        rm = pltpu.roll(r, shift=N - 1, axis=1)
        rp = pltpu.roll(r, shift=1, axis=1)
    else:
        rm = jnp.concatenate([r[:, 1:, :], r[:, :1, :]], axis=1)     # roll by -1
        rp = jnp.concatenate([r[:, -1:, :], r[:, :-1, :]], axis=1)   # roll by +1
    return jnp.minimum(rm, rp)


def _gcnn_kernel(x_ref,
                 w1s_ref, w1b_ref, b1_ref,
                 w2s_ref, w2b_ref, b2_ref,
                 w3a_ref, w3b_ref, b3_ref,
                 w4_ref, b4_ref,
                 w5_ref, b5_ref,
                 out_ref):
    TB, N, Cin = x_ref.shape
    R = TB * N
    cdt = w1s_ref.dtype                      # MXU operand dtype for the per-point layers

    x2d = x_ref[...].reshape(R, Cin)         # (R, Cin), already cast in the wrapper

    # --- edge_feature + conv1(+BN folded) + ReLU + max over the 2 edge directions ------
    # cat([x, x - roll(x)]) @ W1 == x @ (W1a + W1b) - roll(x @ W1b)   (roll commutes with
    # a 1x1 conv), and max(base - a, base - b) == base - min(a, b).
    base1 = jnp.dot(x2d, w1s_ref[...], preferred_element_type=jnp.float32) + b1_ref[...]
    r1 = jnp.dot(x2d, w1b_ref[...], preferred_element_type=jnp.float32)
    m1 = _min_of_rolls(r1.reshape(TB, N, -1)).reshape(R, -1)
    # relu(max(a, b)) == max(relu(a), relu(b)) because relu is monotone.
    x1 = jnp.maximum(base1 - m1, 0.0)                                # (R, 32) f32

    # --- edge_feature + conv2(+BN) + ReLU + max -----------------------------------------
    x1c = x1.astype(cdt)
    base2 = jnp.dot(x1c, w2s_ref[...], preferred_element_type=jnp.float32) + b2_ref[...]
    r2 = jnp.dot(x1c, w2b_ref[...], preferred_element_type=jnp.float32)
    m2 = _min_of_rolls(r2.reshape(TB, N, -1)).reshape(R, -1)
    x2 = jnp.maximum(base2 - m2, 0.0)                                # (R, 64) f32

    # --- conv3 on cat(x1, x2) (+BN) + ReLU  (concat folded into split weights) ----------
    h = jnp.dot(x1c, w3a_ref[...], preferred_element_type=jnp.float32)
    h = h + jnp.dot(x2.astype(cdt), w3b_ref[...], preferred_element_type=jnp.float32)
    h = jnp.maximum(h + b3_ref[...], 0.0)                            # (R, E) f32

    # --- global (adaptive) max pool over the N points -----------------------------------
    g = jnp.max(h.reshape(TB, N, -1), axis=1)                        # (TB, E)

    # --- classifier: Linear(E,32)+BN+ReLU, Linear(32,out)  (tiny -> stays f32) ----------
    c = jnp.dot(g, w4_ref[...], preferred_element_type=jnp.float32) + b4_ref[...]
    c = jnp.maximum(c, 0.0)
    out = jnp.dot(c, w5_ref[...], preferred_element_type=jnp.float32) + b5_ref[...]
    out_ref[...] = out.astype(out_ref.dtype)                         # sublane-dense (TB, out)


def _pick_block_b(B, N, max_rows=8192):
    """Batch-tile size: ~max_rows (block_b*N) rows per grid step to amortize the ~0.35us
    per-step overhead and fill MXU rows, conservative for v7x's 64 MiB VMEM (raise
    max_rows on v5e/v6e), a multiple of 8 (sublane-dense output blocks), and >=2 grid
    steps when the batch is big enough so the "parallel" batch axis can feed both v7x
    TensorCores."""
    bb = max(1, max_rows // max(N, 1))
    if B >= 16:
        bb = min(bb, B // 2)            # at least 2 grid steps
        bb = max(8, (bb // 8) * 8)      # multiple of 8
    else:
        bb = B                          # tiny batch: one step, block == full array dims
    return bb


def gcnn_forward(x, kparams, *, block_b=None, max_rows=8192):
    """x: (B, Cin, N) (PyTorch layout) -> (B, out_channels)."""
    B, Cin, N = x.shape
    (w1s, w1b, b1, w2s, w2b, b2, w3a, w3b, b3, w4, b4, w5, b5) = kparams
    out_dim = w5.shape[1]

    # Feature-last layout + cast to the MXU operand dtype (bf16 halves the input DMA).
    # The transpose stays in the wrapper: x is read exactly once and is a negligible
    # fraction of the traffic, while an in-kernel transpose of a (Cin=3/4)-lane tile
    # would add layout churn for no measurable gain.
    xt = jnp.transpose(x, (0, 2, 1)).astype(w1s.dtype)               # (B, N, Cin)

    if block_b is None:
        block_b = _pick_block_b(B, N, max_rows)
    grid_b = pl.cdiv(B, block_b)
    B_pad = grid_b * block_b
    if B_pad != B:                         # pad batch: no divisor-of-B restriction
        xt = jnp.pad(xt, ((0, B_pad - B), (0, 0), (0, 0)))

    weights = (w1s, w1b, b1, w2s, w2b, b2, w3a, w3b, b3, w4, b4, w5, b5)

    out = pl.pallas_call(
        _gcnn_kernel,
        out_shape=jax.ShapeDtypeStruct((B_pad, out_dim), jnp.float32),
        grid=(grid_b,),
        in_specs=[pl.BlockSpec((block_b, N, Cin), lambda b: (b, 0, 0))]
                 + [pl.BlockSpec(w.shape, lambda b: (0, 0)) for w in weights],
        out_specs=pl.BlockSpec((block_b, out_dim), lambda b: (b, 0)),
        compiler_params=pltpu.CompilerParams(
            dimension_semantics=("parallel",),
            vmem_limit_bytes=48 * 1024 * 1024,
        ),
    )(xt, *weights)
    return out[:B]


# -------------------- parameter preparation (BN folding) --------------------
def prepare_kernel_params(raw, eps=_BN_EPS, matmul_dtype=jnp.bfloat16):
    """Fold eval-mode BatchNorm into the conv/linear weights, pre-split the
    concatenated-input weights (so the kernel needs no concatenates), and store the
    per-point matmul weights in `matmul_dtype` (bf16 by default: single-pass MXU on
    v6e/v7x, half the VMEM/DMA bytes; pass jnp.float32 for an exact-f32 path)."""
    def fold_conv(w_oc, bn):                    # w_oc: (Cout, Cin_total)
        gamma, beta, mean, var = bn
        s = gamma / jnp.sqrt(var + eps)
        w_io = (w_oc * s[:, None]).T            # (Cin_total, Cout), columns scaled
        b = beta - s * mean                     # (Cout,)
        return w_io, b

    w1_oc, bn1 = raw['conv1']
    w2_oc, bn2 = raw['conv2']
    w3_oc, bn3 = raw['conv3']
    (w4_oc, b4_lin, bn4), (w5_oc, b5_lin) = raw['cls']

    W1, b1 = fold_conv(w1_oc, bn1)              # (2*Cin, 32)
    cin = W1.shape[0] // 2
    w1s, w1b = W1[:cin] + W1[cin:], W1[cin:]

    W2, b2 = fold_conv(w2_oc, bn2)              # (64, 64)
    c1 = W2.shape[0] // 2
    w2s, w2b = W2[:c1] + W2[c1:], W2[c1:]

    W3, b3 = fold_conv(w3_oc, bn3)              # (32+64, E)
    w3a, w3b = W3[:c1], W3[c1:]

    g4, be4, m4, v4 = bn4
    s4 = g4 / jnp.sqrt(v4 + eps)
    W4 = w4_oc.T * s4[None, :]                  # (E, 32)
    b4 = (b4_lin - m4) * s4 + be4
    W5 = w5_oc.T                                # (32, out)
    b5 = b5_lin

    c = lambda w: w.astype(matmul_dtype)
    r = lambda b: b.reshape(1, -1).astype(jnp.float32)
    return (c(w1s), c(w1b), r(b1), c(w2s), c(w2b), r(b2), c(w3a), c(w3b), r(b3),
            W4.astype(jnp.float32), r(b4), W5.astype(jnp.float32), r(b5))


# ---------------- pure-JAX reference (mirrors the PyTorch code) ----------------
def _edge_feature_ref(x):                       # x: (B, C, N)
    x1 = jnp.roll(x, -1, axis=-1)
    feat1 = jnp.concatenate([x, x - x1], axis=1)
    x2 = jnp.roll(x, 1, axis=-1)
    feat2 = jnp.concatenate([x, x - x2], axis=1)
    return jnp.stack([feat1, feat2], axis=-1)   # (B, 2C, N, 2)


def _bn_eval(x, gamma, beta, mean, var, eps=_BN_EPS):
    shape = [1] * x.ndim
    shape[1] = -1
    s = gamma / jnp.sqrt(var + eps)
    return x * s.reshape(shape) + (beta - s * mean).reshape(shape)


def _gcnn_ref(x, raw):
    w1, bn1 = raw['conv1']
    w2, bn2 = raw['conv2']
    w3, bn3 = raw['conv3']
    (w4, b4l, bn4), (w5, b5l) = raw['cls']

    conv_k1 = lambda x4, w: jnp.einsum('oc,bcnk->bonk', w, x4)

    e = _edge_feature_ref(x)                                     # (B, 2Cin, N, 2)
    y = jax.nn.relu(_bn_eval(conv_k1(e, w1), *bn1))
    x1 = jnp.max(y, axis=-1)                                     # (B, 32, N)
    e2 = _edge_feature_ref(x1)
    y2 = jax.nn.relu(_bn_eval(conv_k1(e2, w2), *bn2))
    x2 = jnp.max(y2, axis=-1)                                    # (B, 64, N)
    cat = jnp.concatenate([x1, x2], axis=1)                      # (B, 96, N)
    z = jax.nn.relu(_bn_eval(jnp.einsum('oc,bcn->bon', w3, cat), *bn3))
    g = jnp.max(z, axis=-1)                                      # (B, E)
    c = jax.nn.relu(_bn_eval(g @ w4.T + b4l, *bn4))
    return c @ w5.T + b5l


# ---------------- deterministic parameter construction ----------------
def _conv_w(key, cout, cin):
    bound = 1.0 / math.sqrt(cin)
    return jax.random.uniform(key, (cout, cin), jnp.float32, -bound, bound)


def _bn_raw(key, c):
    k1, k2, k3, k4 = jax.random.split(key, 4)
    gamma = jax.random.uniform(k1, (c,), jnp.float32, 0.5, 1.5)
    beta = 0.1 * jax.random.normal(k2, (c,), jnp.float32)
    mean = 0.1 * jax.random.normal(k3, (c,), jnp.float32)
    var = jax.random.uniform(k4, (c,), jnp.float32, 0.5, 1.5)
    return gamma, beta, mean, var


def _linear(key, cout, cin):
    kw, kb = jax.random.split(key)
    bound = 1.0 / math.sqrt(cin)
    w = jax.random.uniform(kw, (cout, cin), jnp.float32, -bound, bound)
    b = jax.random.uniform(kb, (cout,), jnp.float32, -bound, bound)
    return w, b


def _build_raw(key, in_channels, out_channels, embedding):
    k1, kb1, k2, kb2, k3, kb3, k4, kb4, k5 = jax.random.split(key, 9)
    return {
        'conv1': (_conv_w(k1, 32, in_channels * 2), _bn_raw(kb1, 32)),
        'conv2': (_conv_w(k2, 64, 32 * 2), _bn_raw(kb2, 64)),
        'conv3': (_conv_w(k3, embedding, 32 + 64), _bn_raw(kb3, embedding)),
        'cls': ((*_linear(k4, 32, embedding), _bn_raw(kb4, 32)),
                _linear(k5, out_channels, 32)),
    }


if __name__ == "__main__":
    # Full-precision matmuls in the pure-JAX reference (and the f32 kernel path)
    # so the exact-algebra comparison below is tight.
    jax.config.update("jax_default_matmul_precision", "highest")

    def check(B, in_channels, N, out_channels, embedding, seed):
        key = jax.random.PRNGKey(seed)
        kx, kp = jax.random.split(key)
        x = jax.random.normal(kx, (B, in_channels, N), jnp.float32)
        raw = _build_raw(kp, in_channels, out_channels, embedding)
        ref = np.asarray(_gcnn_ref(x, raw))

        # (a) exact-algebra check: f32 MXU operands, tight tolerance.
        out_f32 = jax.block_until_ready(
            gcnn_forward(x, prepare_kernel_params(raw, matmul_dtype=jnp.float32)))
        assert out_f32.shape == (B, out_channels)
        np.testing.assert_allclose(np.asarray(out_f32), ref, rtol=1e-3, atol=1e-3)

        # (b) fast path: bf16 MXU operands (f32 accumulation) per the perf review;
        #     tolerance loosened accordingly (exact algebra already verified above).
        out_bf16 = jax.block_until_ready(
            gcnn_forward(x, prepare_kernel_params(raw)))
        assert out_bf16.shape == (B, out_channels)
        np.testing.assert_allclose(np.asarray(out_bf16), ref, rtol=5e-2, atol=5e-2)

    # Small shape from the spec example (single batch tile, block == full array dims).
    check(B=2, in_channels=4, N=16, out_channels=10, embedding=64, seed=0)
    # Shape exercising the padded multi-step batch grid (B=20 -> block_b=8, 3 grid
    # steps, 4 zero-padded batch rows that are sliced off the output).
    check(B=20, in_channels=3, N=64, out_channels=10, embedding=64, seed=1)

    print("KERNEL_OK")
</pallas_src>

<mosaic_0001>
module attributes {stable_mosaic.version = 11 : i64} {
  func.func @_gcnn_kernel(%arg0: i32, %arg1: memref<2x16x4xf32, #tpu.memory_space<vmem>>, %arg2: memref<4x32xf32, #tpu.memory_space<vmem>>, %arg3: memref<4x32xf32, #tpu.memory_space<vmem>>, %arg4: memref<1x32xf32, #tpu.memory_space<vmem>>, %arg5: memref<32x64xf32, #tpu.memory_space<vmem>>, %arg6: memref<32x64xf32, #tpu.memory_space<vmem>>, %arg7: memref<1x64xf32, #tpu.memory_space<vmem>>, %arg8: memref<32x64xf32, #tpu.memory_space<vmem>>, %arg9: memref<64x64xf32, #tpu.memory_space<vmem>>, %arg10: memref<1x64xf32, #tpu.memory_space<vmem>>, %arg11: memref<64x32xf32, #tpu.memory_space<vmem>>, %arg12: memref<1x32xf32, #tpu.memory_space<vmem>>, %arg13: memref<32x10xf32, #tpu.memory_space<vmem>>, %arg14: memref<1x10xf32, #tpu.memory_space<vmem>>, %arg15: memref<2x10xf32, #tpu.memory_space<vmem>>) attributes {dimension_semantics = [#tpu.dimension_semantics<parallel>], iteration_bounds = array<i64: 1>, scalar_prefetch = 0 : i64, scratch_operands = 0 : i64, tpu.core_type = #tpu.core_type<tc>, window_params = [{transform_indices = @transform_0, window_bounds = array<i64: 2, 16, 4>}, {pipeline_mode = #tpu.pipeline_mode<synchronous>, transform_indices = @transform_1, window_bounds = array<i64: 4, 32>}, {pipeline_mode = #tpu.pipeline_mode<synchronous>, transform_indices = @transform_2, window_bounds = array<i64: 4, 32>}, {pipeline_mode = #tpu.pipeline_mode<synchronous>, transform_indices = @transform_3, window_bounds = array<i64: 1, 32>}, {pipeline_mode = #tpu.pipeline_mode<synchronous>, transform_indices = @transform_4, window_bounds = array<i64: 32, 64>}, {pipeline_mode = #tpu.pipeline_mode<synchronous>, transform_indices = @transform_5, window_bounds = array<i64: 32, 64>}, {pipeline_mode = #tpu.pipeline_mode<synchronous>, transform_indices = @transform_6, window_bounds = array<i64: 1, 64>}, {pipeline_mode = #tpu.pipeline_mode<synchronous>, transform_indices = @transform_7, window_bounds = array<i64: 32, 64>}, {pipeline_mode = #tpu.pipeline_mode<synchronous>, transform_indices = @transform_8, window_bounds = array<i64: 64, 64>}, {pipeline_mode = #tpu.pipeline_mode<synchronous>, transform_indices = @transform_9, window_bounds = array<i64: 1, 64>}, {pipeline_mode = #tpu.pipeline_mode<synchronous>, transform_indices = @transform_10, window_bounds = array<i64: 64, 32>}, {pipeline_mode = #tpu.pipeline_mode<synchronous>, transform_indices = @transform_11, window_bounds = array<i64: 1, 32>}, {pipeline_mode = #tpu.pipeline_mode<synchronous>, transform_indices = @transform_12, window_bounds = array<i64: 32, 10>}, {pipeline_mode = #tpu.pipeline_mode<synchronous>, transform_indices = @transform_13, window_bounds = array<i64: 1, 10>}, {transform_indices = @transform_14, window_bounds = array<i64: 2, 10>}]} {
    %c0 = arith.constant 0 : index
    %c0_0 = arith.constant 0 : index
    %c0_1 = arith.constant 0 : index
    %0 = vector.load %arg1[%c0, %c0_0, %c0_1] : memref<2x16x4xf32, #tpu.memory_space<vmem>>, vector<2x16x4xf32>
    %1 = vector.shape_cast %0 : vector<2x16x4xf32> to vector<32x4xf32>
    %c0_2 = arith.constant 0 : index
    %c0_3 = arith.constant 0 : index
    %2 = vector.load %arg2[%c0_2, %c0_3] : memref<4x32xf32, #tpu.memory_space<vmem>>, vector<4x32xf32>
    %cst = arith.constant dense<0.000000e+00> : vector<32x32xf32>
    %3 = tpu.matmul %1, %2, %cst {dimension_numbers = #tpu.dot_dimension_numbers<[1], [0], [0], [1], [0, 0, 1, 1], [], []>, precision = #tpu.contract_precision<fp32>} : vector<32x4xf32>, vector<4x32xf32>, vector<32x32xf32> -> vector<32x32xf32>
    %c0_4 = arith.constant 0 : index
    %c0_5 = arith.constant 0 : index
    %4 = vector.load %arg4[%c0_4, %c0_5] : memref<1x32xf32, #tpu.memory_space<vmem>>, vector<1x32xf32>
    %5 = vector.broadcast %4 : vector<1x32xf32> to vector<32x32xf32>
    %6 = arith.addf %3, %5 : vector<32x32xf32>
    %c0_6 = arith.constant 0 : index
    %c0_7 = arith.constant 0 : index
    %7 = vector.load %arg3[%c0_6, %c0_7] : memref<4x32xf32, #tpu.memory_space<vmem>>, vector<4x32xf32>
    %cst_8 = arith.constant dense<0.000000e+00> : vector<32x32xf32>
    %8 = tpu.matmul %1, %7, %cst_8 {dimension_numbers = #tpu.dot_dimension_numbers<[1], [0], [0], [1], [0, 0, 1, 1], [], []>, precision = #tpu.contract_precision<fp32>} : vector<32x4xf32>, vector<4x32xf32>, vector<32x32xf32> -> vector<32x32xf32>
    %9 = vector.shape_cast %8 : vector<32x32xf32> to vector<2x16x32xf32>
    %10 = vector.extract_strided_slice %9 {offsets = [0, 1, 0], sizes = [2, 15, 32], strides = [1, 1, 1]} : vector<2x16x32xf32> to vector<2x15x32xf32>
    %11 = vector.extract_strided_slice %9 {offsets = [0, 0, 0], sizes = [2, 1, 32], strides = [1, 1, 1]} : vector<2x16x32xf32> to vector<2x1x32xf32>
    %12 = tpu.concatenate %10, %11 in 1 : vector<2x15x32xf32>, vector<2x1x32xf32> -> vector<2x16x32xf32>
    %13 = vector.extract_strided_slice %9 {offsets = [0, 15, 0], sizes = [2, 1, 32], strides = [1, 1, 1]} : vector<2x16x32xf32> to vector<2x1x32xf32>
    %14 = vector.extract_strided_slice %9 {offsets = [0, 0, 0], sizes = [2, 15, 32], strides = [1, 1, 1]} : vector<2x16x32xf32> to vector<2x15x32xf32>
    %15 = tpu.concatenate %13, %14 in 1 : vector<2x1x32xf32>, vector<2x15x32xf32> -> vector<2x16x32xf32>
    %16 = arith.minimumf %12, %15 : vector<2x16x32xf32>
    %17 = vector.shape_cast %16 : vector<2x16x32xf32> to vector<32x32xf32>
    %18 = arith.subf %6, %17 : vector<32x32xf32>
    %cst_9 = arith.constant 0.000000e+00 : f32
    %19 = vector.broadcast %cst_9 : f32 to vector<32x32xf32>
    %20 = arith.maximumf %18, %19 : vector<32x32xf32>
    %c0_10 = arith.constant 0 : index
    %c0_11 = arith.constant 0 : index
    %21 = vector.load %arg5[%c0_10, %c0_11] : memref<32x64xf32, #tpu.memory_space<vmem>>, vector<32x64xf32>
    %cst_12 = arith.constant dense<0.000000e+00> : vector<32x64xf32>
    %22 = tpu.matmul %20, %21, %cst_12 {dimension_numbers = #tpu.dot_dimension_numbers<[1], [0], [0], [1], [0, 0, 1, 1], [], []>, precision = #tpu.contract_precision<fp32>} : vector<32x32xf32>, vector<32x64xf32>, vector<32x64xf32> -> vector<32x64xf32>
    %c0_13 = arith.constant 0 : index
    %c0_14 = arith.constant 0 : index
    %23 = vector.load %arg7[%c0_13, %c0_14] : memref<1x64xf32, #tpu.memory_space<vmem>>, vector<1x64xf32>
    %24 = vector.broadcast %23 : vector<1x64xf32> to vector<32x64xf32>
    %25 = arith.addf %22, %24 : vector<32x64xf32>
    %c0_15 = arith.constant 0 : index
    %c0_16 = arith.constant 0 : index
    %26 = vector.load %arg6[%c0_15, %c0_16] : memref<32x64xf32, #tpu.memory_space<vmem>>, vector<32x64xf32>
    %cst_17 = arith.constant dense<0.000000e+00> : vector<32x64xf32>
    %27 = tpu.matmul %20, %26, %cst_17 {dimension_numbers = #tpu.dot_dimension_numbers<[1], [0], [0], [1], [0, 0, 1, 1], [], []>, precision = #tpu.contract_precision<fp32>} : vector<32x32xf32>, vector<32x64xf32>, vector<32x64xf32> -> vector<32x64xf32>
    %28 = vector.shape_cast %27 : vector<32x64xf32> to vector<2x16x64xf32>
    %29 = vector.extract_strided_slice %28 {offsets = [0, 1, 0], sizes = [2, 15, 64], strides = [1, 1, 1]} : vector<2x16x64xf32> to vector<2x15x64xf32>
    %30 = vector.extract_strided_slice %28 {offsets = [0, 0, 0], sizes = [2, 1, 64], strides = [1, 1, 1]} : vector<2x16x64xf32> to vector<2x1x64xf32>
    %31 = tpu.concatenate %29, %30 in 1 : vector<2x15x64xf32>, vector<2x1x64xf32> -> vector<2x16x64xf32>
    %32 = vector.extract_strided_slice %28 {offsets = [0, 15, 0], sizes = [2, 1, 64], strides = [1, 1, 1]} : vector<2x16x64xf32> to vector<2x1x64xf32>
    %33 = vector.extract_strided_slice %28 {offsets = [0, 0, 0], sizes = [2, 15, 64], strides = [1, 1, 1]} : vector<2x16x64xf32> to vector<2x15x64xf32>
    %34 = tpu.concatenate %32, %33 in 1 : vector<2x1x64xf32>, vector<2x15x64xf32> -> vector<2x16x64xf32>
    %35 = arith.minimumf %31, %34 : vector<2x16x64xf32>
    %36 = vector.shape_cast %35 : vector<2x16x64xf32> to vector<32x64xf32>
    %37 = arith.subf %25, %36 : vector<32x64xf32>
    %cst_18 = arith.constant 0.000000e+00 : f32
    %38 = vector.broadcast %cst_18 : f32 to vector<32x64xf32>
    %39 = arith.maximumf %37, %38 : vector<32x64xf32>
    %c0_19 = arith.constant 0 : index
    %c0_20 = arith.constant 0 : index
    %40 = vector.load %arg8[%c0_19, %c0_20] : memref<32x64xf32, #tpu.memory_space<vmem>>, vector<32x64xf32>
    %cst_21 = arith.constant dense<0.000000e+00> : vector<32x64xf32>
    %41 = tpu.matmul %20, %40, %cst_21 {dimension_numbers = #tpu.dot_dimension_numbers<[1], [0], [0], [1], [0, 0, 1, 1], [], []>, precision = #tpu.contract_precision<fp32>} : vector<32x32xf32>, vector<32x64xf32>, vector<32x64xf32> -> vector<32x64xf32>
    %c0_22 = arith.constant 0 : index
    %c0_23 = arith.constant 0 : index
    %42 = vector.load %arg9[%c0_22, %c0_23] : memref<64x64xf32, #tpu.memory_space<vmem>>, vector<64x64xf32>
    %cst_24 = arith.constant dense<0.000000e+00> : vector<32x64xf32>
    %43 = tpu.matmul %39, %42, %cst_24 {dimension_numbers = #tpu.dot_dimension_numbers<[1], [0], [0], [1], [0, 0, 1, 1], [], []>, precision = #tpu.contract_precision<fp32>} : vector<32x64xf32>, vector<64x64xf32>, vector<32x64xf32> -> vector<32x64xf32>
    %44 = arith.addf %41, %43 : vector<32x64xf32>
    %c0_25 = arith.constant 0 : index
    %c0_26 = arith.constant 0 : index
    %45 = vector.load %arg10[%c0_25, %c0_26] : memref<1x64xf32, #tpu.memory_space<vmem>>, vector<1x64xf32>
    %46 = vector.broadcast %45 : vector<1x64xf32> to vector<32x64xf32>
    %47 = arith.addf %44, %46 : vector<32x64xf32>
    %cst_27 = arith.constant 0.000000e+00 : f32
    %48 = vector.broadcast %cst_27 : f32 to vector<32x64xf32>
    %49 = arith.maximumf %47, %48 : vector<32x64xf32>
    %50 = vector.shape_cast %49 : vector<32x64xf32> to vector<2x16x64xf32>
    %cst_28 = arith.constant dense<0xFF800000> : vector<2x64xf32>
    %51 = vector.multi_reduction <maximumf>, %50, %cst_28 [1] : vector<2x16x64xf32> to vector<2x64xf32>
    %c0_29 = arith.constant 0 : index
    %c0_30 = arith.constant 0 : index
    %52 = vector.load %arg11[%c0_29, %c0_30] : memref<64x32xf32, #tpu.memory_space<vmem>>, vector<64x32xf32>
    %cst_31 = arith.constant dense<0.000000e+00> : vector<2x32xf32>
    %53 = tpu.matmul %51, %52, %cst_31 {dimension_numbers = #tpu.dot_dimension_numbers<[1], [0], [0], [1], [0, 0, 1, 1], [], []>, precision = #tpu.contract_precision<fp32>} : vector<2x64xf32>, vector<64x32xf32>, vector<2x32xf32> -> vector<2x32xf32>
    %c0_32 = arith.constant 0 : index
    %c0_33 = arith.constant 0 : index
    %54 = vector.load %arg12[%c0_32, %c0_33] : memref<1x32xf32, #tpu.memory_space<vmem>>, vector<1x32xf32>
    %55 = vector.broadcast %54 : vector<1x32xf32> to vector<2x32xf32>
    %56 = arith.addf %53, %55 : vector<2x32xf32>
    %cst_34 = arith.constant 0.000000e+00 : f32
    %57 = vector.broadcast %cst_34 : f32 to vector<2x32xf32>
    %58 = arith.maximumf %56, %57 : vector<2x32xf32>
    %c0_35 = arith.constant 0 : index
    %c0_36 = arith.constant 0 : index
    %59 = vector.load %arg13[%c0_35, %c0_36] : memref<32x10xf32, #tpu.memory_space<vmem>>, vector<32x10xf32>
    %cst_37 = arith.constant dense<0.000000e+00> : vector<2x10xf32>
    %60 = tpu.matmul %58, %59, %cst_37 {dimension_numbers = #tpu.dot_dimension_numbers<[1], [0], [0], [1], [0, 0, 1, 1], [], []>, precision = #tpu.contract_precision<fp32>} : vector<2x32xf32>, vector<32x10xf32>, vector<2x10xf32> -> vector<2x10xf32>
    %c0_38 = arith.constant 0 : index
    %c0_39 = arith.constant 0 : index
    %61 = vector.load %arg14[%c0_38, %c0_39] : memref<1x10xf32, #tpu.memory_space<vmem>>, vector<1x10xf32>
    %62 = vector.broadcast %61 : vector<1x10xf32> to vector<2x10xf32>
    %63 = arith.addf %60, %62 : vector<2x10xf32>
    %c0_40 = arith.constant 0 : index
    %c0_41 = arith.constant 0 : index
    %64 = vector.load %arg15[%c0_40, %c0_41] : memref<2x10xf32, #tpu.memory_space<vmem>>, vector<2x10xf32>
    tpu.vector_store %arg15[%c0_40, %c0_41], %63 {strides = array<i32>} : memref<2x10xf32, #tpu.memory_space<vmem>>, vector<2x10xf32>,
    return
  }
  func.func @transform_0(%arg0: i32) -> (i32, i32, i32) {
    %c0_i32 = arith.constant 0 : i32
    %c0_i32_0 = arith.constant 0 : i32
    %c0_i32_1 = arith.constant 0 : i32
    return %arg0, %c0_i32, %c0_i32_0 : i32, i32, i32
  }
  func.func @transform_1(%arg0: i32) -> (i32, i32) {
    %c0_i32 = arith.constant 0 : i32
    %c0_i32_0 = arith.constant 0 : i32
    %c0_i32_1 = arith.constant 0 : i32
    return %c0_i32, %c0_i32_0 : i32, i32
  }
  func.func @transform_2(%arg0: i32) -> (i32, i32) {
    %c0_i32 = arith.constant 0 : i32
    %c0_i32_0 = arith.constant 0 : i32
    %c0_i32_1 = arith.constant 0 : i32
    return %c0_i32, %c0_i32_0 : i32, i32
  }
  func.func @transform_3(%arg0: i32) -> (i32, i32) {
    %c0_i32 = arith.constant 0 : i32
    %c0_i32_0 = arith.constant 0 : i32
    %c0_i32_1 = arith.constant 0 : i32
    return %c0_i32, %c0_i32_0 : i32, i32
  }
  func.func @transform_4(%arg0: i32) -> (i32, i32) {
    %c0_i32 = arith.constant 0 : i32
    %c0_i32_0 = arith.constant 0 : i32
    %c0_i32_1 = arith.constant 0 : i32
    return %c0_i32, %c0_i32_0 : i32, i32
  }
  func.func @transform_5(%arg0: i32) -> (i32, i32) {
    %c0_i32 = arith.constant 0 : i32
    %c0_i32_0 = arith.constant 0 : i32
    %c0_i32_1 = arith.constant 0 : i32
    return %c0_i32, %c0_i32_0 : i32, i32
  }
  func.func @transform_6(%arg0: i32) -> (i32, i32) {
    %c0_i32 = arith.constant 0 : i32
    %c0_i32_0 = arith.constant 0 : i32
    %c0_i32_1 = arith.constant 0 : i32
    return %c0_i32, %c0_i32_0 : i32, i32
  }
  func.func @transform_7(%arg0: i32) -> (i32, i32) {
    %c0_i32 = arith.constant 0 : i32
    %c0_i32_0 = arith.constant 0 : i32
    %c0_i32_1 = arith.constant 0 : i32
    return %c0_i32, %c0_i32_0 : i32, i32
  }
  func.func @transform_8(%arg0: i32) -> (i32, i32) {
    %c0_i32 = arith.constant 0 : i32
    %c0_i32_0 = arith.constant 0 : i32
    %c0_i32_1 = arith.constant 0 : i32
    return %c0_i32, %c0_i32_0 : i32, i32
  }
  func.func @transform_9(%arg0: i32) -> (i32, i32) {
    %c0_i32 = arith.constant 0 : i32
    %c0_i32_0 = arith.constant 0 : i32
    %c0_i32_1 = arith.constant 0 : i32
    return %c0_i32, %c0_i32_0 : i32, i32
  }
  func.func @transform_10(%arg0: i32) -> (i32, i32) {
    %c0_i32 = arith.constant 0 : i32
    %c0_i32_0 = arith.constant 0 : i32
    %c0_i32_1 = arith.constant 0 : i32
    return %c0_i32, %c0_i32_0 : i32, i32
  }
  func.func @transform_11(%arg0: i32) -> (i32, i32) {
    %c0_i32 = arith.constant 0 : i32
    %c0_i32_0 = arith.constant 0 : i32
    %c0_i32_1 = arith.constant 0 : i32
    return %c0_i32, %c0_i32_0 : i32, i32
  }
  func.func @transform_12(%arg0: i32) -> (i32, i32) {
    %c0_i32 = arith.constant 0 : i32
    %c0_i32_0 = arith.constant 0 : i32
    %c0_i32_1 = arith.constant 0 : i32
    return %c0_i32, %c0_i32_0 : i32, i32
  }
  func.func @transform_13(%arg0: i32) -> (i32, i32) {
    %c0_i32 = arith.constant 0 : i32
    %c0_i32_0 = arith.constant 0 : i32
    %c0_i32_1 = arith.constant 0 : i32
    return %c0_i32, %c0_i32_0 : i32, i32
  }
  func.func @transform_14(%arg0: i32) -> (i32, i32) {
    %c0_i32 = arith.constant 0 : i32
    %c0_i32_0 = arith.constant 0 : i32
    return %arg0, %c0_i32 : i32, i32
  }
}

</mosaic_0001>

<llo_original>
// kernel: tpu_custom_call.1
$region0: #{tpu_custom_call.1}
  #allocation0 [shape = 'u32[]', space=smem, size = 0x4, offset = 0x4, fixed_abs, tag = 'smem constant byte address 0x4 - core index']
  #allocation1 [shape = 'u32[144,128]{1,0:T(1,128)}', space=vmem, size = 0x12000, scoped, tag = 'internal scratch']
  %s0 = inlined_call_operand.vmem [shape: f32[2,16,4], index: 0, kind: input, shape index: {}]
  %s1 = inlined_call_operand.hbm [shape: f32[4,32], index: 1, kind: input, shape index: {}]
  %s2 = inlined_call_operand.hbm [shape: f32[4,32], index: 2, kind: input, shape index: {}]
  %s3 = inlined_call_operand.vmem [shape: f32[1,32], index: 3, kind: input, shape index: {}]
  %s4 = inlined_call_operand.vmem [shape: f32[32,64], index: 4, kind: input, shape index: {}]
  %s5 = inlined_call_operand.vmem [shape: f32[32,64], index: 5, kind: input, shape index: {}]
  %s6 = inlined_call_operand.vmem [shape: f32[1,64], index: 6, kind: input, shape index: {}]
  %s7 = inlined_call_operand.vmem [shape: f32[32,64], index: 7, kind: input, shape index: {}]
  %s8 = inlined_call_operand.vmem [shape: f32[64,64], index: 8, kind: input, shape index: {}]
  %s9 = inlined_call_operand.vmem [shape: f32[1,64], index: 9, kind: input, shape index: {}]
  %s10 = inlined_call_operand.vmem [shape: f32[64,32], index: 10, kind: input, shape index: {}]
  %s11 = inlined_call_operand.vmem [shape: f32[1,32], index: 11, kind: input, shape index: {}]
  %s12 = inlined_call_operand.vmem [shape: f32[32,10], index: 12, kind: input, shape index: {}]
  %s13 = inlined_call_operand.vmem [shape: f32[1,10], index: 13, kind: input, shape index: {}]
  %s14 = inlined_call_operand.hbm [shape: f32[2,10], index: 14, kind: output, shape index: {}]
  %s15 = sld [smem:[#allocation0]]
  $region74: #{tpu_custom_call.1} parent=0
    _
  %s17 = ssub.s32 1, %s15
  %s18 = scalar_select 0, %s17, %s15
  $region1: #{tpu_custom_call.1} parent=0
    #allocation2 [shape = 'u8[2048]{0}', space=vmem, size = 0x800, scoped, tag = 'input window, operand 1, single buffered']
    #allocation3 [shape = 's32[1]{0}', space=sflag, size = 0x4, scoped, tag = 'scoped memory for tpu_custom_call.1']
    #allocation4 [shape = 's32[1]{0}', space=sflag, size = 0x4, scoped, tag = 'scoped memory for tpu_custom_call.1']
    #allocation5 [shape = 'u8[2048]{0}', space=vmem, size = 0x800, scoped, tag = 'input window, operand 2, single buffered']
    #allocation6 [shape = 's32[1]{0}', space=sflag, size = 0x4, scoped, tag = 'scoped memory for tpu_custom_call.1']
    #allocation7 [shape = 'u8[1024]{0}', space=vmem, size = 0x400, scoped, tag = 'output window, operand 0, single buffered']
    %19 = vsyncpa [#allocation3], 0
    %20 = vsyncpa [#allocation6], 0
    %21 = vsyncpa [#allocation4], 0
    // Predicated region
    $region2: #{tpu_custom_call.1} parent=1 // pred_check
      _
    $region3: #{tpu_custom_call.1} parent=1 // pred_check_branch
      %23 = sbr.rel (0) target = $region5
    $region4: #{tpu_custom_call.1} parent=1 // pred_region
      _
    $region5: #{tpu_custom_call.1} parent=1 // pred_fallthru
      _
    // Predicated region
    $region6: #{tpu_custom_call.1} parent=1 // pred_check
      _
    $region7: #{tpu_custom_call.1} parent=1 // pred_check_branch
      %25 = sbr.rel (0) target = $region9
    $region8: #{tpu_custom_call.1} parent=1 // pred_region
      %s27 = ssub.s32 64, 64
      %28 = vsyncadd [#allocation3], %s27
      %s30 = sshll.u32 [#allocation2], 4
      %s31 = int_to_ptr.vmem [resolvable:$true] %s30
      %33 = dma.hbm_to_vmem [thread:$0]  %s1, 64, %s31, [#allocation3]
    $region9: #{tpu_custom_call.1} parent=1 // pred_fallthru
      _
    // Predicated region
    $region10: #{tpu_custom_call.1} parent=1 // pred_check
      _
    $region11: #{tpu_custom_call.1} parent=1 // pred_check_branch
      %35 = sbr.rel (0) target = $region13
    $region12: #{tpu_custom_call.1} parent=1 // pred_region
      %s37 = ssub.s32 64, 64
      %38 = vsyncadd [#allocation6], %s37
      %s40 = sshll.u32 [#allocation5], 4
      %s41 = int_to_ptr.vmem [resolvable:$true] %s40
      %43 = dma.hbm_to_vmem [thread:$0]  %s2, 64, %s41, [#allocation6]
    $region13: #{tpu_custom_call.1} parent=1 // pred_fallthru
      _
    // Predicated region
    $region14: #{tpu_custom_call.1} parent=1 // pred_check
      _
    $region15: #{tpu_custom_call.1} parent=1 // pred_check_branch
      %45 = sbr.rel (0) target = $region17
    $region16: #{tpu_custom_call.1} parent=1 // pred_region
      _
    $region17: #{tpu_custom_call.1} parent=1 // pred_fallthru
      _
    // Predicated region
    $region18: #{tpu_custom_call.1} parent=1 // pred_check
      _
    $region19: #{tpu_custom_call.1} parent=1 // pred_check_branch
      %47 = sbr.rel (0) target = $region21
    $region20: #{tpu_custom_call.1} parent=1 // pred_region
      _
    $region21: #{tpu_custom_call.1} parent=1 // pred_fallthru
      _
    // Predicated region
    $region22: #{tpu_custom_call.1} parent=1 // pred_check
      _
    $region23: #{tpu_custom_call.1} parent=1 // pred_check_branch
      %49 = sbr.rel (0) target = $region25
    $region24: #{tpu_custom_call.1} parent=1 // pred_region
      _
    $region25: #{tpu_custom_call.1} parent=1 // pred_fallthru
      _
    // Predicated region
    $region26: #{tpu_custom_call.1} parent=1 // pred_check
      _
    $region27: #{tpu_custom_call.1} parent=1 // pred_check_branch
      %51 = sbr.rel (0) target = $region29
    $region28: #{tpu_custom_call.1} parent=1 // pred_region
      _
    $region29: #{tpu_custom_call.1} parent=1 // pred_fallthru
      _
    // Predicated region
    $region30: #{tpu_custom_call.1} parent=1 // pred_check
      _
    $region31: #{tpu_custom_call.1} parent=1 // pred_check_branch
      %53 = sbr.rel (0) target = $region33
    $region32: #{tpu_custom_call.1} parent=1 // pred_region
      _
    $region33: #{tpu_custom_call.1} parent=1 // pred_fallthru
      _
    // Predicated region
    $region34: #{tpu_custom_call.1} parent=1 // pred_check
      _
    $region35: #{tpu_custom_call.1} parent=1 // pred_check_branch
      %55 = sbr.rel (0) target = $region37
    $region36: #{tpu_custom_call.1} parent=1 // pred_region
      _
    $region37: #{tpu_custom_call.1} parent=1 // pred_fallthru
      _
    // Predicated region
    $region38: #{tpu_custom_call.1} parent=1 // pred_check
      _
    $region39: #{tpu_custom_call.1} parent=1 // pred_check_branch
      %57 = sbr.rel (0) target = $region41
    $region40: #{tpu_custom_call.1} parent=1 // pred_region
      _
    $region41: #{tpu_custom_call.1} parent=1 // pred_fallthru
      _
    // Predicated region
    $region42: #{tpu_custom_call.1} parent=1 // pred_check
      _
    $region43: #{tpu_custom_call.1} parent=1 // pred_check_branch
      %59 = sbr.rel (0) target = $region45
    $region44: #{tpu_custom_call.1} parent=1 // pred_region
      _
    $region45: #{tpu_custom_call.1} parent=1 // pred_fallthru
      _
    // Predicated region
    $region46: #{tpu_custom_call.1} parent=1 // pred_check
      _
    $region47: #{tpu_custom_call.1} parent=1 // pred_check_branch
      %61 = sbr.rel (0) target = $region49
    $region48: #{tpu_custom_call.1} parent=1 // pred_region
      _
    $region49: #{tpu_custom_call.1} parent=1 // pred_fallthru
      _
    // Predicated region
    $region50: #{tpu_custom_call.1} parent=1 // pred_check
      _
    $region51: #{tpu_custom_call.1} parent=1 // pred_check_branch
      %63 = sbr.rel (0) target = $region53
    $region52: #{tpu_custom_call.1} parent=1 // pred_region
      _
    $region53: #{tpu_custom_call.1} parent=1 // pred_fallthru
      _
    // Predicated region
    $region54: #{tpu_custom_call.1} parent=1 // pred_check
      _
    $region55: #{tpu_custom_call.1} parent=1 // pred_check_branch
      %65 = sbr.rel (0) target = $region57
    $region56: #{tpu_custom_call.1} parent=1 // pred_region
      _
    $region57: #{tpu_custom_call.1} parent=1 // pred_fallthru
      _
    // Predicated region
    $region58: #{tpu_custom_call.1} parent=1 // pred_check
      _
    $region59: #{tpu_custom_call.1} parent=1 // pred_check_branch
      %67 = sbr.rel (0) target = $region61
    $region60: #{tpu_custom_call.1} parent=1 // pred_region
      %68 = dma.done [#allocation3], 64
    $region61: #{tpu_custom_call.1} parent=1 // pred_fallthru
      _
    // Predicated region
    $region62: #{tpu_custom_call.1} parent=1 // pred_check
      _
    $region63: #{tpu_custom_call.1} parent=1 // pred_check_branch
      %70 = sbr.rel (0) target = $region65
    $region64: #{tpu_custom_call.1} parent=1 // pred_region
      %71 = dma.done [#allocation6], 64
    $region65: #{tpu_custom_call.1} parent=1 // pred_fallthru
      _
    %v72 = vld [vmem:[%s0] sm:$0xff]
    %v73 = vld [vmem:[%s0 + $0x8] sm:$0xff]
    %v74 = vld [vmem:[%s0 + $0x10] sm:$0xff]
    %v75 = vld [vmem:[%s0 + $0x18] sm:$0xff]
    %v76 = vld [vmem:[#allocation2] sm:$0xf]
    %v77 = vld [vmem:[%s3] sm:$0x1]
    %v79 = vlaneseq
    %v80 = vshrl.u32 %v79, 7
    %v81 = vsub.s32 0, %v80
    %v82 = vrot.slane %v77, %v81
    %vm84 = vcmask 31744
    %v86 = vsel %vm84, %v72, 0
    %v89 = vsel %vm84, %v73, 0
    %v92 = vsel %vm84, %v74, 0
    %v95 = vsel %vm84, %v75, 0
    %vm97 = vcmask 1043456
    %v99 = vsel %vm97, %v76, 0
    %101 = vmatprep.subr.mxu0 0.0
    %102 = vmatpush1.msra.mxu0 0.0
    %103 = vmatprep.subr.mxu0 0.0
    %104 = vmatpush1.msra.mxu0 0.0
    %105 = vmatprep.subr.mxu0 0.0
    %106 = vmatpush1.msra.mxu0 0.0
    %107 = vmatprep.subr.mxu0 0.0
    %108 = vmatpush1.msra.mxu0 0.0
    %109 = vmatprep.subr.mxu0 0.0
    %110 = vmatpush1.msra.mxu0 0.0
    %111 = vmatprep.subr.mxu0 0.0
    %112 = vmatpush1.msra.mxu0 0.0
    %113 = vmatprep.subr.mxu0 0.0
    %114 = vmatpush1.msra.mxu0 0.0
    %115 = vmatprep.subr.mxu0 0.0
    %116 = vmatpush1.msra.mxu0 0.0
    %117 = vmatprep.subr.mxu0 0.0
    %118 = vmatpush1.msra.mxu0 0.0
    %119 = vmatprep.subr.mxu0 0.0
    %120 = vmatpush1.msra.mxu0 0.0
    %121 = vmatprep.subr.mxu0 0.0
    %122 = vmatpush1.msra.mxu0 0.0
    %123 = vmatprep.subr.mxu0 0.0
    %124 = vmatpush1.msra.mxu0 0.0
    %125 = vmatprep.subr.mxu0 0.0
    %126 = vmatpush1.msra.mxu0 0.0
    %127 = vmatprep.subr.mxu0 0.0
    %128 = vmatpush1.msra.mxu0 0.0
    %129 = vmatprep.subr.mxu0 0.0
    %130 = vmatpush1.msra.mxu0 0.0
    %131 = vmatprep.subr.mxu0 0.0
    %v132 = vand.u32 %v99, 4294901760
    %133 = vmatpush1.msra.mxu0 %v132
    %134 = vmatprep.subr.mxu0 0.0
    %135 = vmatpush2.msra.mxu0 0.0
    %136 = vmatprep.subr.mxu0 0.0
    %137 = vmatpush2.msra.mxu0 0.0
    %138 = vmatprep.subr.mxu0 0.0
    %139 = vmatpush2.msra.mxu0 0.0
    %140 = vmatprep.subr.mxu0 0.0
    %141 = vmatpush2.msra.mxu0 0.0
    %142 = vmatprep.subr.mxu0 0.0
    %143 = vmatpush2.msra.mxu0 0.0
    %144 = vmatprep.subr.mxu0 0.0
    %145 = vmatpush2.msra.mxu0 0.0
    %146 = vmatprep.subr.mxu0 0.0
    %147 = vmatpush2.msra.mxu0 0.0
    %148 = vmatprep.subr.mxu0 0.0
    %149 = vmatpush2.msra.mxu0 0.0
    %150 = vmatprep.subr.mxu0 0.0
    %151 = vmatpush2.msra.mxu0 0.0
    %152 = vmatprep.subr.mxu0 0.0
    %153 = vmatpush2.msra.mxu0 0.0
    %154 = vmatprep.subr.mxu0 0.0
    %155 = vmatpush2.msra.mxu0 0.0
    %156 = vmatprep.subr.mxu0 0.0
    %157 = vmatpush2.msra.mxu0 0.0
    %158 = vmatprep.subr.mxu0 0.0
    %159 = vmatpush2.msra.mxu0 0.0
    %160 = vmatprep.subr.mxu0 0.0
    %161 = vmatpush2.msra.mxu0 0.0
    %162 = vmatprep.subr.mxu0 0.0
    %163 = vmatpush2.msra.mxu0 0.0
    %164 = vmatprep.subr.mxu0 0.0
    %165 = vmatpush2.msra.mxu0 0.0
    %166 = vmatprep.mubr.f32.mxu0 0.0
    %v167 = vand.u32 %v86, 4294901760
    %v168 = vsub.f32 %v86, %v167
    %v169 = vand.u32 %v168, 4294901760
    %v170 = vsub.f32 %v168, %v169
    %v171 = vand.u32 %v170, 4294901760
    %172 = vmatmul.mubr.f32.gmra.mxu0 %v171
    %v173 = vpop.f32.mrf.mxu0
    %v174 = vadd.f32 %v82, %v173
    %v175 = vpop.f32.mrf.mxu0
    %176 = vmatprep.mubr.f32.mxu0 0.0
    %v177 = vand.u32 %v89, 4294901760
    %v178 = vsub.f32 %v89, %v177
    %v179 = vand.u32 %v178, 4294901760
    %v180 = vsub.f32 %v178, %v179
    %v181 = vand.u32 %v180, 4294901760
    %182 = vmatmul.mubr.f32.gmra.mxu0 %v181
    %v183 = vpop.f32.mrf.mxu0
    %v184 = vadd.f32 %v82, %v183
    %v185 = vpop.f32.mrf.mxu0
    %186 = vmatprep.mubr.f32.mxu0 0.0
    %v187 = vand.u32 %v92, 4294901760
    %v188 = vsub.f32 %v92, %v187
    %v189 = vand.u32 %v188, 4294901760
    %v190 = vsub.f32 %v188, %v189
    %v191 = vand.u32 %v190, 4294901760
    %192 = vmatmul.mubr.f32.gmra.mxu0 %v191
    %v193 = vpop.f32.mrf.mxu0
    %v194 = vadd.f32 %v82, %v193
    %v195 = vpop.f32.mrf.mxu0
    %196 = vmatprep.mubr.f32.mxu0 0.0
    %v197 = vand.u32 %v95, 4294901760
    %v198 = vsub.f32 %v95, %v197
    %v199 = vand.u32 %v198, 4294901760
    %v200 = vsub.f32 %v198, %v199
    %v201 = vand.u32 %v200, 4294901760
    %202 = vmatmul.mubr.f32.gmra.mxu0 %v201
    %v203 = vpop.f32.mrf.mxu0
    %v204 = vadd.f32 %v82, %v203
    %v205 = vpop.f32.mrf.mxu0
    %206 = vdwg.mxu0
    %207 = vmatprep.subr.mxu0 0.0
    %208 = vmatpush1.msra.mxu0 0.0
    %209 = vmatprep.subr.mxu0 0.0
    %210 = vmatpush1.msra.mxu0 0.0
    %211 = vmatprep.subr.mxu0 0.0
    %212 = vmatpush1.msra.mxu0 0.0
    %213 = vmatprep.subr.mxu0 0.0
    %214 = vmatpush1.msra.mxu0 0.0
    %215 = vmatprep.subr.mxu0 0.0
    %216 = vmatpush1.msra.mxu0 0.0
    %217 = vmatprep.subr.mxu0 0.0
    %218 = vmatpush1.msra.mxu0 0.0
    %219 = vmatprep.subr.mxu0 0.0
    %220 = vmatpush1.msra.mxu0 0.0
    %221 = vmatprep.subr.mxu0 0.0
    %222 = vmatpush1.msra.mxu0 0.0
    %223 = vmatprep.subr.mxu0 0.0
    %224 = vmatpush1.msra.mxu0 0.0
    %225 = vmatprep.subr.mxu0 0.0
    %226 = vmatpush1.msra.mxu0 0.0
    %227 = vmatprep.subr.mxu0 0.0
    %228 = vmatpush1.msra.mxu0 0.0
    %229 = vmatprep.subr.mxu0 0.0
    %230 = vmatpush1.msra.mxu0 0.0
    %231 = vmatprep.subr.mxu0 0.0
    %232 = vmatpush1.msra.mxu0 0.0
    %233 = vmatprep.subr.mxu0 0.0
    %234 = vmatpush1.msra.mxu0 0.0
    %235 = vmatprep.subr.mxu0 0.0
    %236 = vmatpush1.msra.mxu0 0.0
    %237 = vmatprep.subr.mxu0 0.0
    %v238 = vand.u32 %v99, 4294901760
    %v239 = vsub.f32 %v99, %v238
    %v240 = vand.u32 %v239, 4294901760
    %v241 = vsub.f32 %v239, %v240
    %v242 = vand.u32 %v241, 4294901760
    %243 = vmatpush1.msra.mxu0 %v242
    %244 = vmatprep.subr.mxu0 0.0
    %245 = vmatpush2.msra.mxu0 0.0
    %246 = vmatprep.subr.mxu0 0.0
    %247 = vmatpush2.msra.mxu0 0.0
    %248 = vmatprep.subr.mxu0 0.0
    %249 = vmatpush2.msra.mxu0 0.0
    %250 = vmatprep.subr.mxu0 0.0
    %251 = vmatpush2.msra.mxu0 0.0
    %252 = vmatprep.subr.mxu0 0.0
    %253 = vmatpush2.msra.mxu0 0.0
    %254 = vmatprep.subr.mxu0 0.0
    %255 = vmatpush2.msra.mxu0 0.0
    %256 = vmatprep.subr.mxu0 0.0
    %257 = vmatpush2.msra.mxu0 0.0
    %258 = vmatprep.subr.mxu0 0.0
    %259 = vmatpush2.msra.mxu0 0.0
    %260 = vmatprep.subr.mxu0 0.0
    %261 = vmatpush2.msra.mxu0 0.0
    %262 = vmatprep.subr.mxu0 0.0
    %263 = vmatpush2.msra.mxu0 0.0
    %264 = vmatprep.subr.mxu0 0.0
    %265 = vmatpush2.msra.mxu0 0.0
    %266 = vmatprep.subr.mxu0 0.0
    %267 = vmatpush2.msra.mxu0 0.0
    %268 = vmatprep.subr.mxu0 0.0
    %269 = vmatpush2.msra.mxu0 0.0
    %270 = vmatprep.subr.mxu0 0.0
    %271 = vmatpush2.msra.mxu0 0.0
    %272 = vmatprep.subr.mxu0 0.0
    %273 = vmatpush2.msra.mxu0 0.0
    %274 = vmatprep.subr.mxu0 0.0
    %275 = vmatpush2.msra.mxu0 0.0
    %276 = vmatprep.mubr.f32.mxu0 0.0
    %v277 = vand.u32 %v86, 4294901760
    %278 = vmatmul.mubr.f32.gmra.mxu0 %v277
    %v279 = vpop.f32.mrf.mxu0
    %v280 = vadd.f32 %v174, %v279
    %v281 = vpop.f32.mrf.mxu0
    %282 = vmatprep.mubr.f32.mxu0 0.0
    %v283 = vand.u32 %v89, 4294901760
    %284 = vmatmul.mubr.f32.gmra.mxu0 %v283
    %v285 = vpop.f32.mrf.mxu0
    %v286 = vadd.f32 %v184, %v285
    %v287 = vpop.f32.mrf.mxu0
    %288 = vmatprep.mubr.f32.mxu0 0.0
    %v289 = vand.u32 %v92, 4294901760
    %290 = vmatmul.mubr.f32.gmra.mxu0 %v289
    %v291 = vpop.f32.mrf.mxu0
    %v292 = vadd.f32 %v194, %v291
    %v293 = vpop.f32.mrf.mxu0
    %294 = vmatprep.mubr.f32.mxu0 0.0
    %v295 = vand.u32 %v95, 4294901760
    %296 = vmatmul.mubr.f32.gmra.mxu0 %v295
    %v297 = vpop.f32.mrf.mxu0
    %v298 = vadd.f32 %v204, %v297
    %v299 = vpop.f32.mrf.mxu0
    %300 = vdwg.mxu0
    %301 = vmatprep.subr.mxu0 0.0
    %302 = vmatpush1.msra.mxu0 0.0
    %303 = vmatprep.subr.mxu0 0.0
    %304 = vmatpush1.msra.mxu0 0.0
    %305 = vmatprep.subr.mxu0 0.0
    %306 = vmatpush1.msra.mxu0 0.0
    %307 = vmatprep.subr.mxu0 0.0
    %308 = vmatpush1.msra.mxu0 0.0
    %309 = vmatprep.subr.mxu0 0.0
    %310 = vmatpush1.msra.mxu0 0.0
    %311 = vmatprep.subr.mxu0 0.0
    %312 = vmatpush1.msra.mxu0 0.0
    %313 = vmatprep.subr.mxu0 0.0
    %314 = vmatpush1.msra.mxu0 0.0
    %315 = vmatprep.subr.mxu0 0.0
    %316 = vmatpush1.msra.mxu0 0.0
    %317 = vmatprep.subr.mxu0 0.0
    %318 = vmatpush1.msra.mxu0 0.0
    %319 = vmatprep.subr.mxu0 0.0
    %320 = vmatpush1.msra.mxu0 0.0
    %321 = vmatprep.subr.mxu0 0.0
    %322 = vmatpush1.msra.mxu0 0.0
    %323 = vmatprep.subr.mxu0 0.0
    %324 = vmatpush1.msra.mxu0 0.0
    %325 = vmatprep.subr.mxu0 0.0
    %326 = vmatpush1.msra.mxu0 0.0
    %327 = vmatprep.subr.mxu0 0.0
    %328 = vmatpush1.msra.mxu0 0.0
    %329 = vmatprep.subr.mxu0 0.0
    %330 = vmatpush1.msra.mxu0 0.0
    %331 = vmatprep.subr.mxu0 0.0
    %v332 = vand.u32 %v99, 4294901760
    %v333 = vsub.f32 %v99, %v332
    %334 = vmatpush1.msra.mxu0 %v333
    %335 = vmatprep.subr.mxu0 0.0
    %336 = vmatpush2.msra.mxu0 0.0
    %337 = vmatprep.subr.mxu0 0.0
    %338 = vmatpush2.msra.mxu0 0.0
    %339 = vmatprep.subr.mxu0 0.0
    %340 = vmatpush2.msra.mxu0 0.0
    %341 = vmatprep.subr.mxu0 0.0
    %342 = vmatpush2.msra.mxu0 0.0
    %343 = vmatprep.subr.mxu0 0.0
    %344 = vmatpush2.msra.mxu0 0.0
    %345 = vmatprep.subr.mxu0 0.0
    %346 = vmatpush2.msra.mxu0 0.0
    %347 = vmatprep.subr.mxu0 0.0
    %348 = vmatpush2.msra.mxu0 0.0
    %349 = vmatprep.subr.mxu0 0.0
    %350 = vmatpush2.msra.mxu0 0.0
    %351 = vmatprep.subr.mxu0 0.0
    %352 = vmatpush2.msra.mxu0 0.0
    %353 = vmatprep.subr.mxu0 0.0
    %354 = vmatpush2.msra.mxu0 0.0
    %355 = vmatprep.subr.mxu0 0.0
    %356 = vmatpush2.msra.mxu0 0.0
    %357 = vmatprep.subr.mxu0 0.0
    %358 = vmatpush2.msra.mxu0 0.0
    %359 = vmatprep.subr.mxu0 0.0
    %360 = vmatpush2.msra.mxu0 0.0
    %361 = vmatprep.subr.mxu0 0.0
    %362 = vmatpush2.msra.mxu0 0.0
    %363 = vmatprep.subr.mxu0 0.0
    %364 = vmatpush2.msra.mxu0 0.0
    %365 = vmatprep.subr.mxu0 0.0
    %366 = vmatpush2.msra.mxu0 0.0
    %367 = vmatprep.mubr.f32.mxu0 0.0
    %v368 = vand.u32 %v86, 4294901760
    %v369 = vsub.f32 %v86, %v368
    %370 = vmatmul.mubr.f32.gmra.mxu0 %v369
    %v371 = vpop.f32.mrf.mxu0
    %v372 = vadd.f32 %v280, %v371
    %v373 = vpop.f32.mrf.mxu0
    %374 = vmatprep.mubr.f32.mxu0 0.0
    %v375 = vand.u32 %v89, 4294901760
    %v376 = vsub.f32 %v89, %v375
    %377 = vmatmul.mubr.f32.gmra.mxu0 %v376
    %v378 = vpop.f32.mrf.mxu0
    %v379 = vadd.f32 %v286, %v378
    %v380 = vpop.f32.mrf.mxu0
    %381 = vmatprep.mubr.f32.mxu0 0.0
    %v382 = vand.u32 %v92, 4294901760
    %v383 = vsub.f32 %v92, %v382
    %384 = vmatmul.mubr.f32.gmra.mxu0 %v383
    %v385 = vpop.f32.mrf.mxu0
    %v386 = vadd.f32 %v292, %v385
    %v387 = vpop.f32.mrf.mxu0
    %388 = vmatprep.mubr.f32.mxu0 0.0
    %v389 = vand.u32 %v95, 4294901760
    %v390 = vsub.f32 %v95, %v389
    %391 = vmatmul.mubr.f32.gmra.mxu0 %v390
    %v392 = vpop.f32.mrf.mxu0
    %v393 = vadd.f32 %v298, %v392
    %v394 = vpop.f32.mrf.mxu0
    %395 = vdwg.mxu0
    %396 = vmatprep.subr.mxu0 0.0
    %397 = vmatpush1.msra.mxu0 0.0
    %398 = vmatprep.subr.mxu0 0.0
    %399 = vmatpush1.msra.mxu0 0.0
    %400 = vmatprep.subr.mxu0 0.0
    %401 = vmatpush1.msra.mxu0 0.0
    %402 = vmatprep.subr.mxu0 0.0
    %403 = vmatpush1.msra.mxu0 0.0
    %404 = vmatprep.subr.mxu0 0.0
    %405 = vmatpush1.msra.mxu0 0.0
    %406 = vmatprep.subr.mxu0 0.0
    %407 = vmatpush1.msra.mxu0 0.0
    %408 = vmatprep.subr.mxu0 0.0
    %409 = vmatpush1.msra.mxu0 0.0
    %410 = vmatprep.subr.mxu0 0.0
    %411 = vmatpush1.msra.mxu0 0.0
    %412 = vmatprep.subr.mxu0 0.0
    %413 = vmatpush1.msra.mxu0 0.0
    %414 = vmatprep.subr.mxu0 0.0
    %415 = vmatpush1.msra.mxu0 0.0
    %416 = vmatprep.subr.mxu0 0.0
    %417 = vmatpush1.msra.mxu0 0.0
    %418 = vmatprep.subr.mxu0 0.0
    %419 = vmatpush1.msra.mxu0 0.0
    %420 = vmatprep.subr.mxu0 0.0
    %421 = vmatpush1.msra.mxu0 0.0
    %422 = vmatprep.subr.mxu0 0.0
    %423 = vmatpush1.msra.mxu0 0.0
    %424 = vmatprep.subr.mxu0 0.0
    %425 = vmatpush1.msra.mxu0 0.0
    %426 = vmatprep.subr.mxu0 0.0
    %v427 = vand.u32 %v99, 4294901760
    %428 = vmatpush1.msra.mxu0 %v427
    %429 = vmatprep.subr.mxu0 0.0
    %430 = vmatpush2.msra.mxu0 0.0
    %431 = vmatprep.subr.mxu0 0.0
    %432 = vmatpush2.msra.mxu0 0.0
    %433 = vmatprep.subr.mxu0 0.0
    %434 = vmatpush2.msra.mxu0 0.0
    %435 = vmatprep.subr.mxu0 0.0
    %436 = vmatpush2.msra.mxu0 0.0
    %437 = vmatprep.subr.mxu0 0.0
    %438 = vmatpush2.msra.mxu0 0.0
    %439 = vmatprep.subr.mxu0 0.0
    %440 = vmatpush2.msra.mxu0 0.0
    %441 = vmatprep.subr.mxu0 0.0
    %442 = vmatpush2.msra.mxu0 0.0
    %443 = vmatprep.subr.mxu0 0.0
    %444 = vmatpush2.msra.mxu0 0.0
    %445 = vmatprep.subr.mxu0 0.0
    %446 = vmatpush2.msra.mxu0 0.0
    %447 = vmatprep.subr.mxu0 0.0
    %448 = vmatpush2.msra.mxu0 0.0
    %449 = vmatprep.subr.mxu0 0.0
    %450 = vmatpush2.msra.mxu0 0.0
    %451 = vmatprep.subr.mxu0 0.0
    %452 = vmatpush2.msra.mxu0 0.0
    %453 = vmatprep.subr.mxu0 0.0
    %454 = vmatpush2.msra.mxu0 0.0
    %455 = vmatprep.subr.mxu0 0.0
    %456 = vmatpush2.msra.mxu0 0.0
    %457 = vmatprep.subr.mxu0 0.0
    %458 = vmatpush2.msra.mxu0 0.0
    %459 = vmatprep.subr.mxu0 0.0
    %460 = vmatpush2.msra.mxu0 0.0
    %461 = vmatprep.mubr.f32.mxu0 0.0
    %v462 = vand.u32 %v86, 4294901760
    %v463 = vsub.f32 %v86, %v462
    %v464 = vand.u32 %v463, 4294901760
    %465 = vmatmul.mubr.f32.gmra.mxu0 %v464
    %v466 = vpop.f32.mrf.mxu0
    %v467 = vadd.f32 %v372, %v466
    %v468 = vpop.f32.mrf.mxu0
    %469 = vmatprep.mubr.f32.mxu0 0.0
    %v470 = vand.u32 %v89, 4294901760
    %v471 = vsub.f32 %v89, %v470
    %v472 = vand.u32 %v471, 4294901760
    %473 = vmatmul.mubr.f32.gmra.mxu0 %v472
    %v474 = vpop.f32.mrf.mxu0
    %v475 = vadd.f32 %v379, %v474
    %v476 = vpop.f32.mrf.mxu0
    %477 = vmatprep.mubr.f32.mxu0 0.0
    %v478 = vand.u32 %v92, 4294901760
    %v479 = vsub.f32 %v92, %v478
    %v480 = vand.u32 %v479, 4294901760
    %481 = vmatmul.mubr.f32.gmra.mxu0 %v480
    %v482 = vpop.f32.mrf.mxu0
    %v483 = vadd.f32 %v386, %v482
    %v484 = vpop.f32.mrf.mxu0
    %485 = vmatprep.mubr.f32.mxu0 0.0
    %v486 = vand.u32 %v95, 4294901760
    %v487 = vsub.f32 %v95, %v486
    %v488 = vand.u32 %v487, 4294901760
    %489 = vmatmul.mubr.f32.gmra.mxu0 %v488
    %v490 = vpop.f32.mrf.mxu0
    %v491 = vadd.f32 %v393, %v490
    %v492 = vpop.f32.mrf.mxu0
    %493 = vdwg.mxu0
    %494 = vmatprep.subr.mxu0 0.0
    %495 = vmatpush1.msra.mxu0 0.0
    %496 = vmatprep.subr.mxu0 0.0
    %497 = vmatpush1.msra.mxu0 0.0
    %498 = vmatprep.subr.mxu0 0.0
    %499 = vmatpush1.msra.mxu0 0.0
    %500 = vmatprep.subr.mxu0 0.0
    %501 = vmatpush1.msra.mxu0 0.0
    %502 = vmatprep.subr.mxu0 0.0
    %503 = vmatpush1.msra.mxu0 0.0
    %504 = vmatprep.subr.mxu0 0.0
    %505 = vmatpush1.msra.mxu0 0.0
    %506 = vmatprep.subr.mxu0 0.0
    %507 = vmatpush1.msra.mxu0 0.0
    %508 = vmatprep.subr.mxu0 0.0
    %509 = vmatpush1.msra.mxu0 0.0
    %510 = vmatprep.subr.mxu0 0.0
    %511 = vmatpush1.msra.mxu0 0.0
    %512 = vmatprep.subr.mxu0 0.0
    %513 = vmatpush1.msra.mxu0 0.0
    %514 = vmatprep.subr.mxu0 0.0
    %515 = vmatpush1.msra.mxu0 0.0
    %516 = vmatprep.subr.mxu0 0.0
    %517 = vmatpush1.msra.mxu0 0.0
    %518 = vmatprep.subr.mxu0 0.0
    %519 = vmatpush1.msra.mxu0 0.0
    %520 = vmatprep.subr.mxu0 0.0
    %521 = vmatpush1.msra.mxu0 0.0
    %522 = vmatprep.subr.mxu0 0.0
    %523 = vmatpush1.msra.mxu0 0.0
    %524 = vmatprep.subr.mxu0 0.0
    %v525 = vand.u32 %v99, 4294901760
    %v526 = vsub.f32 %v99, %v525
    %v527 = vand.u32 %v526, 4294901760
    %528 = vmatpush1.msra.mxu0 %v527
    %529 = vmatprep.subr.mxu0 0.0
    %530 = vmatpush2.msra.mxu0 0.0
    %531 = vmatprep.subr.mxu0 0.0
    %532 = vmatpush2.msra.mxu0 0.0
    %533 = vmatprep.subr.mxu0 0.0
    %534 = vmatpush2.msra.mxu0 0.0
    %535 = vmatprep.subr.mxu0 0.0
    %536 = vmatpush2.msra.mxu0 0.0
    %537 = vmatprep.subr.mxu0 0.0
    %538 = vmatpush2.msra.mxu0 0.0
    %539 = vmatprep.subr.mxu0 0.0
    %540 = vmatpush2.msra.mxu0 0.0
    %541 = vmatprep.subr.mxu0 0.0
    %542 = vmatpush2.msra.mxu0 0.0
    %543 = vmatprep.subr.mxu0 0.0
    %544 = vmatpush2.msra.mxu0 0.0
    %545 = vmatprep.subr.mxu0 0.0
    %546 = vmatpush2.msra.mxu0 0.0
    %547 = vmatprep.subr.mxu0 0.0
    %548 = vmatpush2.msra.mxu0 0.0
    %549 = vmatprep.subr.mxu0 0.0
    %550 = vmatpush2.msra.mxu0 0.0
    %551 = vmatprep.subr.mxu0 0.0
    %552 = vmatpush2.msra.mxu0 0.0
    %553 = vmatprep.subr.mxu0 0.0
    %554 = vmatpush2.msra.mxu0 0.0
    %555 = vmatprep.subr.mxu0 0.0
    %556 = vmatpush2.msra.mxu0 0.0
    %557 = vmatprep.subr.mxu0 0.0
    %558 = vmatpush2.msra.mxu0 0.0
    %559 = vmatprep.subr.mxu0 0.0
    %560 = vmatpush2.msra.mxu0 0.0
    %561 = vmatprep.mubr.f32.mxu0 0.0
    %v562 = vand.u32 %v86, 4294901760
    %563 = vmatmul.mubr.f32.gmra.mxu0 %v562
    %v564 = vpop.f32.mrf.mxu0
    %v565 = vadd.f32 %v467, %v564
    %v566 = vpop.f32.mrf.mxu0
    %567 = vmatprep.mubr.f32.mxu0 0.0
    %v568 = vand.u32 %v89, 4294901760
    %569 = vmatmul.mubr.f32.gmra.mxu0 %v568
    %v570 = vpop.f32.mrf.mxu0
    %v571 = vadd.f32 %v475, %v570
    %v572 = vpop.f32.mrf.mxu0
    %573 = vmatprep.mubr.f32.mxu0 0.0
    %v574 = vand.u32 %v92, 4294901760
    %575 = vmatmul.mubr.f32.gmra.mxu0 %v574
    %v576 = vpop.f32.mrf.mxu0
    %v577 = vadd.f32 %v483, %v576
    %v578 = vpop.f32.mrf.mxu0
    %579 = vmatprep.mubr.f32.mxu0 0.0
    %v580 = vand.u32 %v95, 4294901760
    %581 = vmatmul.mubr.f32.gmra.mxu0 %v580
    %v582 = vpop.f32.mrf.mxu0
    %v583 = vadd.f32 %v491, %v582
    %v584 = vpop.f32.mrf.mxu0
    %585 = vdwg.mxu0
    %586 = vmatprep.subr.mxu0 0.0
    %587 = vmatpush1.msra.mxu0 0.0
    %588 = vmatprep.subr.mxu0 0.0
    %589 = vmatpush1.msra.mxu0 0.0
    %590 = vmatprep.subr.mxu0 0.0
    %591 = vmatpush1.msra.mxu0 0.0
    %592 = vmatprep.subr.mxu0 0.0
    %593 = vmatpush1.msra.mxu0 0.0
    %594 = vmatprep.subr.mxu0 0.0
    %595 = vmatpush1.msra.mxu0 0.0
    %596 = vmatprep.subr.mxu0 0.0
    %597 = vmatpush1.msra.mxu0 0.0
    %598 = vmatprep.subr.mxu0 0.0
    %599 = vmatpush1.msra.mxu0 0.0
    %600 = vmatprep.subr.mxu0 0.0
    %601 = vmatpush1.msra.mxu0 0.0
    %602 = vmatprep.subr.mxu0 0.0
    %603 = vmatpush1.msra.mxu0 0.0
    %604 = vmatprep.subr.mxu0 0.0
    %605 = vmatpush1.msra.mxu0 0.0
    %606 = vmatprep.subr.mxu0 0.0
    %607 = vmatpush1.msra.mxu0 0.0
    %608 = vmatprep.subr.mxu0 0.0
    %609 = vmatpush1.msra.mxu0 0.0
    %610 = vmatprep.subr.mxu0 0.0
    %611 = vmatpush1.msra.mxu0 0.0
    %612 = vmatprep.subr.mxu0 0.0
    %613 = vmatpush1.msra.mxu0 0.0
    %614 = vmatprep.subr.mxu0 0.0
    %615 = vmatpush1.msra.mxu0 0.0
    %616 = vmatprep.subr.mxu0 0.0
    %v617 = vand.u32 %v99, 4294901760
    %618 = vmatpush1.msra.mxu0 %v617
    %619 = vmatprep.subr.mxu0 0.0
    %620 = vmatpush2.msra.mxu0 0.0
    %621 = vmatprep.subr.mxu0 0.0
    %622 = vmatpush2.msra.mxu0 0.0
    %623 = vmatprep.subr.mxu0 0.0
    %624 = vmatpush2.msra.mxu0 0.0
    %625 = vmatprep.subr.mxu0 0.0
    %626 = vmatpush2.msra.mxu0 0.0
    %627 = vmatprep.subr.mxu0 0.0
    %628 = vmatpush2.msra.mxu0 0.0
    %629 = vmatprep.subr.mxu0 0.0
    %630 = vmatpush2.msra.mxu0 0.0
    %631 = vmatprep.subr.mxu0 0.0
    %632 = vmatpush2.msra.mxu0 0.0
    %633 = vmatprep.subr.mxu0 0.0
    %634 = vmatpush2.msra.mxu0 0.0
    %635 = vmatprep.subr.mxu0 0.0
    %636 = vmatpush2.msra.mxu0 0.0
    %637 = vmatprep.subr.mxu0 0.0
    %638 = vmatpush2.msra.mxu0 0.0
    %639 = vmatprep.subr.mxu0 0.0
    %640 = vmatpush2.msra.mxu0 0.0
    %641 = vmatprep.subr.mxu0 0.0
    %642 = vmatpush2.msra.mxu0 0.0
    %643 = vmatprep.subr.mxu0 0.0
    %644 = vmatpush2.msra.mxu0 0.0
    %645 = vmatprep.subr.mxu0 0.0
    %646 = vmatpush2.msra.mxu0 0.0
    %647 = vmatprep.subr.mxu0 0.0
    %648 = vmatpush2.msra.mxu0 0.0
    %649 = vmatprep.subr.mxu0 0.0
    %650 = vmatpush2.msra.mxu0 0.0
    %651 = vmatprep.mubr.f32.mxu0 0.0
    %v652 = vand.u32 %v86, 4294901760
    %653 = vmatmul.mubr.f32.gmra.mxu0 %v652
    %v654 = vpop.f32.mrf.mxu0
    %v655 = vadd.f32 %v565, %v654
    %v656 = vpop.f32.mrf.mxu0
    %657 = vmatprep.mubr.f32.mxu0 0.0
    %v658 = vand.u32 %v89, 4294901760
    %659 = vmatmul.mubr.f32.gmra.mxu0 %v658
    %v660 = vpop.f32.mrf.mxu0
    %v661 = vadd.f32 %v571, %v660
    %v662 = vpop.f32.mrf.mxu0
    %663 = vmatprep.mubr.f32.mxu0 0.0
    %v664 = vand.u32 %v92, 4294901760
    %665 = vmatmul.mubr.f32.gmra.mxu0 %v664
    %v666 = vpop.f32.mrf.mxu0
    %v667 = vadd.f32 %v577, %v666
    %v668 = vpop.f32.mrf.mxu0
    %669 = vmatprep.mubr.f32.mxu0 0.0
    %v670 = vand.u32 %v95, 4294901760
    %671 = vmatmul.mubr.f32.gmra.mxu0 %v670
    %v672 = vpop.f32.mrf.mxu0
    %v673 = vadd.f32 %v583, %v672
    %v674 = vpop.f32.mrf.mxu0
    %675 = vdwg.mxu0
    %v676 = vld [vmem:[#allocation5] sm:$0xf]
    %v678 = vsel %vm97, %v676, 0
    %680 = vmatprep.subr.mxu0 0.0
    %681 = vmatpush1.msra.mxu0 0.0
    %682 = vmatprep.subr.mxu0 0.0
    %683 = vmatpush1.msra.mxu0 0.0
    %684 = vmatprep.subr.mxu0 0.0
    %685 = vmatpush1.msra.mxu0 0.0
    %686 = vmatprep.subr.mxu0 0.0
    %687 = vmatpush1.msra.mxu0 0.0
    %688 = vmatprep.subr.mxu0 0.0
    %689 = vmatpush1.msra.mxu0 0.0
    %690 = vmatprep.subr.mxu0 0.0
    %691 = vmatpush1.msra.mxu0 0.0
    %692 = vmatprep.subr.mxu0 0.0
    %693 = vmatpush1.msra.mxu0 0.0
    %694 = vmatprep.subr.mxu0 0.0
    %695 = vmatpush1.msra.mxu0 0.0
    %696 = vmatprep.subr.mxu0 0.0
    %697 = vmatpush1.msra.mxu0 0.0
    %698 = vmatprep.subr.mxu0 0.0
    %699 = vmatpush1.msra.mxu0 0.0
    %700 = vmatprep.subr.mxu0 0.0
    %701 = vmatpush1.msra.mxu0 0.0
    %702 = vmatprep.subr.mxu0 0.0
    %703 = vmatpush1.msra.mxu0 0.0
    %704 = vmatprep.subr.mxu0 0.0
    %705 = vmatpush1.msra.mxu0 0.0
    %706 = vmatprep.subr.mxu0 0.0
    %707 = vmatpush1.msra.mxu0 0.0
    %708 = vmatprep.subr.mxu0 0.0
    %709 = vmatpush1.msra.mxu0 0.0
    %710 = vmatprep.subr.mxu0 0.0
    %v711 = vand.u32 %v678, 4294901760
    %712 = vmatpush1.msra.mxu0 %v711
    %713 = vmatprep.subr.mxu0 0.0
    %714 = vmatpush2.msra.mxu0 0.0
    %715 = vmatprep.subr.mxu0 0.0
    %716 = vmatpush2.msra.mxu0 0.0
    %717 = vmatprep.subr.mxu0 0.0
    %718 = vmatpush2.msra.mxu0 0.0
    %719 = vmatprep.subr.mxu0 0.0
    %720 = vmatpush2.msra.mxu0 0.0
    %721 = vmatprep.subr.mxu0 0.0
    %722 = vmatpush2.msra.mxu0 0.0
    %723 = vmatprep.subr.mxu0 0.0
    %724 = vmatpush2.msra.mxu0 0.0
    %725 = vmatprep.subr.mxu0 0.0
    %726 = vmatpush2.msra.mxu0 0.0
    %727 = vmatprep.subr.mxu0 0.0
    %728 = vmatpush2.msra.mxu0 0.0
    %729 = vmatprep.subr.mxu0 0.0
    %730 = vmatpush2.msra.mxu0 0.0
    %731 = vmatprep.subr.mxu0 0.0
    %732 = vmatpush2.msra.mxu0 0.0
    %733 = vmatprep.subr.mxu0 0.0
    %734 = vmatpush2.msra.mxu0 0.0
    %735 = vmatprep.subr.mxu0 0.0
    %736 = vmatpush2.msra.mxu0 0.0
    %737 = vmatprep.subr.mxu0 0.0
    %738 = vmatpush2.msra.mxu0 0.0
    %739 = vmatprep.subr.mxu0 0.0
    %740 = vmatpush2.msra.mxu0 0.0
    %741 = vmatprep.subr.mxu0 0.0
    %742 = vmatpush2.msra.mxu0 0.0
    %743 = vmatprep.subr.mxu0 0.0
    %744 = vmatpush2.msra.mxu0 0.0
    %745 = vmatprep.mubr.f32.mxu0 0.0
    %v746 = vand.u32 %v86, 4294901760
    %v747 = vsub.f32 %v86, %v746
    %v748 = vand.u32 %v747, 4294901760
    %v749 = vsub.f32 %v747, %v748
    %v750 = vand.u32 %v749, 4294901760
    %751 = vmatmul.mubr.f32.gmra.mxu0 %v750
    %v752 = vpop.f32.mrf.mxu0
    %v753 = vadd.f32 0.0, %v752
    %v754 = vpop.f32.mrf.mxu0
    %755 = vmatprep.mubr.f32.mxu0 0.0
    %v756 = vand.u32 %v89, 4294901760
    %v757 = vsub.f32 %v89, %v756
    %v758 = vand.u32 %v757, 4294901760
    %v759 = vsub.f32 %v757, %v758
    %v760 = vand.u32 %v759, 4294901760
    %761 = vmatmul.mubr.f32.gmra.mxu0 %v760
    %v762 = vpop.f32.mrf.mxu0
    %v763 = vadd.f32 0.0, %v762
    %v764 = vpop.f32.mrf.mxu0
    %765 = vmatprep.mubr.f32.mxu0 0.0
    %v766 = vand.u32 %v92, 4294901760
    %v767 = vsub.f32 %v92, %v766
    %v768 = vand.u32 %v767, 4294901760
    %v769 = vsub.f32 %v767, %v768
    %v770 = vand.u32 %v769, 4294901760
    %771 = vmatmul.mubr.f32.gmra.mxu0 %v770
    %v772 = vpop.f32.mrf.mxu0
    %v773 = vadd.f32 0.0, %v772
    %v774 = vpop.f32.mrf.mxu0
    %775 = vmatprep.mubr.f32.mxu0 0.0
    %v776 = vand.u32 %v95, 4294901760
    %v777 = vsub.f32 %v95, %v776
    %v778 = vand.u32 %v777, 4294901760
    %v779 = vsub.f32 %v777, %v778
    %v780 = vand.u32 %v779, 4294901760
    %781 = vmatmul.mubr.f32.gmra.mxu0 %v780
    %v782 = vpop.f32.mrf.mxu0
    %v783 = vadd.f32 0.0, %v782
    %v784 = vpop.f32.mrf.mxu0
    %785 = vdwg.mxu0
    %786 = vmatprep.subr.mxu0 0.0
    %787 = vmatpush1.msra.mxu0 0.0
    %788 = vmatprep.subr.mxu0 0.0
    %789 = vmatpush1.msra.mxu0 0.0
    %790 = vmatprep.subr.mxu0 0.0
    %791 = vmatpush1.msra.mxu0 0.0
    %792 = vmatprep.subr.mxu0 0.0
    %793 = vmatpush1.msra.mxu0 0.0
    %794 = vmatprep.subr.mxu0 0.0
    %795 = vmatpush1.msra.mxu0 0.0
    %796 = vmatprep.subr.mxu0 0.0
    %797 = vmatpush1.msra.mxu0 0.0
    %798 = vmatprep.subr.mxu0 0.0
    %799 = vmatpush1.msra.mxu0 0.0
    %800 = vmatprep.subr.mxu0 0.0
    %801 = vmatpush1.msra.mxu0 0.0
    %802 = vmatprep.subr.mxu0 0.0
    %803 = vmatpush1.msra.mxu0 0.0
    %804 = vmatprep.subr.mxu0 0.0
    %805 = vmatpush1.msra.mxu0 0.0
    %806 = vmatprep.subr.mxu0 0.0
    %807 = vmatpush1.msra.mxu0 0.0
    %808 = vmatprep.subr.mxu0 0.0
    %809 = vmatpush1.msra.mxu0 0.0
    %810 = vmatprep.subr.mxu0 0.0
    %811 = vmatpush1.msra.mxu0 0.0
    %812 = vmatprep.subr.mxu0 0.0
    %813 = vmatpush1.msra.mxu0 0.0
    %814 = vmatprep.subr.mxu0 0.0
    %815 = vmatpush1.msra.mxu0 0.0
    %816 = vmatprep.subr.mxu0 0.0
    %v817 = vand.u32 %v678, 4294901760
    %v818 = vsub.f32 %v678, %v817
    %v819 = vand.u32 %v818, 4294901760
    %v820 = vsub.f32 %v818, %v819
    %v821 = vand.u32 %v820, 4294901760
    %822 = vmatpush1.msra.mxu0 %v821
    %823 = vmatprep.subr.mxu0 0.0
    %824 = vmatpush2.msra.mxu0 0.0
    %825 = vmatprep.subr.mxu0 0.0
    %826 = vmatpush2.msra.mxu0 0.0
    %827 = vmatprep.subr.mxu0 0.0
    %828 = vmatpush2.msra.mxu0 0.0
    %829 = vmatprep.subr.mxu0 0.0
    %830 = vmatpush2.msra.mxu0 0.0
    %831 = vmatprep.subr.mxu0 0.0
    %832 = vmatpush2.msra.mxu0 0.0
    %833 = vmatprep.subr.mxu0 0.0
    %834 = vmatpush2.msra.mxu0 0.0
    %835 = vmatprep.subr.mxu0 0.0
    %836 = vmatpush2.msra.mxu0 0.0
    %837 = vmatprep.subr.mxu0 0.0
    %838 = vmatpush2.msra.mxu0 0.0
    %839 = vmatprep.subr.mxu0 0.0
    %840 = vmatpush2.msra.mxu0 0.0
    %841 = vmatprep.subr.mxu0 0.0
    %842 = vmatpush2.msra.mxu0 0.0
    %843 = vmatprep.subr.mxu0 0.0
    %844 = vmatpush2.msra.mxu0 0.0
    %845 = vmatprep.subr.mxu0 0.0
    %846 = vmatpush2.msra.mxu0 0.0
    %847 = vmatprep.subr.mxu0 0.0
    %848 = vmatpush2.msra.mxu0 0.0
    %849 = vmatprep.subr.mxu0 0.0
    %850 = vmatpush2.msra.mxu0 0.0
    %851 = vmatprep.subr.mxu0 0.0
    %852 = vmatpush2.msra.mxu0 0.0
    %853 = vmatprep.subr.mxu0 0.0
    %854 = vmatpush2.msra.mxu0 0.0
    %855 = vmatprep.mubr.f32.mxu0 0.0
    %v856 = vand.u32 %v86, 4294901760
    %857 = vmatmul.mubr.f32.gmra.mxu0 %v856
    %v858 = vpop.f32.mrf.mxu0
    %v859 = vadd.f32 %v753, %v858
    %v860 = vpop.f32.mrf.mxu0
    %861 = vmatprep.mubr.f32.mxu0 0.0
    %v862 = vand.u32 %v89, 4294901760
    %863 = vmatmul.mubr.f32.gmra.mxu0 %v862
    %v864 = vpop.f32.mrf.mxu0
    %v865 = vadd.f32 %v763, %v864
    %v866 = vpop.f32.mrf.mxu0
    %867 = vmatprep.mubr.f32.mxu0 0.0
    %v868 = vand.u32 %v92, 4294901760
    %869 = vmatmul.mubr.f32.gmra.mxu0 %v868
    %v870 = vpop.f32.mrf.mxu0
    %v871 = vadd.f32 %v773, %v870
    %v872 = vpop.f32.mrf.mxu0
    %873 = vmatprep.mubr.f32.mxu0 0.0
    %v874 = vand.u32 %v95, 4294901760
    %875 = vmatmul.mubr.f32.gmra.mxu0 %v874
    %v876 = vpop.f32.mrf.mxu0
    %v877 = vadd.f32 %v783, %v876
    %v878 = vpop.f32.mrf.mxu0
    %879 = vdwg.mxu0
    %880 = vmatprep.subr.mxu0 0.0
    %881 = vmatpush1.msra.mxu0 0.0
    %882 = vmatprep.subr.mxu0 0.0
    %883 = vmatpush1.msra.mxu0 0.0
    %884 = vmatprep.subr.mxu0 0.0
    %885 = vmatpush1.msra.mxu0 0.0
    %886 = vmatprep.subr.mxu0 0.0
    %887 = vmatpush1.msra.mxu0 0.0
    %888 = vmatprep.subr.mxu0 0.0
    %889 = vmatpush1.msra.mxu0 0.0
    %890 = vmatprep.subr.mxu0 0.0
    %891 = vmatpush1.msra.mxu0 0.0
    %892 = vmatprep.subr.mxu0 0.0
    %893 = vmatpush1.msra.mxu0 0.0
    %894 = vmatprep.subr.mxu0 0.0
    %895 = vmatpush1.msra.mxu0 0.0
    %896 = vmatprep.subr.mxu0 0.0
    %897 = vmatpush1.msra.mxu0 0.0
    %898 = vmatprep.subr.mxu0 0.0
    %899 = vmatpush1.msra.mxu0 0.0
    %900 = vmatprep.subr.mxu0 0.0
    %901 = vmatpush1.msra.mxu0 0.0
    %902 = vmatprep.subr.mxu0 0.0
    %903 = vmatpush1.msra.mxu0 0.0
    %904 = vmatprep.subr.mxu0 0.0
    %905 = vmatpush1.msra.mxu0 0.0
    %906 = vmatprep.subr.mxu0 0.0
    %907 = vmatpush1.msra.mxu0 0.0
    %908 = vmatprep.subr.mxu0 0.0
    %909 = vmatpush1.msra.mxu0 0.0
    %910 = vmatprep.subr.mxu0 0.0
    %v911 = vand.u32 %v678, 4294901760
    %v912 = vsub.f32 %v678, %v911
    %913 = vmatpush1.msra.mxu0 %v912
    %914 = vmatprep.subr.mxu0 0.0
    %915 = vmatpush2.msra.mxu0 0.0
    %916 = vmatprep.subr.mxu0 0.0
    %917 = vmatpush2.msra.mxu0 0.0
    %918 = vmatprep.subr.mxu0 0.0
    %919 = vmatpush2.msra.mxu0 0.0
    %920 = vmatprep.subr.mxu0 0.0
    %921 = vmatpush2.msra.mxu0 0.0
    %922 = vmatprep.subr.mxu0 0.0
    %923 = vmatpush2.msra.mxu0 0.0
    %924 = vmatprep.subr.mxu0 0.0
    %925 = vmatpush2.msra.mxu0 0.0
    %926 = vmatprep.subr.mxu0 0.0
    %927 = vmatpush2.msra.mxu0 0.0
    %928 = vmatprep.subr.mxu0 0.0
    %929 = vmatpush2.msra.mxu0 0.0
    %930 = vmatprep.subr.mxu0 0.0
    %931 = vmatpush2.msra.mxu0 0.0
    %932 = vmatprep.subr.mxu0 0.0
    %933 = vmatpush2.msra.mxu0 0.0
    %934 = vmatprep.subr.mxu0 0.0
    %935 = vmatpush2.msra.mxu0 0.0
    %936 = vmatprep.subr.mxu0 0.0
    %937 = vmatpush2.msra.mxu0 0.0
    %938 = vmatprep.subr.mxu0 0.0
    %939 = vmatpush2.msra.mxu0 0.0
    %940 = vmatprep.subr.mxu0 0.0
    %941 = vmatpush2.msra.mxu0 0.0
    %942 = vmatprep.subr.mxu0 0.0
    %943 = vmatpush2.msra.mxu0 0.0
    %944 = vmatprep.subr.mxu0 0.0
    %945 = vmatpush2.msra.mxu0 0.0
    %946 = vmatprep.mubr.f32.mxu0 0.0
    %v947 = vand.u32 %v86, 4294901760
    %v948 = vsub.f32 %v86, %v947
    %949 = vmatmul.mubr.f32.gmra.mxu0 %v948
    %v950 = vpop.f32.mrf.mxu0
    %v951 = vadd.f32 %v859, %v950
    %v952 = vpop.f32.mrf.mxu0
    %953 = vmatprep.mubr.f32.mxu0 0.0
    %v954 = vand.u32 %v89, 4294901760
    %v955 = vsub.f32 %v89, %v954
    %956 = vmatmul.mubr.f32.gmra.mxu0 %v955
    %v957 = vpop.f32.mrf.mxu0
    %v958 = vadd.f32 %v865, %v957
    %v959 = vpop.f32.mrf.mxu0
    %960 = vmatprep.mubr.f32.mxu0 0.0
    %v961 = vand.u32 %v92, 4294901760
    %v962 = vsub.f32 %v92, %v961
    %963 = vmatmul.mubr.f32.gmra.mxu0 %v962
    %v964 = vpop.f32.mrf.mxu0
    %v965 = vadd.f32 %v871, %v964
    %v966 = vpop.f32.mrf.mxu0
    %967 = vmatprep.mubr.f32.mxu0 0.0
    %v968 = vand.u32 %v95, 4294901760
    %v969 = vsub.f32 %v95, %v968
    %970 = vmatmul.mubr.f32.gmra.mxu0 %v969
    %v971 = vpop.f32.mrf.mxu0
    %v972 = vadd.f32 %v877, %v971
    %v973 = vpop.f32.mrf.mxu0
    %974 = vdwg.mxu0
    %975 = vmatprep.subr.mxu0 0.0
    %976 = vmatpush1.msra.mxu0 0.0
    %977 = vmatprep.subr.mxu0 0.0
    %978 = vmatpush1.msra.mxu0 0.0
    %979 = vmatprep.subr.mxu0 0.0
    %980 = vmatpush1.msra.mxu0 0.0
    %981 = vmatprep.subr.mxu0 0.0
    %982 = vmatpush1.msra.mxu0 0.0
    %983 = vmatprep.subr.mxu0 0.0
    %984 = vmatpush1.msra.mxu0 0.0
    %985 = vmatprep.subr.mxu0 0.0
    %986 = vmatpush1.msra.mxu0 0.0
    %987 = vmatprep.subr.mxu0 0.0
    %988 = vmatpush1.msra.mxu0 0.0
    %989 = vmatprep.subr.mxu0 0.0
    %990 = vmatpush1.msra.mxu0 0.0
    %991 = vmatprep.subr.mxu0 0.0
    %992 = vmatpush1.msra.mxu0 0.0
    %993 = vmatprep.subr.mxu0 0.0
    %994 = vmatpush1.msra.mxu0 0.0
    %995 = vmatprep.subr.mxu0 0.0
    %996 = vmatpush1.msra.mxu0 0.0
    %997 = vmatprep.subr.mxu0 0.0
    %998 = vmatpush1.msra.mxu0 0.0
    %999 = vmatprep.subr.mxu0 0.0
    %1000 = vmatpush1.msra.mxu0 0.0
    %1001 = vmatprep.subr.mxu0 0.0
    %1002 = vmatpush1.msra.mxu0 0.0
    %1003 = vmatprep.subr.mxu0 0.0
    %1004 = vmatpush1.msra.mxu0 0.0
    %1005 = vmatprep.subr.mxu0 0.0
    %v1006 = vand.u32 %v678, 4294901760
    %1007 = vmatpush1.msra.mxu0 %v1006
    %1008 = vmatprep.subr.mxu0 0.0
    %1009 = vmatpush2.msra.mxu0 0.0
    %1010 = vmatprep.subr.mxu0 0.0
    %1011 = vmatpush2.msra.mxu0 0.0
    %1012 = vmatprep.subr.mxu0 0.0
    %1013 = vmatpush2.msra.mxu0 0.0
    %1014 = vmatprep.subr.mxu0 0.0
    %1015 = vmatpush2.msra.mxu0 0.0
    %1016 = vmatprep.subr.mxu0 0.0
    %1017 = vmatpush2.msra.mxu0 0.0
    %1018 = vmatprep.subr.mxu0 0.0
    %1019 = vmatpush2.msra.mxu0 0.0
    %1020 = vmatprep.subr.mxu0 0.0
    %1021 = vmatpush2.msra.mxu0 0.0
    %1022 = vmatprep.subr.mxu0 0.0
    %1023 = vmatpush2.msra.mxu0 0.0
    %1024 = vmatprep.subr.mxu0 0.0
    %1025 = vmatpush2.msra.mxu0 0.0
    %1026 = vmatprep.subr.mxu0 0.0
    %1027 = vmatpush2.msra.mxu0 0.0
    %1028 = vmatprep.subr.mxu0 0.0
    %1029 = vmatpush2.msra.mxu0 0.0
    %1030 = vmatprep.subr.mxu0 0.0
    %1031 = vmatpush2.msra.mxu0 0.0
    %1032 = vmatprep.subr.mxu0 0.0
    %1033 = vmatpush2.msra.mxu0 0.0
    %1034 = vmatprep.subr.mxu0 0.0
    %1035 = vmatpush2.msra.mxu0 0.0
    %1036 = vmatprep.subr.mxu0 0.0
    %1037 = vmatpush2.msra.mxu0 0.0
    %1038 = vmatprep.subr.mxu0 0.0
    %1039 = vmatpush2.msra.mxu0 0.0
    %1040 = vmatprep.mubr.f32.mxu0 0.0
    %v1041 = vand.u32 %v86, 4294901760
    %v1042 = vsub.f32 %v86, %v1041
    %v1043 = vand.u32 %v1042, 4294901760
    %1044 = vmatmul.mubr.f32.gmra.mxu0 %v1043
    %v1045 = vpop.f32.mrf.mxu0
    %v1046 = vadd.f32 %v951, %v1045
    %v1047 = vpop.f32.mrf.mxu0
    %1048 = vmatprep.mubr.f32.mxu0 0.0
    %v1049 = vand.u32 %v89, 4294901760
    %v1050 = vsub.f32 %v89, %v1049
    %v1051 = vand.u32 %v1050, 4294901760
    %1052 = vmatmul.mubr.f32.gmra.mxu0 %v1051
    %v1053 = vpop.f32.mrf.mxu0
    %v1054 = vadd.f32 %v958, %v1053
    %v1055 = vpop.f32.mrf.mxu0
    %1056 = vmatprep.mubr.f32.mxu0 0.0
    %v1057 = vand.u32 %v92, 4294901760
    %v1058 = vsub.f32 %v92, %v1057
    %v1059 = vand.u32 %v1058, 4294901760
    %1060 = vmatmul.mubr.f32.gmra.mxu0 %v1059
    %v1061 = vpop.f32.mrf.mxu0
    %v1062 = vadd.f32 %v965, %v1061
    %v1063 = vpop.f32.mrf.mxu0
    %1064 = vmatprep.mubr.f32.mxu0 0.0
    %v1065 = vand.u32 %v95, 4294901760
    %v1066 = vsub.f32 %v95, %v1065
    %v1067 = vand.u32 %v1066, 4294901760
    %1068 = vmatmul.mubr.f32.gmra.mxu0 %v1067
    %v1069 = vpop.f32.mrf.mxu0
    %v1070 = vadd.f32 %v972, %v1069
    %v1071 = vpop.f32.mrf.mxu0
    %1072 = vdwg.mxu0
    %1073 = vmatprep.subr.mxu0 0.0
    %1074 = vmatpush1.msra.mxu0 0.0
    %1075 = vmatprep.subr.mxu0 0.0
    %1076 = vmatpush1.msra.mxu0 0.0
    %1077 = vmatprep.subr.mxu0 0.0
    %1078 = vmatpush1.msra.mxu0 0.0
    %1079 = vmatprep.subr.mxu0 0.0
    %1080 = vmatpush1.msra.mxu0 0.0
    %1081 = vmatprep.subr.mxu0 0.0
    %1082 = vmatpush1.msra.mxu0 0.0
    %1083 = vmatprep.subr.mxu0 0.0
    %1084 = vmatpush1.msra.mxu0 0.0
    %1085 = vmatprep.subr.mxu0 0.0
    %1086 = vmatpush1.msra.mxu0 0.0
    %1087 = vmatprep.subr.mxu0 0.0
    %1088 = vmatpush1.msra.mxu0 0.0
    %1089 = vmatprep.subr.mxu0 0.0
    %1090 = vmatpush1.msra.mxu0 0.0
    %1091 = vmatprep.subr.mxu0 0.0
    %1092 = vmatpush1.msra.mxu0 0.0
    %1093 = vmatprep.subr.mxu0 0.0
    %1094 = vmatpush1.msra.mxu0 0.0
    %1095 = vmatprep.subr.mxu0 0.0
    %1096 = vmatpush1.msra.mxu0 0.0
    %1097 = vmatprep.subr.mxu0 0.0
    %1098 = vmatpush1.msra.mxu0 0.0
    %1099 = vmatprep.subr.mxu0 0.0
    %1100 = vmatpush1.msra.mxu0 0.0
    %1101 = vmatprep.subr.mxu0 0.0
    %1102 = vmatpush1.msra.mxu0 0.0
    %1103 = vmatprep.subr.mxu0 0.0
    %v1104 = vand.u32 %v678, 4294901760
    %v1105 = vsub.f32 %v678, %v1104
    %v1106 = vand.u32 %v1105, 4294901760
    %1107 = vmatpush1.msra.mxu0 %v1106
    %1108 = vmatprep.subr.mxu0 0.0
    %1109 = vmatpush2.msra.mxu0 0.0
    %1110 = vmatprep.subr.mxu0 0.0
    %1111 = vmatpush2.msra.mxu0 0.0
    %1112 = vmatprep.subr.mxu0 0.0
    %1113 = vmatpush2.msra.mxu0 0.0
    %1114 = vmatprep.subr.mxu0 0.0
    %1115 = vmatpush2.msra.mxu0 0.0
    %1116 = vmatprep.subr.mxu0 0.0
    %1117 = vmatpush2.msra.mxu0 0.0
    %1118 = vmatprep.subr.mxu0 0.0
    %1119 = vmatpush2.msra.mxu0 0.0
    %1120 = vmatprep.subr.mxu0 0.0
    %1121 = vmatpush2.msra.mxu0 0.0
    %1122 = vmatprep.subr.mxu0 0.0
    %1123 = vmatpush2.msra.mxu0 0.0
    %1124 = vmatprep.subr.mxu0 0.0
    %1125 = vmatpush2.msra.mxu0 0.0
    %1126 = vmatprep.subr.mxu0 0.0
    %1127 = vmatpush2.msra.mxu0 0.0
    %1128 = vmatprep.subr.mxu0 0.0
    %1129 = vmatpush2.msra.mxu0 0.0
    %1130 = vmatprep.subr.mxu0 0.0
    %1131 = vmatpush2.msra.mxu0 0.0
    %1132 = vmatprep.subr.mxu0 0.0
    %1133 = vmatpush2.msra.mxu0 0.0
    %1134 = vmatprep.subr.mxu0 0.0
    %1135 = vmatpush2.msra.mxu0 0.0
    %1136 = vmatprep.subr.mxu0 0.0
    %1137 = vmatpush2.msra.mxu0 0.0
    %1138 = vmatprep.subr.mxu0 0.0
    %1139 = vmatpush2.msra.mxu0 0.0
    %1140 = vmatprep.mubr.f32.mxu0 0.0
    %v1141 = vand.u32 %v86, 4294901760
    %1142 = vmatmul.mubr.f32.gmra.mxu0 %v1141
    %v1143 = vpop.f32.mrf.mxu0
    %v1144 = vadd.f32 %v1046, %v1143
    %v1145 = vpop.f32.mrf.mxu0
    %1146 = vmatprep.mubr.f32.mxu0 0.0
    %v1147 = vand.u32 %v89, 4294901760
    %1148 = vmatmul.mubr.f32.gmra.mxu0 %v1147
    %v1149 = vpop.f32.mrf.mxu0
    %v1150 = vadd.f32 %v1054, %v1149
    %v1151 = vpop.f32.mrf.mxu0
    %1152 = vmatprep.mubr.f32.mxu0 0.0
    %v1153 = vand.u32 %v92, 4294901760
    %1154 = vmatmul.mubr.f32.gmra.mxu0 %v1153
    %v1155 = vpop.f32.mrf.mxu0
    %v1156 = vadd.f32 %v1062, %v1155
    %v1157 = vpop.f32.mrf.mxu0
    %1158 = vmatprep.mubr.f32.mxu0 0.0
    %v1159 = vand.u32 %v95, 4294901760
    %1160 = vmatmul.mubr.f32.gmra.mxu0 %v1159
    %v1161 = vpop.f32.mrf.mxu0
    %v1162 = vadd.f32 %v1070, %v1161
    %v1163 = vpop.f32.mrf.mxu0
    %1164 = vdwg.mxu0
    %1165 = vmatprep.subr.mxu0 0.0
    %1166 = vmatpush1.msra.mxu0 0.0
    %1167 = vmatprep.subr.mxu0 0.0
    %1168 = vmatpush1.msra.mxu0 0.0
    %1169 = vmatprep.subr.mxu0 0.0
    %1170 = vmatpush1.msra.mxu0 0.0
    %1171 = vmatprep.subr.mxu0 0.0
    %1172 = vmatpush1.msra.mxu0 0.0
    %1173 = vmatprep.subr.mxu0 0.0
    %1174 = vmatpush1.msra.mxu0 0.0
    %1175 = vmatprep.subr.mxu0 0.0
    %1176 = vmatpush1.msra.mxu0 0.0
    %1177 = vmatprep.subr.mxu0 0.0
    %1178 = vmatpush1.msra.mxu0 0.0
    %1179 = vmatprep.subr.mxu0 0.0
    %1180 = vmatpush1.msra.mxu0 0.0
    %1181 = vmatprep.subr.mxu0 0.0
    %1182 = vmatpush1.msra.mxu0 0.0
    %1183 = vmatprep.subr.mxu0 0.0
    %1184 = vmatpush1.msra.mxu0 0.0
    %1185 = vmatprep.subr.mxu0 0.0
    %1186 = vmatpush1.msra.mxu0 0.0
    %1187 = vmatprep.subr.mxu0 0.0
    %1188 = vmatpush1.msra.mxu0 0.0
    %1189 = vmatprep.subr.mxu0 0.0
    %1190 = vmatpush1.msra.mxu0 0.0
    %1191 = vmatprep.subr.mxu0 0.0
    %1192 = vmatpush1.msra.mxu0 0.0
    %1193 = vmatprep.subr.mxu0 0.0
    %1194 = vmatpush1.msra.mxu0 0.0
    %1195 = vmatprep.subr.mxu0 0.0
    %v1196 = vand.u32 %v678, 4294901760
    %1197 = vmatpush1.msra.mxu0 %v1196
    %1198 = vmatprep.subr.mxu0 0.0
    %1199 = vmatpush2.msra.mxu0 0.0
    %1200 = vmatprep.subr.mxu0 0.0
    %1201 = vmatpush2.msra.mxu0 0.0
    %1202 = vmatprep.subr.mxu0 0.0
    %1203 = vmatpush2.msra.mxu0 0.0
    %1204 = vmatprep.subr.mxu0 0.0
    %1205 = vmatpush2.msra.mxu0 0.0
    %1206 = vmatprep.subr.mxu0 0.0
    %1207 = vmatpush2.msra.mxu0 0.0
    %1208 = vmatprep.subr.mxu0 0.0
    %1209 = vmatpush2.msra.mxu0 0.0
    %1210 = vmatprep.subr.mxu0 0.0
    %1211 = vmatpush2.msra.mxu0 0.0
    %1212 = vmatprep.subr.mxu0 0.0
    %1213 = vmatpush2.msra.mxu0 0.0
    %1214 = vmatprep.subr.mxu0 0.0
    %1215 = vmatpush2.msra.mxu0 0.0
    %1216 = vmatprep.subr.mxu0 0.0
    %1217 = vmatpush2.msra.mxu0 0.0
    %1218 = vmatprep.subr.mxu0 0.0
    %1219 = vmatpush2.msra.mxu0 0.0
    %1220 = vmatprep.subr.mxu0 0.0
    %1221 = vmatpush2.msra.mxu0 0.0
    %1222 = vmatprep.subr.mxu0 0.0
    %1223 = vmatpush2.msra.mxu0 0.0
    %1224 = vmatprep.subr.mxu0 0.0
    %1225 = vmatpush2.msra.mxu0 0.0
    %1226 = vmatprep.subr.mxu0 0.0
    %1227 = vmatpush2.msra.mxu0 0.0
    %1228 = vmatprep.subr.mxu0 0.0
    %1229 = vmatpush2.msra.mxu0 0.0
    %1230 = vmatprep.mubr.f32.mxu0 0.0
    %v1231 = vand.u32 %v86, 4294901760
    %1232 = vmatmul.mubr.f32.gmra.mxu0 %v1231
    %v1233 = vpop.f32.mrf.mxu0
    %v1234 = vadd.f32 %v1144, %v1233
    %v1235 = vpop.f32.mrf.mxu0
    %1236 = vmatprep.mubr.f32.mxu0 0.0
    %v1237 = vand.u32 %v89, 4294901760
    %1238 = vmatmul.mubr.f32.gmra.mxu0 %v1237
    %v1239 = vpop.f32.mrf.mxu0
    %v1240 = vadd.f32 %v1150, %v1239
    %v1241 = vpop.f32.mrf.mxu0
    %1242 = vmatprep.mubr.f32.mxu0 0.0
    %v1243 = vand.u32 %v92, 4294901760
    %1244 = vmatmul.mubr.f32.gmra.mxu0 %v1243
    %v1245 = vpop.f32.mrf.mxu0
    %v1246 = vadd.f32 %v1156, %v1245
    %v1247 = vpop.f32.mrf.mxu0
    %1248 = vmatprep.mubr.f32.mxu0 0.0
    %v1249 = vand.u32 %v95, 4294901760
    %1250 = vmatmul.mubr.f32.gmra.mxu0 %v1249
    %v1251 = vpop.f32.mrf.mxu0
    %v1252 = vadd.f32 %v1162, %v1251
    %v1253 = vpop.f32.mrf.mxu0
    %1254 = vdwg.mxu0
    %vm1259 = vcmask 1046528
    %v1260 = vrot.slane %v1234, 1
    %v1261 = vrot.slane %v1240, 1
    %v1262 = vsel %vm1259, %v1260, %v1261
    %v1263 = vrot.slane %v1246, 1
    %v1264 = vrot.slane %v1252, 1
    %v1265 = vsel %vm1259, %v1263, %v1264
    %v1272 = vsel %vm1259, %v1261, %v1260
    %v1273 = vsel %vm1259, %v1264, %v1263
    %v1274 = vrot.slane %v1240, 7
    %v1275 = vrot.slane %v1252, 7
    %vm1278 = vcmask 1040384
    %v1279 = vrot.slane %v1234, 7
    %v1280 = vsel %vm1278, %v1279, %v1274
    %v1281 = vrot.slane %v1246, 7
    %v1282 = vsel %vm1278, %v1281, %v1275
    %v1287 = vsel %vm1278, %v1274, %v1279
    %v1288 = vsel %vm1278, %v1275, %v1281
    %v1289 = vmin.f32 %v1262, %v1287
    %v1290 = vmin.f32 %v1272, %v1280
    %v1291 = vmin.f32 %v1265, %v1288
    %v1292 = vmin.f32 %v1273, %v1282
    %v1293 = vsub.f32 %v655, %v1289
    %v1294 = vsub.f32 %v661, %v1290
    %v1295 = vsub.f32 %v667, %v1291
    %v1296 = vsub.f32 %v673, %v1292
    %v1297 = vmax.f32 %v1293, 0.0
    %v1298 = vmax.f32 %v1294, 0.0
    %v1299 = vmax.f32 %v1295, 0.0
    %v1300 = vmax.f32 %v1296, 0.0
    %v1301 = vld [vmem:[%s4] sm:$0xff]
    %v1302 = vld [vmem:[%s4 + $0x8] sm:$0xff]
    %v1303 = vld [vmem:[%s4 + $0x10] sm:$0xff]
    %v1304 = vld [vmem:[%s4 + $0x18] sm:$0xff]
    %v1305 = vld [vmem:[%s6] sm:$0x1]
    %v1307 = vlaneseq
    %v1308 = vshrl.u32 %v1307, 7
    %v1309 = vsub.s32 0, %v1308
    %v1310 = vrot.slane %v1305, %v1309
    %vm1312 = vcmask 261120
    %v1314 = vsel %vm1312, %v1297, 0
    %v1317 = vsel %vm1312, %v1298, 0
    %v1320 = vsel %vm1312, %v1299, 0
    %v1323 = vsel %vm1312, %v1300, 0
    %1325 = vmatprep.subr.mxu0 0.0
    %1326 = vmatpush1.msra.mxu0 0.0
    %1327 = vmatprep.subr.mxu0 0.0
    %1328 = vmatpush1.msra.mxu0 0.0
    %1329 = vmatprep.subr.mxu0 0.0
    %1330 = vmatpush1.msra.mxu0 0.0
    %1331 = vmatprep.subr.mxu0 0.0
    %1332 = vmatpush1.msra.mxu0 0.0
    %1333 = vmatprep.subr.mxu0 0.0
    %1334 = vmatpush1.msra.mxu0 0.0
    %1335 = vmatprep.subr.mxu0 0.0
    %1336 = vmatpush1.msra.mxu0 0.0
    %1337 = vmatprep.subr.mxu0 0.0
    %1338 = vmatpush1.msra.mxu0 0.0
    %1339 = vmatprep.subr.mxu0 0.0
    %1340 = vmatpush1.msra.mxu0 0.0
    %1341 = vmatprep.subr.mxu0 0.0
    %1342 = vmatpush1.msra.mxu0 0.0
    %1343 = vmatprep.subr.mxu0 0.0
    %1344 = vmatpush1.msra.mxu0 0.0
    %1345 = vmatprep.subr.mxu0 0.0
    %1346 = vmatpush1.msra.mxu0 0.0
    %1347 = vmatprep.subr.mxu0 0.0
    %1348 = vmatpush1.msra.mxu0 0.0
    %1349 = vmatprep.subr.mxu0 0.0
    %v1350 = vand.u32 %v1304, 4294901760
    %1351 = vmatpush1.msra.mxu0 %v1350
    %1352 = vmatprep.subr.mxu0 0.0
    %v1353 = vand.u32 %v1303, 4294901760
    %1354 = vmatpush1.msra.mxu0 %v1353
    %1355 = vmatprep.subr.mxu0 0.0
    %v1356 = vand.u32 %v1302, 4294901760
    %1357 = vmatpush1.msra.mxu0 %v1356
    %1358 = vmatprep.subr.mxu0 0.0
    %v1359 = vand.u32 %v1301, 4294901760
    %1360 = vmatpush1.msra.mxu0 %v1359
    %1361 = vmatprep.subr.mxu0 0.0
    %1362 = vmatpush2.msra.mxu0 0.0
    %1363 = vmatprep.subr.mxu0 0.0
    %1364 = vmatpush2.msra.mxu0 0.0
    %1365 = vmatprep.subr.mxu0 0.0
    %1366 = vmatpush2.msra.mxu0 0.0
    %1367 = vmatprep.subr.mxu0 0.0
    %1368 = vmatpush2.msra.mxu0 0.0
    %1369 = vmatprep.subr.mxu0 0.0
    %1370 = vmatpush2.msra.mxu0 0.0
    %1371 = vmatprep.subr.mxu0 0.0
    %1372 = vmatpush2.msra.mxu0 0.0
    %1373 = vmatprep.subr.mxu0 0.0
    %1374 = vmatpush2.msra.mxu0 0.0
    %1375 = vmatprep.subr.mxu0 0.0
    %1376 = vmatpush2.msra.mxu0 0.0
    %1377 = vmatprep.subr.mxu0 0.0
    %1378 = vmatpush2.msra.mxu0 0.0
    %1379 = vmatprep.subr.mxu0 0.0
    %1380 = vmatpush2.msra.mxu0 0.0
    %1381 = vmatprep.subr.mxu0 0.0
    %1382 = vmatpush2.msra.mxu0 0.0
    %1383 = vmatprep.subr.mxu0 0.0
    %1384 = vmatpush2.msra.mxu0 0.0
    %1385 = vmatprep.subr.mxu0 0.0
    %1386 = vmatpush2.msra.mxu0 0.0
    %1387 = vmatprep.subr.mxu0 0.0
    %1388 = vmatpush2.msra.mxu0 0.0
    %1389 = vmatprep.subr.mxu0 0.0
    %1390 = vmatpush2.msra.mxu0 0.0
    %1391 = vmatprep.subr.mxu0 0.0
    %1392 = vmatpush2.msra.mxu0 0.0
    %1393 = vmatprep.mubr.f32.mxu0 0.0
    %v1394 = vand.u32 %v1314, 4294901760
    %v1395 = vsub.f32 %v1314, %v1394
    %v1396 = vand.u32 %v1395, 4294901760
    %v1397 = vsub.f32 %v1395, %v1396
    %v1398 = vand.u32 %v1397, 4294901760
    %1399 = vmatmul.mubr.f32.gmra.mxu0 %v1398
    %v1400 = vpop.f32.mrf.mxu0
    %v1401 = vadd.f32 %v1310, %v1400
    %v1402 = vpop.f32.mrf.mxu0
    %1403 = vmatprep.mubr.f32.mxu0 0.0
    %v1404 = vand.u32 %v1317, 4294901760
    %v1405 = vsub.f32 %v1317, %v1404
    %v1406 = vand.u32 %v1405, 4294901760
    %v1407 = vsub.f32 %v1405, %v1406
    %v1408 = vand.u32 %v1407, 4294901760
    %1409 = vmatmul.mubr.f32.gmra.mxu0 %v1408
    %v1410 = vpop.f32.mrf.mxu0
    %v1411 = vadd.f32 %v1310, %v1410
    %v1412 = vpop.f32.mrf.mxu0
    %1413 = vmatprep.mubr.f32.mxu0 0.0
    %v1414 = vand.u32 %v1320, 4294901760
    %v1415 = vsub.f32 %v1320, %v1414
    %v1416 = vand.u32 %v1415, 4294901760
    %v1417 = vsub.f32 %v1415, %v1416
    %v1418 = vand.u32 %v1417, 4294901760
    %1419 = vmatmul.mubr.f32.gmra.mxu0 %v1418
    %v1420 = vpop.f32.mrf.mxu0
    %v1421 = vadd.f32 %v1310, %v1420
    %v1422 = vpop.f32.mrf.mxu0
    %1423 = vmatprep.mubr.f32.mxu0 0.0
    %v1424 = vand.u32 %v1323, 4294901760
    %v1425 = vsub.f32 %v1323, %v1424
    %v1426 = vand.u32 %v1425, 4294901760
    %v1427 = vsub.f32 %v1425, %v1426
    %v1428 = vand.u32 %v1427, 4294901760
    %1429 = vmatmul.mubr.f32.gmra.mxu0 %v1428
    %v1430 = vpop.f32.mrf.mxu0
    %v1431 = vadd.f32 %v1310, %v1430
    %v1432 = vpop.f32.mrf.mxu0
    %1433 = vdwg.mxu0
    %1434 = vmatprep.subr.mxu0 0.0
    %1435 = vmatpush1.msra.mxu0 0.0
    %1436 = vmatprep.subr.mxu0 0.0
    %1437 = vmatpush1.msra.mxu0 0.0
    %1438 = vmatprep.subr.mxu0 0.0
    %1439 = vmatpush1.msra.mxu0 0.0
    %1440 = vmatprep.subr.mxu0 0.0
    %1441 = vmatpush1.msra.mxu0 0.0
    %1442 = vmatprep.subr.mxu0 0.0
    %1443 = vmatpush1.msra.mxu0 0.0
    %1444 = vmatprep.subr.mxu0 0.0
    %1445 = vmatpush1.msra.mxu0 0.0
    %1446 = vmatprep.subr.mxu0 0.0
    %1447 = vmatpush1.msra.mxu0 0.0
    %1448 = vmatprep.subr.mxu0 0.0
    %1449 = vmatpush1.msra.mxu0 0.0
    %1450 = vmatprep.subr.mxu0 0.0
    %1451 = vmatpush1.msra.mxu0 0.0
    %1452 = vmatprep.subr.mxu0 0.0
    %1453 = vmatpush1.msra.mxu0 0.0
    %1454 = vmatprep.subr.mxu0 0.0
    %1455 = vmatpush1.msra.mxu0 0.0
    %1456 = vmatprep.subr.mxu0 0.0
    %1457 = vmatpush1.msra.mxu0 0.0
    %1458 = vmatprep.subr.mxu0 0.0
    %v1459 = vand.u32 %v1304, 4294901760
    %v1460 = vsub.f32 %v1304, %v1459
    %v1461 = vand.u32 %v1460, 4294901760
    %v1462 = vsub.f32 %v1460, %v1461
    %v1463 = vand.u32 %v1462, 4294901760
    %1464 = vmatpush1.msra.mxu0 %v1463
    %1465 = vmatprep.subr.mxu0 0.0
    %v1466 = vand.u32 %v1303, 4294901760
    %v1467 = vsub.f32 %v1303, %v1466
    %v1468 = vand.u32 %v1467, 4294901760
    %v1469 = vsub.f32 %v1467, %v1468
    %v1470 = vand.u32 %v1469, 4294901760
    %1471 = vmatpush1.msra.mxu0 %v1470
    %1472 = vmatprep.subr.mxu0 0.0
    %v1473 = vand.u32 %v1302, 4294901760
    %v1474 = vsub.f32 %v1302, %v1473
    %v1475 = vand.u32 %v1474, 4294901760
    %v1476 = vsub.f32 %v1474, %v1475
    %v1477 = vand.u32 %v1476, 4294901760
    %1478 = vmatpush1.msra.mxu0 %v1477
    %1479 = vmatprep.subr.mxu0 0.0
    %v1480 = vand.u32 %v1301, 4294901760
    %v1481 = vsub.f32 %v1301, %v1480
    %v1482 = vand.u32 %v1481, 4294901760
    %v1483 = vsub.f32 %v1481, %v1482
    %v1484 = vand.u32 %v1483, 4294901760
    %1485 = vmatpush1.msra.mxu0 %v1484
    %1486 = vmatprep.subr.mxu0 0.0
    %1487 = vmatpush2.msra.mxu0 0.0
    %1488 = vmatprep.subr.mxu0 0.0
    %1489 = vmatpush2.msra.mxu0 0.0
    %1490 = vmatprep.subr.mxu0 0.0
    %1491 = vmatpush2.msra.mxu0 0.0
    %1492 = vmatprep.subr.mxu0 0.0
    %1493 = vmatpush2.msra.mxu0 0.0
    %1494 = vmatprep.subr.mxu0 0.0
    %1495 = vmatpush2.msra.mxu0 0.0
    %1496 = vmatprep.subr.mxu0 0.0
    %1497 = vmatpush2.msra.mxu0 0.0
    %1498 = vmatprep.subr.mxu0 0.0
    %1499 = vmatpush2.msra.mxu0 0.0
    %1500 = vmatprep.subr.mxu0 0.0
    %1501 = vmatpush2.msra.mxu0 0.0
    %1502 = vmatprep.subr.mxu0 0.0
    %1503 = vmatpush2.msra.mxu0 0.0
    %1504 = vmatprep.subr.mxu0 0.0
    %1505 = vmatpush2.msra.mxu0 0.0
    %1506 = vmatprep.subr.mxu0 0.0
    %1507 = vmatpush2.msra.mxu0 0.0
    %1508 = vmatprep.subr.mxu0 0.0
    %1509 = vmatpush2.msra.mxu0 0.0
    %1510 = vmatprep.subr.mxu0 0.0
    %1511 = vmatpush2.msra.mxu0 0.0
    %1512 = vmatprep.subr.mxu0 0.0
    %1513 = vmatpush2.msra.mxu0 0.0
    %1514 = vmatprep.subr.mxu0 0.0
    %1515 = vmatpush2.msra.mxu0 0.0
    %1516 = vmatprep.subr.mxu0 0.0
    %1517 = vmatpush2.msra.mxu0 0.0
    %1518 = vmatprep.mubr.f32.mxu0 0.0
    %v1519 = vand.u32 %v1314, 4294901760
    %1520 = vmatmul.mubr.f32.gmra.mxu0 %v1519
    %v1521 = vpop.f32.mrf.mxu0
    %v1522 = vadd.f32 %v1401, %v1521
    %v1523 = vpop.f32.mrf.mxu0
    %1524 = vmatprep.mubr.f32.mxu0 0.0
    %v1525 = vand.u32 %v1317, 4294901760
    %1526 = vmatmul.mubr.f32.gmra.mxu0 %v1525
    %v1527 = vpop.f32.mrf.mxu0
    %v1528 = vadd.f32 %v1411, %v1527
    %v1529 = vpop.f32.mrf.mxu0
    %1530 = vmatprep.mubr.f32.mxu0 0.0
    %v1531 = vand.u32 %v1320, 4294901760
    %1532 = vmatmul.mubr.f32.gmra.mxu0 %v1531
    %v1533 = vpop.f32.mrf.mxu0
    %v1534 = vadd.f32 %v1421, %v1533
    %v1535 = vpop.f32.mrf.mxu0
    %1536 = vmatprep.mubr.f32.mxu0 0.0
    %v1537 = vand.u32 %v1323, 4294901760
    %1538 = vmatmul.mubr.f32.gmra.mxu0 %v1537
    %v1539 = vpop.f32.mrf.mxu0
    %v1540 = vadd.f32 %v1431, %v1539
    %v1541 = vpop.f32.mrf.mxu0
    %1542 = vdwg.mxu0
    %1543 = vmatprep.subr.mxu0 0.0
    %1544 = vmatpush1.msra.mxu0 0.0
    %1545 = vmatprep.subr.mxu0 0.0
    %1546 = vmatpush1.msra.mxu0 0.0
    %1547 = vmatprep.subr.mxu0 0.0
    %1548 = vmatpush1.msra.mxu0 0.0
    %1549 = vmatprep.subr.mxu0 0.0
    %1550 = vmatpush1.msra.mxu0 0.0
    %1551 = vmatprep.subr.mxu0 0.0
    %1552 = vmatpush1.msra.mxu0 0.0
    %1553 = vmatprep.subr.mxu0 0.0
    %1554 = vmatpush1.msra.mxu0 0.0
    %1555 = vmatprep.subr.mxu0 0.0
    %1556 = vmatpush1.msra.mxu0 0.0
    %1557 = vmatprep.subr.mxu0 0.0
    %1558 = vmatpush1.msra.mxu0 0.0
    %1559 = vmatprep.subr.mxu0 0.0
    %1560 = vmatpush1.msra.mxu0 0.0
    %1561 = vmatprep.subr.mxu0 0.0
    %1562 = vmatpush1.msra.mxu0 0.0
    %1563 = vmatprep.subr.mxu0 0.0
    %1564 = vmatpush1.msra.mxu0 0.0
    %1565 = vmatprep.subr.mxu0 0.0
    %1566 = vmatpush1.msra.mxu0 0.0
    %1567 = vmatprep.subr.mxu0 0.0
    %v1568 = vand.u32 %v1304, 4294901760
    %v1569 = vsub.f32 %v1304, %v1568
    %1570 = vmatpush1.msra.mxu0 %v1569
    %1571 = vmatprep.subr.mxu0 0.0
    %v1572 = vand.u32 %v1303, 4294901760
    %v1573 = vsub.f32 %v1303, %v1572
    %1574 = vmatpush1.msra.mxu0 %v1573
    %1575 = vmatprep.subr.mxu0 0.0
    %v1576 = vand.u32 %v1302, 4294901760
    %v1577 = vsub.f32 %v1302, %v1576
    %1578 = vmatpush1.msra.mxu0 %v1577
    %1579 = vmatprep.subr.mxu0 0.0
    %v1580 = vand.u32 %v1301, 4294901760
    %v1581 = vsub.f32 %v1301, %v1580
    %1582 = vmatpush1.msra.mxu0 %v1581
    %1583 = vmatprep.subr.mxu0 0.0
    %1584 = vmatpush2.msra.mxu0 0.0
    %1585 = vmatprep.subr.mxu0 0.0
    %1586 = vmatpush2.msra.mxu0 0.0
    %1587 = vmatprep.subr.mxu0 0.0
    %1588 = vmatpush2.msra.mxu0 0.0
    %1589 = vmatprep.subr.mxu0 0.0
    %1590 = vmatpush2.msra.mxu0 0.0
    %1591 = vmatprep.subr.mxu0 0.0
    %1592 = vmatpush2.msra.mxu0 0.0
    %1593 = vmatprep.subr.mxu0 0.0
    %1594 = vmatpush2.msra.mxu0 0.0
    %1595 = vmatprep.subr.mxu0 0.0
    %1596 = vmatpush2.msra.mxu0 0.0
    %1597 = vmatprep.subr.mxu0 0.0
    %1598 = vmatpush2.msra.mxu0 0.0
    %1599 = vmatprep.subr.mxu0 0.0
    %1600 = vmatpush2.msra.mxu0 0.0
    %1601 = vmatprep.subr.mxu0 0.0
    %1602 = vmatpush2.msra.mxu0 0.0
    %1603 = vmatprep.subr.mxu0 0.0
    %1604 = vmatpush2.msra.mxu0 0.0
    %1605 = vmatprep.subr.mxu0 0.0
    %1606 = vmatpush2.msra.mxu0 0.0
    %1607 = vmatprep.subr.mxu0 0.0
    %1608 = vmatpush2.msra.mxu0 0.0
    %1609 = vmatprep.subr.mxu0 0.0
    %1610 = vmatpush2.msra.mxu0 0.0
    %1611 = vmatprep.subr.mxu0 0.0
    %1612 = vmatpush2.msra.mxu0 0.0
    %1613 = vmatprep.subr.mxu0 0.0
    %1614 = vmatpush2.msra.mxu0 0.0
    %1615 = vmatprep.mubr.f32.mxu0 0.0
    %v1616 = vand.u32 %v1314, 4294901760
    %v1617 = vsub.f32 %v1314, %v1616
    %1618 = vmatmul.mubr.f32.gmra.mxu0 %v1617
    %v1619 = vpop.f32.mrf.mxu0
    %v1620 = vadd.f32 %v1522, %v1619
    %v1621 = vpop.f32.mrf.mxu0
    %1622 = vmatprep.mubr.f32.mxu0 0.0
    %v1623 = vand.u32 %v1317, 4294901760
    %v1624 = vsub.f32 %v1317, %v1623
    %1625 = vmatmul.mubr.f32.gmra.mxu0 %v1624
    %v1626 = vpop.f32.mrf.mxu0
    %v1627 = vadd.f32 %v1528, %v1626
    %v1628 = vpop.f32.mrf.mxu0
    %1629 = vmatprep.mubr.f32.mxu0 0.0
    %v1630 = vand.u32 %v1320, 4294901760
    %v1631 = vsub.f32 %v1320, %v1630
    %1632 = vmatmul.mubr.f32.gmra.mxu0 %v1631
    %v1633 = vpop.f32.mrf.mxu0
    %v1634 = vadd.f32 %v1534, %v1633
    %v1635 = vpop.f32.mrf.mxu0
    %1636 = vmatprep.mubr.f32.mxu0 0.0
    %v1637 = vand.u32 %v1323, 4294901760
    %v1638 = vsub.f32 %v1323, %v1637
    %1639 = vmatmul.mubr.f32.gmra.mxu0 %v1638
    %v1640 = vpop.f32.mrf.mxu0
    %v1641 = vadd.f32 %v1540, %v1640
    %v1642 = vpop.f32.mrf.mxu0
    %1643 = vdwg.mxu0
    %1644 = vmatprep.subr.mxu0 0.0
    %1645 = vmatpush1.msra.mxu0 0.0
    %1646 = vmatprep.subr.mxu0 0.0
    %1647 = vmatpush1.msra.mxu0 0.0
    %1648 = vmatprep.subr.mxu0 0.0
    %1649 = vmatpush1.msra.mxu0 0.0
    %1650 = vmatprep.subr.mxu0 0.0
    %1651 = vmatpush1.msra.mxu0 0.0
    %1652 = vmatprep.subr.mxu0 0.0
    %1653 = vmatpush1.msra.mxu0 0.0
    %1654 = vmatprep.subr.mxu0 0.0
    %1655 = vmatpush1.msra.mxu0 0.0
    %1656 = vmatprep.subr.mxu0 0.0
    %1657 = vmatpush1.msra.mxu0 0.0
    %1658 = vmatprep.subr.mxu0 0.0
    %1659 = vmatpush1.msra.mxu0 0.0
    %1660 = vmatprep.subr.mxu0 0.0
    %1661 = vmatpush1.msra.mxu0 0.0
    %1662 = vmatprep.subr.mxu0 0.0
    %1663 = vmatpush1.msra.mxu0 0.0
    %1664 = vmatprep.subr.mxu0 0.0
    %1665 = vmatpush1.msra.mxu0 0.0
    %1666 = vmatprep.subr.mxu0 0.0
    %1667 = vmatpush1.msra.mxu0 0.0
    %1668 = vmatprep.subr.mxu0 0.0
    %v1669 = vand.u32 %v1304, 4294901760
    %1670 = vmatpush1.msra.mxu0 %v1669
    %1671 = vmatprep.subr.mxu0 0.0
    %v1672 = vand.u32 %v1303, 4294901760
    %1673 = vmatpush1.msra.mxu0 %v1672
    %1674 = vmatprep.subr.mxu0 0.0
    %v1675 = vand.u32 %v1302, 4294901760
    %1676 = vmatpush1.msra.mxu0 %v1675
    %1677 = vmatprep.subr.mxu0 0.0
    %v1678 = vand.u32 %v1301, 4294901760
    %1679 = vmatpush1.msra.mxu0 %v1678
    %1680 = vmatprep.subr.mxu0 0.0
    %1681 = vmatpush2.msra.mxu0 0.0
    %1682 = vmatprep.subr.mxu0 0.0
    %1683 = vmatpush2.msra.mxu0 0.0
    %1684 = vmatprep.subr.mxu0 0.0
    %1685 = vmatpush2.msra.mxu0 0.0
    %1686 = vmatprep.subr.mxu0 0.0
    %1687 = vmatpush2.msra.mxu0 0.0
    %1688 = vmatprep.subr.mxu0 0.0
    %1689 = vmatpush2.msra.mxu0 0.0
    %1690 = vmatprep.subr.mxu0 0.0
    %1691 = vmatpush2.msra.mxu0 0.0
    %1692 = vmatprep.subr.mxu0 0.0
    %1693 = vmatpush2.msra.mxu0 0.0
    %1694 = vmatprep.subr.mxu0 0.0
    %1695 = vmatpush2.msra.mxu0 0.0
    %1696 = vmatprep.subr.mxu0 0.0
    %1697 = vmatpush2.msra.mxu0 0.0
    %1698 = vmatprep.subr.mxu0 0.0
    %1699 = vmatpush2.msra.mxu0 0.0
    %1700 = vmatprep.subr.mxu0 0.0
    %1701 = vmatpush2.msra.mxu0 0.0
    %1702 = vmatprep.subr.mxu0 0.0
    %1703 = vmatpush2.msra.mxu0 0.0
    %1704 = vmatprep.subr.mxu0 0.0
    %1705 = vmatpush2.msra.mxu0 0.0
    %1706 = vmatprep.subr.mxu0 0.0
    %1707 = vmatpush2.msra.mxu0 0.0
    %1708 = vmatprep.subr.mxu0 0.0
    %1709 = vmatpush2.msra.mxu0 0.0
    %1710 = vmatprep.subr.mxu0 0.0
    %1711 = vmatpush2.msra.mxu0 0.0
    %1712 = vmatprep.mubr.f32.mxu0 0.0
    %v1713 = vand.u32 %v1314, 4294901760
    %v1714 = vsub.f32 %v1314, %v1713
    %v1715 = vand.u32 %v1714, 4294901760
    %1716 = vmatmul.mubr.f32.gmra.mxu0 %v1715
    %v1717 = vpop.f32.mrf.mxu0
    %v1718 = vadd.f32 %v1620, %v1717
    %v1719 = vpop.f32.mrf.mxu0
    %1720 = vmatprep.mubr.f32.mxu0 0.0
    %v1721 = vand.u32 %v1317, 4294901760
    %v1722 = vsub.f32 %v1317, %v1721
    %v1723 = vand.u32 %v1722, 4294901760
    %1724 = vmatmul.mubr.f32.gmra.mxu0 %v1723
    %v1725 = vpop.f32.mrf.mxu0
    %v1726 = vadd.f32 %v1627, %v1725
    %v1727 = vpop.f32.mrf.mxu0
    %1728 = vmatprep.mubr.f32.mxu0 0.0
    %v1729 = vand.u32 %v1320, 4294901760
    %v1730 = vsub.f32 %v1320, %v1729
    %v1731 = vand.u32 %v1730, 4294901760
    %1732 = vmatmul.mubr.f32.gmra.mxu0 %v1731
    %v1733 = vpop.f32.mrf.mxu0
    %v1734 = vadd.f32 %v1634, %v1733
    %v1735 = vpop.f32.mrf.mxu0
    %1736 = vmatprep.mubr.f32.mxu0 0.0
    %v1737 = vand.u32 %v1323, 4294901760
    %v1738 = vsub.f32 %v1323, %v1737
    %v1739 = vand.u32 %v1738, 4294901760
    %1740 = vmatmul.mubr.f32.gmra.mxu0 %v1739
    %v1741 = vpop.f32.mrf.mxu0
    %v1742 = vadd.f32 %v1641, %v1741
    %v1743 = vpop.f32.mrf.mxu0
    %1744 = vdwg.mxu0
    %1745 = vmatprep.subr.mxu0 0.0
    %1746 = vmatpush1.msra.mxu0 0.0
    %1747 = vmatprep.subr.mxu0 0.0
    %1748 = vmatpush1.msra.mxu0 0.0
    %1749 = vmatprep.subr.mxu0 0.0
    %1750 = vmatpush1.msra.mxu0 0.0
    %1751 = vmatprep.subr.mxu0 0.0
    %1752 = vmatpush1.msra.mxu0 0.0
    %1753 = vmatprep.subr.mxu0 0.0
    %1754 = vmatpush1.msra.mxu0 0.0
    %1755 = vmatprep.subr.mxu0 0.0
    %1756 = vmatpush1.msra.mxu0 0.0
    %1757 = vmatprep.subr.mxu0 0.0
    %1758 = vmatpush1.msra.mxu0 0.0
    %1759 = vmatprep.subr.mxu0 0.0
    %1760 = vmatpush1.msra.mxu0 0.0
    %1761 = vmatprep.subr.mxu0 0.0
    %1762 = vmatpush1.msra.mxu0 0.0
    %1763 = vmatprep.subr.mxu0 0.0
    %1764 = vmatpush1.msra.mxu0 0.0
    %1765 = vmatprep.subr.mxu0 0.0
    %1766 = vmatpush1.msra.mxu0 0.0
    %1767 = vmatprep.subr.mxu0 0.0
    %1768 = vmatpush1.msra.mxu0 0.0
    %1769 = vmatprep.subr.mxu0 0.0
    %v1770 = vand.u32 %v1304, 4294901760
    %v1771 = vsub.f32 %v1304, %v1770
    %v1772 = vand.u32 %v1771, 4294901760
    %1773 = vmatpush1.msra.mxu0 %v1772
    %1774 = vmatprep.subr.mxu0 0.0
    %v1775 = vand.u32 %v1303, 4294901760
    %v1776 = vsub.f32 %v1303, %v1775
    %v1777 = vand.u32 %v1776, 4294901760
    %1778 = vmatpush1.msra.mxu0 %v1777
    %1779 = vmatprep.subr.mxu0 0.0
    %v1780 = vand.u32 %v1302, 4294901760
    %v1781 = vsub.f32 %v1302, %v1780
    %v1782 = vand.u32 %v1781, 4294901760
    %1783 = vmatpush1.msra.mxu0 %v1782
    %1784 = vmatprep.subr.mxu0 0.0
    %v1785 = vand.u32 %v1301, 4294901760
    %v1786 = vsub.f32 %v1301, %v1785
    %v1787 = vand.u32 %v1786, 4294901760
    %1788 = vmatpush1.msra.mxu0 %v1787
    %1789 = vmatprep.subr.mxu0 0.0
    %1790 = vmatpush2.msra.mxu0 0.0
    %1791 = vmatprep.subr.mxu0 0.0
    %1792 = vmatpush2.msra.mxu0 0.0
    %1793 = vmatprep.subr.mxu0 0.0
    %1794 = vmatpush2.msra.mxu0 0.0
    %1795 = vmatprep.subr.mxu0 0.0
    %1796 = vmatpush2.msra.mxu0 0.0
    %1797 = vmatprep.subr.mxu0 0.0
    %1798 = vmatpush2.msra.mxu0 0.0
    %1799 = vmatprep.subr.mxu0 0.0
    %1800 = vmatpush2.msra.mxu0 0.0
    %1801 = vmatprep.subr.mxu0 0.0
    %1802 = vmatpush2.msra.mxu0 0.0
    %1803 = vmatprep.subr.mxu0 0.0
    %1804 = vmatpush2.msra.mxu0 0.0
    %1805 = vmatprep.subr.mxu0 0.0
    %1806 = vmatpush2.msra.mxu0 0.0
    %1807 = vmatprep.subr.mxu0 0.0
    %1808 = vmatpush2.msra.mxu0 0.0
    %1809 = vmatprep.subr.mxu0 0.0
    %1810 = vmatpush2.msra.mxu0 0.0
    %1811 = vmatprep.subr.mxu0 0.0
    %1812 = vmatpush2.msra.mxu0 0.0
    %1813 = vmatprep.subr.mxu0 0.0
    %1814 = vmatpush2.msra.mxu0 0.0
    %1815 = vmatprep.subr.mxu0 0.0
    %1816 = vmatpush2.msra.mxu0 0.0
    %1817 = vmatprep.subr.mxu0 0.0
    %1818 = vmatpush2.msra.mxu0 0.0
    %1819 = vmatprep.subr.mxu0 0.0
    %1820 = vmatpush2.msra.mxu0 0.0
    %1821 = vmatprep.mubr.f32.mxu0 0.0
    %v1822 = vand.u32 %v1314, 4294901760
    %1823 = vmatmul.mubr.f32.gmra.mxu0 %v1822
    %v1824 = vpop.f32.mrf.mxu0
    %v1825 = vadd.f32 %v1718, %v1824
    %v1826 = vpop.f32.mrf.mxu0
    %1827 = vmatprep.mubr.f32.mxu0 0.0
    %v1828 = vand.u32 %v1317, 4294901760
    %1829 = vmatmul.mubr.f32.gmra.mxu0 %v1828
    %v1830 = vpop.f32.mrf.mxu0
    %v1831 = vadd.f32 %v1726, %v1830
    %v1832 = vpop.f32.mrf.mxu0
    %1833 = vmatprep.mubr.f32.mxu0 0.0
    %v1834 = vand.u32 %v1320, 4294901760
    %1835 = vmatmul.mubr.f32.gmra.mxu0 %v1834
    %v1836 = vpop.f32.mrf.mxu0
    %v1837 = vadd.f32 %v1734, %v1836
    %v1838 = vpop.f32.mrf.mxu0
    %1839 = vmatprep.mubr.f32.mxu0 0.0
    %v1840 = vand.u32 %v1323, 4294901760
    %1841 = vmatmul.mubr.f32.gmra.mxu0 %v1840
    %v1842 = vpop.f32.mrf.mxu0
    %v1843 = vadd.f32 %v1742, %v1842
    %v1844 = vpop.f32.mrf.mxu0
    %1845 = vdwg.mxu0
    %1846 = vmatprep.subr.mxu0 0.0
    %1847 = vmatpush1.msra.mxu0 0.0
    %1848 = vmatprep.subr.mxu0 0.0
    %1849 = vmatpush1.msra.mxu0 0.0
    %1850 = vmatprep.subr.mxu0 0.0
    %1851 = vmatpush1.msra.mxu0 0.0
    %1852 = vmatprep.subr.mxu0 0.0
    %1853 = vmatpush1.msra.mxu0 0.0
    %1854 = vmatprep.subr.mxu0 0.0
    %1855 = vmatpush1.msra.mxu0 0.0
    %1856 = vmatprep.subr.mxu0 0.0
    %1857 = vmatpush1.msra.mxu0 0.0
    %1858 = vmatprep.subr.mxu0 0.0
    %1859 = vmatpush1.msra.mxu0 0.0
    %1860 = vmatprep.subr.mxu0 0.0
    %1861 = vmatpush1.msra.mxu0 0.0
    %1862 = vmatprep.subr.mxu0 0.0
    %1863 = vmatpush1.msra.mxu0 0.0
    %1864 = vmatprep.subr.mxu0 0.0
    %1865 = vmatpush1.msra.mxu0 0.0
    %1866 = vmatprep.subr.mxu0 0.0
    %1867 = vmatpush1.msra.mxu0 0.0
    %1868 = vmatprep.subr.mxu0 0.0
    %1869 = vmatpush1.msra.mxu0 0.0
    %1870 = vmatprep.subr.mxu0 0.0
    %v1871 = vand.u32 %v1304, 4294901760
    %1872 = vmatpush1.msra.mxu0 %v1871
    %1873 = vmatprep.subr.mxu0 0.0
    %v1874 = vand.u32 %v1303, 4294901760
    %1875 = vmatpush1.msra.mxu0 %v1874
    %1876 = vmatprep.subr.mxu0 0.0
    %v1877 = vand.u32 %v1302, 4294901760
    %1878 = vmatpush1.msra.mxu0 %v1877
    %1879 = vmatprep.subr.mxu0 0.0
    %v1880 = vand.u32 %v1301, 4294901760
    %1881 = vmatpush1.msra.mxu0 %v1880
    %1882 = vmatprep.subr.mxu0 0.0
    %1883 = vmatpush2.msra.mxu0 0.0
    %1884 = vmatprep.subr.mxu0 0.0
    %1885 = vmatpush2.msra.mxu0 0.0
    %1886 = vmatprep.subr.mxu0 0.0
    %1887 = vmatpush2.msra.mxu0 0.0
    %1888 = vmatprep.subr.mxu0 0.0
    %1889 = vmatpush2.msra.mxu0 0.0
    %1890 = vmatprep.subr.mxu0 0.0
    %1891 = vmatpush2.msra.mxu0 0.0
    %1892 = vmatprep.subr.mxu0 0.0
    %1893 = vmatpush2.msra.mxu0 0.0
    %1894 = vmatprep.subr.mxu0 0.0
    %1895 = vmatpush2.msra.mxu0 0.0
    %1896 = vmatprep.subr.mxu0 0.0
    %1897 = vmatpush2.msra.mxu0 0.0
    %1898 = vmatprep.subr.mxu0 0.0
    %1899 = vmatpush2.msra.mxu0 0.0
    %1900 = vmatprep.subr.mxu0 0.0
    %1901 = vmatpush2.msra.mxu0 0.0
    %1902 = vmatprep.subr.mxu0 0.0
    %1903 = vmatpush2.msra.mxu0 0.0
    %1904 = vmatprep.subr.mxu0 0.0
    %1905 = vmatpush2.msra.mxu0 0.0
    %1906 = vmatprep.subr.mxu0 0.0
    %1907 = vmatpush2.msra.mxu0 0.0
    %1908 = vmatprep.subr.mxu0 0.0
    %1909 = vmatpush2.msra.mxu0 0.0
    %1910 = vmatprep.subr.mxu0 0.0
    %1911 = vmatpush2.msra.mxu0 0.0
    %1912 = vmatprep.subr.mxu0 0.0
    %1913 = vmatpush2.msra.mxu0 0.0
    %1914 = vmatprep.mubr.f32.mxu0 0.0
    %v1915 = vand.u32 %v1314, 4294901760
    %1916 = vmatmul.mubr.f32.gmra.mxu0 %v1915
    %v1917 = vpop.f32.mrf.mxu0
    %v1918 = vadd.f32 %v1825, %v1917
    %v1919 = vpop.f32.mrf.mxu0
    %1920 = vmatprep.mubr.f32.mxu0 0.0
    %v1921 = vand.u32 %v1317, 4294901760
    %1922 = vmatmul.mubr.f32.gmra.mxu0 %v1921
    %v1923 = vpop.f32.mrf.mxu0
    %v1924 = vadd.f32 %v1831, %v1923
    %v1925 = vpop.f32.mrf.mxu0
    %1926 = vmatprep.mubr.f32.mxu0 0.0
    %v1927 = vand.u32 %v1320, 4294901760
    %1928 = vmatmul.mubr.f32.gmra.mxu0 %v1927
    %v1929 = vpop.f32.mrf.mxu0
    %v1930 = vadd.f32 %v1837, %v1929
    %v1931 = vpop.f32.mrf.mxu0
    %1932 = vmatprep.mubr.f32.mxu0 0.0
    %v1933 = vand.u32 %v1323, 4294901760
    %1934 = vmatmul.mubr.f32.gmra.mxu0 %v1933
    %v1935 = vpop.f32.mrf.mxu0
    %v1936 = vadd.f32 %v1843, %v1935
    %v1937 = vpop.f32.mrf.mxu0
    %1938 = vdwg.mxu0
    %v1939 = vld [vmem:[%s5] sm:$0xff]
    %v1940 = vld [vmem:[%s5 + $0x8] sm:$0xff]
    %v1941 = vld [vmem:[%s5 + $0x10] sm:$0xff]
    %v1942 = vld [vmem:[%s5 + $0x18] sm:$0xff]
    %1943 = vmatprep.subr.mxu0 0.0
    %1944 = vmatpush1.msra.mxu0 0.0
    %1945 = vmatprep.subr.mxu0 0.0
    %1946 = vmatpush1.msra.mxu0 0.0
    %1947 = vmatprep.subr.mxu0 0.0
    %1948 = vmatpush1.msra.mxu0 0.0
    %1949 = vmatprep.subr.mxu0 0.0
    %1950 = vmatpush1.msra.mxu0 0.0
    %1951 = vmatprep.subr.mxu0 0.0
    %1952 = vmatpush1.msra.mxu0 0.0
    %1953 = vmatprep.subr.mxu0 0.0
    %1954 = vmatpush1.msra.mxu0 0.0
    %1955 = vmatprep.subr.mxu0 0.0
    %1956 = vmatpush1.msra.mxu0 0.0
    %1957 = vmatprep.subr.mxu0 0.0
    %1958 = vmatpush1.msra.mxu0 0.0
    %1959 = vmatprep.subr.mxu0 0.0
    %1960 = vmatpush1.msra.mxu0 0.0
    %1961 = vmatprep.subr.mxu0 0.0
    %1962 = vmatpush1.msra.mxu0 0.0
    %1963 = vmatprep.subr.mxu0 0.0
    %1964 = vmatpush1.msra.mxu0 0.0
    %1965 = vmatprep.subr.mxu0 0.0
    %1966 = vmatpush1.msra.mxu0 0.0
    %1967 = vmatprep.subr.mxu0 0.0
    %v1968 = vand.u32 %v1942, 4294901760
    %1969 = vmatpush1.msra.mxu0 %v1968
    %1970 = vmatprep.subr.mxu0 0.0
    %v1971 = vand.u32 %v1941, 4294901760
    %1972 = vmatpush1.msra.mxu0 %v1971
    %1973 = vmatprep.subr.mxu0 0.0
    %v1974 = vand.u32 %v1940, 4294901760
    %1975 = vmatpush1.msra.mxu0 %v1974
    %1976 = vmatprep.subr.mxu0 0.0
    %v1977 = vand.u32 %v1939, 4294901760
    %1978 = vmatpush1.msra.mxu0 %v1977
    %1979 = vmatprep.subr.mxu0 0.0
    %1980 = vmatpush2.msra.mxu0 0.0
    %1981 = vmatprep.subr.mxu0 0.0
    %1982 = vmatpush2.msra.mxu0 0.0
    %1983 = vmatprep.subr.mxu0 0.0
    %1984 = vmatpush2.msra.mxu0 0.0
    %1985 = vmatprep.subr.mxu0 0.0
    %1986 = vmatpush2.msra.mxu0 0.0
    %1987 = vmatprep.subr.mxu0 0.0
    %1988 = vmatpush2.msra.mxu0 0.0
    %1989 = vmatprep.subr.mxu0 0.0
    %1990 = vmatpush2.msra.mxu0 0.0
    %1991 = vmatprep.subr.mxu0 0.0
    %1992 = vmatpush2.msra.mxu0 0.0
    %1993 = vmatprep.subr.mxu0 0.0
    %1994 = vmatpush2.msra.mxu0 0.0
    %1995 = vmatprep.subr.mxu0 0.0
    %1996 = vmatpush2.msra.mxu0 0.0
    %1997 = vmatprep.subr.mxu0 0.0
    %1998 = vmatpush2.msra.mxu0 0.0
    %1999 = vmatprep.subr.mxu0 0.0
    %2000 = vmatpush2.msra.mxu0 0.0
    %2001 = vmatprep.subr.mxu0 0.0
    %2002 = vmatpush2.msra.mxu0 0.0
    %2003 = vmatprep.subr.mxu0 0.0
    %2004 = vmatpush2.msra.mxu0 0.0
    %2005 = vmatprep.subr.mxu0 0.0
    %2006 = vmatpush2.msra.mxu0 0.0
    %2007 = vmatprep.subr.mxu0 0.0
    %2008 = vmatpush2.msra.mxu0 0.0
    %2009 = vmatprep.subr.mxu0 0.0
    %2010 = vmatpush2.msra.mxu0 0.0
    %2011 = vmatprep.mubr.f32.mxu0 0.0
    %v2012 = vand.u32 %v1314, 4294901760
    %v2013 = vsub.f32 %v1314, %v2012
    %v2014 = vand.u32 %v2013, 4294901760
    %v2015 = vsub.f32 %v2013, %v2014
    %v2016 = vand.u32 %v2015, 4294901760
    %2017 = vmatmul.mubr.f32.gmra.mxu0 %v2016
    %v2018 = vpop.f32.mrf.mxu0
    %v2019 = vadd.f32 0.0, %v2018
    %v2020 = vpop.f32.mrf.mxu0
    %2021 = vmatprep.mubr.f32.mxu0 0.0
    %v2022 = vand.u32 %v1317, 4294901760
    %v2023 = vsub.f32 %v1317, %v2022
    %v2024 = vand.u32 %v2023, 4294901760
    %v2025 = vsub.f32 %v2023, %v2024
    %v2026 = vand.u32 %v2025, 4294901760
    %2027 = vmatmul.mubr.f32.gmra.mxu0 %v2026
    %v2028 = vpop.f32.mrf.mxu0
    %v2029 = vadd.f32 0.0, %v2028
    %v2030 = vpop.f32.mrf.mxu0
    %2031 = vmatprep.mubr.f32.mxu0 0.0
    %v2032 = vand.u32 %v1320, 4294901760
    %v2033 = vsub.f32 %v1320, %v2032
    %v2034 = vand.u32 %v2033, 4294901760
    %v2035 = vsub.f32 %v2033, %v2034
    %v2036 = vand.u32 %v2035, 4294901760
    %2037 = vmatmul.mubr.f32.gmra.mxu0 %v2036
    %v2038 = vpop.f32.mrf.mxu0
    %v2039 = vadd.f32 0.0, %v2038
    %v2040 = vpop.f32.mrf.mxu0
    %2041 = vmatprep.mubr.f32.mxu0 0.0
    %v2042 = vand.u32 %v1323, 4294901760
    %v2043 = vsub.f32 %v1323, %v2042
    %v2044 = vand.u32 %v2043, 4294901760
    %v2045 = vsub.f32 %v2043, %v2044
    %v2046 = vand.u32 %v2045, 4294901760
    %2047 = vmatmul.mubr.f32.gmra.mxu0 %v2046
    %v2048 = vpop.f32.mrf.mxu0
    %v2049 = vadd.f32 0.0, %v2048
    %v2050 = vpop.f32.mrf.mxu0
    %2051 = vdwg.mxu0
    %2052 = vmatprep.subr.mxu0 0.0
    %2053 = vmatpush1.msra.mxu0 0.0
    %2054 = vmatprep.subr.mxu0 0.0
    %2055 = vmatpush1.msra.mxu0 0.0
    %2056 = vmatprep.subr.mxu0 0.0
    %2057 = vmatpush1.msra.mxu0 0.0
    %2058 = vmatprep.subr.mxu0 0.0
    %2059 = vmatpush1.msra.mxu0 0.0
    %2060 = vmatprep.subr.mxu0 0.0
    %2061 = vmatpush1.msra.mxu0 0.0
    %2062 = vmatprep.subr.mxu0 0.0
    %2063 = vmatpush1.msra.mxu0 0.0
    %2064 = vmatprep.subr.mxu0 0.0
    %2065 = vmatpush1.msra.mxu0 0.0
    %2066 = vmatprep.subr.mxu0 0.0
    %2067 = vmatpush1.msra.mxu0 0.0
    %2068 = vmatprep.subr.mxu0 0.0
    %2069 = vmatpush1.msra.mxu0 0.0
    %2070 = vmatprep.subr.mxu0 0.0
    %2071 = vmatpush1.msra.mxu0 0.0
    %2072 = vmatprep.subr.mxu0 0.0
    %2073 = vmatpush1.msra.mxu0 0.0
    %2074 = vmatprep.subr.mxu0 0.0
    %2075 = vmatpush1.msra.mxu0 0.0
    %2076 = vmatprep.subr.mxu0 0.0
    %v2077 = vand.u32 %v1942, 4294901760
    %v2078 = vsub.f32 %v1942, %v2077
    %v2079 = vand.u32 %v2078, 4294901760
    %v2080 = vsub.f32 %v2078, %v2079
    %v2081 = vand.u32 %v2080, 4294901760
    %2082 = vmatpush1.msra.mxu0 %v2081
    %2083 = vmatprep.subr.mxu0 0.0
    %v2084 = vand.u32 %v1941, 4294901760
    %v2085 = vsub.f32 %v1941, %v2084
    %v2086 = vand.u32 %v2085, 4294901760
    %v2087 = vsub.f32 %v2085, %v2086
    %v2088 = vand.u32 %v2087, 4294901760
    %2089 = vmatpush1.msra.mxu0 %v2088
    %2090 = vmatprep.subr.mxu0 0.0
    %v2091 = vand.u32 %v1940, 4294901760
    %v2092 = vsub.f32 %v1940, %v2091
    %v2093 = vand.u32 %v2092, 4294901760
    %v2094 = vsub.f32 %v2092, %v2093
    %v2095 = vand.u32 %v2094, 4294901760
    %2096 = vmatpush1.msra.mxu0 %v2095
    %2097 = vmatprep.subr.mxu0 0.0
    %v2098 = vand.u32 %v1939, 4294901760
    %v2099 = vsub.f32 %v1939, %v2098
    %v2100 = vand.u32 %v2099, 4294901760
    %v2101 = vsub.f32 %v2099, %v2100
    %v2102 = vand.u32 %v2101, 4294901760
    %2103 = vmatpush1.msra.mxu0 %v2102
    %2104 = vmatprep.subr.mxu0 0.0
    %2105 = vmatpush2.msra.mxu0 0.0
    %2106 = vmatprep.subr.mxu0 0.0
    %2107 = vmatpush2.msra.mxu0 0.0
    %2108 = vmatprep.subr.mxu0 0.0
    %2109 = vmatpush2.msra.mxu0 0.0
    %2110 = vmatprep.subr.mxu0 0.0
    %2111 = vmatpush2.msra.mxu0 0.0
    %2112 = vmatprep.subr.mxu0 0.0
    %2113 = vmatpush2.msra.mxu0 0.0
    %2114 = vmatprep.subr.mxu0 0.0
    %2115 = vmatpush2.msra.mxu0 0.0
    %2116 = vmatprep.subr.mxu0 0.0
    %2117 = vmatpush2.msra.mxu0 0.0
    %2118 = vmatprep.subr.mxu0 0.0
    %2119 = vmatpush2.msra.mxu0 0.0
    %2120 = vmatprep.subr.mxu0 0.0
    %2121 = vmatpush2.msra.mxu0 0.0
    %2122 = vmatprep.subr.mxu0 0.0
    %2123 = vmatpush2.msra.mxu0 0.0
    %2124 = vmatprep.subr.mxu0 0.0
    %2125 = vmatpush2.msra.mxu0 0.0
    %2126 = vmatprep.subr.mxu0 0.0
    %2127 = vmatpush2.msra.mxu0 0.0
    %2128 = vmatprep.subr.mxu0 0.0
    %2129 = vmatpush2.msra.mxu0 0.0
    %2130 = vmatprep.subr.mxu0 0.0
    %2131 = vmatpush2.msra.mxu0 0.0
    %2132 = vmatprep.subr.mxu0 0.0
    %2133 = vmatpush2.msra.mxu0 0.0
    %2134 = vmatprep.subr.mxu0 0.0
    %2135 = vmatpush2.msra.mxu0 0.0
    %2136 = vmatprep.mubr.f32.mxu0 0.0
    %v2137 = vand.u32 %v1314, 4294901760
    %2138 = vmatmul.mubr.f32.gmra.mxu0 %v2137
    %v2139 = vpop.f32.mrf.mxu0
    %v2140 = vadd.f32 %v2019, %v2139
    %v2141 = vpop.f32.mrf.mxu0
    %2142 = vmatprep.mubr.f32.mxu0 0.0
    %v2143 = vand.u32 %v1317, 4294901760
    %2144 = vmatmul.mubr.f32.gmra.mxu0 %v2143
    %v2145 = vpop.f32.mrf.mxu0
    %v2146 = vadd.f32 %v2029, %v2145
    %v2147 = vpop.f32.mrf.mxu0
    %2148 = vmatprep.mubr.f32.mxu0 0.0
    %v2149 = vand.u32 %v1320, 4294901760
    %2150 = vmatmul.mubr.f32.gmra.mxu0 %v2149
    %v2151 = vpop.f32.mrf.mxu0
    %v2152 = vadd.f32 %v2039, %v2151
    %v2153 = vpop.f32.mrf.mxu0
    %2154 = vmatprep.mubr.f32.mxu0 0.0
    %v2155 = vand.u32 %v1323, 4294901760
    %2156 = vmatmul.mubr.f32.gmra.mxu0 %v2155
    %v2157 = vpop.f32.mrf.mxu0
    %v2158 = vadd.f32 %v2049, %v2157
    %v2159 = vpop.f32.mrf.mxu0
    %2160 = vdwg.mxu0
    %2161 = vmatprep.subr.mxu0 0.0
    %2162 = vmatpush1.msra.mxu0 0.0
    %2163 = vmatprep.subr.mxu0 0.0
    %2164 = vmatpush1.msra.mxu0 0.0
    %2165 = vmatprep.subr.mxu0 0.0
    %2166 = vmatpush1.msra.mxu0 0.0
    %2167 = vmatprep.subr.mxu0 0.0
    %2168 = vmatpush1.msra.mxu0 0.0
    %2169 = vmatprep.subr.mxu0 0.0
    %2170 = vmatpush1.msra.mxu0 0.0
    %2171 = vmatprep.subr.mxu0 0.0
    %2172 = vmatpush1.msra.mxu0 0.0
    %2173 = vmatprep.subr.mxu0 0.0
    %2174 = vmatpush1.msra.mxu0 0.0
    %2175 = vmatprep.subr.mxu0 0.0
    %2176 = vmatpush1.msra.mxu0 0.0
    %2177 = vmatprep.subr.mxu0 0.0
    %2178 = vmatpush1.msra.mxu0 0.0
    %2179 = vmatprep.subr.mxu0 0.0
    %2180 = vmatpush1.msra.mxu0 0.0
    %2181 = vmatprep.subr.mxu0 0.0
    %2182 = vmatpush1.msra.mxu0 0.0
    %2183 = vmatprep.subr.mxu0 0.0
    %2184 = vmatpush1.msra.mxu0 0.0
    %2185 = vmatprep.subr.mxu0 0.0
    %v2186 = vand.u32 %v1942, 4294901760
    %v2187 = vsub.f32 %v1942, %v2186
    %2188 = vmatpush1.msra.mxu0 %v2187
    %2189 = vmatprep.subr.mxu0 0.0
    %v2190 = vand.u32 %v1941, 4294901760
    %v2191 = vsub.f32 %v1941, %v2190
    %2192 = vmatpush1.msra.mxu0 %v2191
    %2193 = vmatprep.subr.mxu0 0.0
    %v2194 = vand.u32 %v1940, 4294901760
    %v2195 = vsub.f32 %v1940, %v2194
    %2196 = vmatpush1.msra.mxu0 %v2195
    %2197 = vmatprep.subr.mxu0 0.0
    %v2198 = vand.u32 %v1939, 4294901760
    %v2199 = vsub.f32 %v1939, %v2198
    %2200 = vmatpush1.msra.mxu0 %v2199
    %2201 = vmatprep.subr.mxu0 0.0
    %2202 = vmatpush2.msra.mxu0 0.0
    %2203 = vmatprep.subr.mxu0 0.0
    %2204 = vmatpush2.msra.mxu0 0.0
    %2205 = vmatprep.subr.mxu0 0.0
    %2206 = vmatpush2.msra.mxu0 0.0
    %2207 = vmatprep.subr.mxu0 0.0
    %2208 = vmatpush2.msra.mxu0 0.0
    %2209 = vmatprep.subr.mxu0 0.0
    %2210 = vmatpush2.msra.mxu0 0.0
    %2211 = vmatprep.subr.mxu0 0.0
    %2212 = vmatpush2.msra.mxu0 0.0
    %2213 = vmatprep.subr.mxu0 0.0
    %2214 = vmatpush2.msra.mxu0 0.0
    %2215 = vmatprep.subr.mxu0 0.0
    %2216 = vmatpush2.msra.mxu0 0.0
    %2217 = vmatprep.subr.mxu0 0.0
    %2218 = vmatpush2.msra.mxu0 0.0
    %2219 = vmatprep.subr.mxu0 0.0
    %2220 = vmatpush2.msra.mxu0 0.0
    %2221 = vmatprep.subr.mxu0 0.0
    %2222 = vmatpush2.msra.mxu0 0.0
    %2223 = vmatprep.subr.mxu0 0.0
    %2224 = vmatpush2.msra.mxu0 0.0
    %2225 = vmatprep.subr.mxu0 0.0
    %2226 = vmatpush2.msra.mxu0 0.0
    %2227 = vmatprep.subr.mxu0 0.0
    %2228 = vmatpush2.msra.mxu0 0.0
    %2229 = vmatprep.subr.mxu0 0.0
    %2230 = vmatpush2.msra.mxu0 0.0
    %2231 = vmatprep.subr.mxu0 0.0
    %2232 = vmatpush2.msra.mxu0 0.0
    %2233 = vmatprep.mubr.f32.mxu0 0.0
    %v2234 = vand.u32 %v1314, 4294901760
    %v2235 = vsub.f32 %v1314, %v2234
    %2236 = vmatmul.mubr.f32.gmra.mxu0 %v2235
    %v2237 = vpop.f32.mrf.mxu0
    %v2238 = vadd.f32 %v2140, %v2237
    %v2239 = vpop.f32.mrf.mxu0
    %2240 = vmatprep.mubr.f32.mxu0 0.0
    %v2241 = vand.u32 %v1317, 4294901760
    %v2242 = vsub.f32 %v1317, %v2241
    %2243 = vmatmul.mubr.f32.gmra.mxu0 %v2242
    %v2244 = vpop.f32.mrf.mxu0
    %v2245 = vadd.f32 %v2146, %v2244
    %v2246 = vpop.f32.mrf.mxu0
    %2247 = vmatprep.mubr.f32.mxu0 0.0
    %v2248 = vand.u32 %v1320, 4294901760
    %v2249 = vsub.f32 %v1320, %v2248
    %2250 = vmatmul.mubr.f32.gmra.mxu0 %v2249
    %v2251 = vpop.f32.mrf.mxu0
    %v2252 = vadd.f32 %v2152, %v2251
    %v2253 = vpop.f32.mrf.mxu0
    %2254 = vmatprep.mubr.f32.mxu0 0.0
    %v2255 = vand.u32 %v1323, 4294901760
    %v2256 = vsub.f32 %v1323, %v2255
    %2257 = vmatmul.mubr.f32.gmra.mxu0 %v2256
    %v2258 = vpop.f32.mrf.mxu0
    %v2259 = vadd.f32 %v2158, %v2258
    %v2260 = vpop.f32.mrf.mxu0
    %2261 = vdwg.mxu0
    %2262 = vmatprep.subr.mxu0 0.0
    %2263 = vmatpush1.msra.mxu0 0.0
    %2264 = vmatprep.subr.mxu0 0.0
    %2265 = vmatpush1.msra.mxu0 0.0
    %2266 = vmatprep.subr.mxu0 0.0
    %2267 = vmatpush1.msra.mxu0 0.0
    %2268 = vmatprep.subr.mxu0 0.0
    %2269 = vmatpush1.msra.mxu0 0.0
    %2270 = vmatprep.subr.mxu0 0.0
    %2271 = vmatpush1.msra.mxu0 0.0
    %2272 = vmatprep.subr.mxu0 0.0
    %2273 = vmatpush1.msra.mxu0 0.0
    %2274 = vmatprep.subr.mxu0 0.0
    %2275 = vmatpush1.msra.mxu0 0.0
    %2276 = vmatprep.subr.mxu0 0.0
    %2277 = vmatpush1.msra.mxu0 0.0
    %2278 = vmatprep.subr.mxu0 0.0
    %2279 = vmatpush1.msra.mxu0 0.0
    %2280 = vmatprep.subr.mxu0 0.0
    %2281 = vmatpush1.msra.mxu0 0.0
    %2282 = vmatprep.subr.mxu0 0.0
    %2283 = vmatpush1.msra.mxu0 0.0
    %2284 = vmatprep.subr.mxu0 0.0
    %2285 = vmatpush1.msra.mxu0 0.0
    %2286 = vmatprep.subr.mxu0 0.0
    %v2287 = vand.u32 %v1942, 4294901760
    %2288 = vmatpush1.msra.mxu0 %v2287
    %2289 = vmatprep.subr.mxu0 0.0
    %v2290 = vand.u32 %v1941, 4294901760
    %2291 = vmatpush1.msra.mxu0 %v2290
    %2292 = vmatprep.subr.mxu0 0.0
    %v2293 = vand.u32 %v1940, 4294901760
    %2294 = vmatpush1.msra.mxu0 %v2293
    %2295 = vmatprep.subr.mxu0 0.0
    %v2296 = vand.u32 %v1939, 4294901760
    %2297 = vmatpush1.msra.mxu0 %v2296
    %2298 = vmatprep.subr.mxu0 0.0
    %2299 = vmatpush2.msra.mxu0 0.0
    %2300 = vmatprep.subr.mxu0 0.0
    %2301 = vmatpush2.msra.mxu0 0.0
    %2302 = vmatprep.subr.mxu0 0.0
    %2303 = vmatpush2.msra.mxu0 0.0
    %2304 = vmatprep.subr.mxu0 0.0
    %2305 = vmatpush2.msra.mxu0 0.0
    %2306 = vmatprep.subr.mxu0 0.0
    %2307 = vmatpush2.msra.mxu0 0.0
    %2308 = vmatprep.subr.mxu0 0.0
    %2309 = vmatpush2.msra.mxu0 0.0
    %2310 = vmatprep.subr.mxu0 0.0
    %2311 = vmatpush2.msra.mxu0 0.0
    %2312 = vmatprep.subr.mxu0 0.0
    %2313 = vmatpush2.msra.mxu0 0.0
    %2314 = vmatprep.subr.mxu0 0.0
    %2315 = vmatpush2.msra.mxu0 0.0
    %2316 = vmatprep.subr.mxu0 0.0
    %2317 = vmatpush2.msra.mxu0 0.0
    %2318 = vmatprep.subr.mxu0 0.0
    %2319 = vmatpush2.msra.mxu0 0.0
    %2320 = vmatprep.subr.mxu0 0.0
    %2321 = vmatpush2.msra.mxu0 0.0
    %2322 = vmatprep.subr.mxu0 0.0
    %2323 = vmatpush2.msra.mxu0 0.0
    %2324 = vmatprep.subr.mxu0 0.0
    %2325 = vmatpush2.msra.mxu0 0.0
    %2326 = vmatprep.subr.mxu0 0.0
    %2327 = vmatpush2.msra.mxu0 0.0
    %2328 = vmatprep.subr.mxu0 0.0
    %2329 = vmatpush2.msra.mxu0 0.0
    %2330 = vmatprep.mubr.f32.mxu0 0.0
    %v2331 = vand.u32 %v1314, 4294901760
    %v2332 = vsub.f32 %v1314, %v2331
    %v2333 = vand.u32 %v2332, 4294901760
    %2334 = vmatmul.mubr.f32.gmra.mxu0 %v2333
    %v2335 = vpop.f32.mrf.mxu0
    %v2336 = vadd.f32 %v2238, %v2335
    %v2337 = vpop.f32.mrf.mxu0
    %2338 = vmatprep.mubr.f32.mxu0 0.0
    %v2339 = vand.u32 %v1317, 4294901760
    %v2340 = vsub.f32 %v1317, %v2339
    %v2341 = vand.u32 %v2340, 4294901760
    %2342 = vmatmul.mubr.f32.gmra.mxu0 %v2341
    %v2343 = vpop.f32.mrf.mxu0
    %v2344 = vadd.f32 %v2245, %v2343
    %v2345 = vpop.f32.mrf.mxu0
    %2346 = vmatprep.mubr.f32.mxu0 0.0
    %v2347 = vand.u32 %v1320, 4294901760
    %v2348 = vsub.f32 %v1320, %v2347
    %v2349 = vand.u32 %v2348, 4294901760
    %2350 = vmatmul.mubr.f32.gmra.mxu0 %v2349
    %v2351 = vpop.f32.mrf.mxu0
    %v2352 = vadd.f32 %v2252, %v2351
    %v2353 = vpop.f32.mrf.mxu0
    %2354 = vmatprep.mubr.f32.mxu0 0.0
    %v2355 = vand.u32 %v1323, 4294901760
    %v2356 = vsub.f32 %v1323, %v2355
    %v2357 = vand.u32 %v2356, 4294901760
    %2358 = vmatmul.mubr.f32.gmra.mxu0 %v2357
    %v2359 = vpop.f32.mrf.mxu0
    %v2360 = vadd.f32 %v2259, %v2359
    %v2361 = vpop.f32.mrf.mxu0
    %2362 = vdwg.mxu0
    %2363 = vmatprep.subr.mxu0 0.0
    %2364 = vmatpush1.msra.mxu0 0.0
    %2365 = vmatprep.subr.mxu0 0.0
    %2366 = vmatpush1.msra.mxu0 0.0
    %2367 = vmatprep.subr.mxu0 0.0
    %2368 = vmatpush1.msra.mxu0 0.0
    %2369 = vmatprep.subr.mxu0 0.0
    %2370 = vmatpush1.msra.mxu0 0.0
    %2371 = vmatprep.subr.mxu0 0.0
    %2372 = vmatpush1.msra.mxu0 0.0
    %2373 = vmatprep.subr.mxu0 0.0
    %2374 = vmatpush1.msra.mxu0 0.0
    %2375 = vmatprep.subr.mxu0 0.0
    %2376 = vmatpush1.msra.mxu0 0.0
    %2377 = vmatprep.subr.mxu0 0.0
    %2378 = vmatpush1.msra.mxu0 0.0
    %2379 = vmatprep.subr.mxu0 0.0
    %2380 = vmatpush1.msra.mxu0 0.0
    %2381 = vmatprep.subr.mxu0 0.0
    %2382 = vmatpush1.msra.mxu0 0.0
    %2383 = vmatprep.subr.mxu0 0.0
    %2384 = vmatpush1.msra.mxu0 0.0
    %2385 = vmatprep.subr.mxu0 0.0
    %2386 = vmatpush1.msra.mxu0 0.0
    %2387 = vmatprep.subr.mxu0 0.0
    %v2388 = vand.u32 %v1942, 4294901760
    %v2389 = vsub.f32 %v1942, %v2388
    %v2390 = vand.u32 %v2389, 4294901760
    %2391 = vmatpush1.msra.mxu0 %v2390
    %2392 = vmatprep.subr.mxu0 0.0
    %v2393 = vand.u32 %v1941, 4294901760
    %v2394 = vsub.f32 %v1941, %v2393
    %v2395 = vand.u32 %v2394, 4294901760
    %2396 = vmatpush1.msra.mxu0 %v2395
    %2397 = vmatprep.subr.mxu0 0.0
    %v2398 = vand.u32 %v1940, 4294901760
    %v2399 = vsub.f32 %v1940, %v2398
    %v2400 = vand.u32 %v2399, 4294901760
    %2401 = vmatpush1.msra.mxu0 %v2400
    %2402 = vmatprep.subr.mxu0 0.0
    %v2403 = vand.u32 %v1939, 4294901760
    %v2404 = vsub.f32 %v1939, %v2403
    %v2405 = vand.u32 %v2404, 4294901760
    %2406 = vmatpush1.msra.mxu0 %v2405
    %2407 = vmatprep.subr.mxu0 0.0
    %2408 = vmatpush2.msra.mxu0 0.0
    %2409 = vmatprep.subr.mxu0 0.0
    %2410 = vmatpush2.msra.mxu0 0.0
    %2411 = vmatprep.subr.mxu0 0.0
    %2412 = vmatpush2.msra.mxu0 0.0
    %2413 = vmatprep.subr.mxu0 0.0
    %2414 = vmatpush2.msra.mxu0 0.0
    %2415 = vmatprep.subr.mxu0 0.0
    %2416 = vmatpush2.msra.mxu0 0.0
    %2417 = vmatprep.subr.mxu0 0.0
    %2418 = vmatpush2.msra.mxu0 0.0
    %2419 = vmatprep.subr.mxu0 0.0
    %2420 = vmatpush2.msra.mxu0 0.0
    %2421 = vmatprep.subr.mxu0 0.0
    %2422 = vmatpush2.msra.mxu0 0.0
    %2423 = vmatprep.subr.mxu0 0.0
    %2424 = vmatpush2.msra.mxu0 0.0
    %2425 = vmatprep.subr.mxu0 0.0
    %2426 = vmatpush2.msra.mxu0 0.0
    %2427 = vmatprep.subr.mxu0 0.0
    %2428 = vmatpush2.msra.mxu0 0.0
    %2429 = vmatprep.subr.mxu0 0.0
    %2430 = vmatpush2.msra.mxu0 0.0
    %2431 = vmatprep.subr.mxu0 0.0
    %2432 = vmatpush2.msra.mxu0 0.0
    %2433 = vmatprep.subr.mxu0 0.0
    %2434 = vmatpush2.msra.mxu0 0.0
    %2435 = vmatprep.subr.mxu0 0.0
    %2436 = vmatpush2.msra.mxu0 0.0
    %2437 = vmatprep.subr.mxu0 0.0
    %2438 = vmatpush2.msra.mxu0 0.0
    %2439 = vmatprep.mubr.f32.mxu0 0.0
    %v2440 = vand.u32 %v1314, 4294901760
    %2441 = vmatmul.mubr.f32.gmra.mxu0 %v2440
    %v2442 = vpop.f32.mrf.mxu0
    %v2443 = vadd.f32 %v2336, %v2442
    %v2444 = vpop.f32.mrf.mxu0
    %2445 = vmatprep.mubr.f32.mxu0 0.0
    %v2446 = vand.u32 %v1317, 4294901760
    %2447 = vmatmul.mubr.f32.gmra.mxu0 %v2446
    %v2448 = vpop.f32.mrf.mxu0
    %v2449 = vadd.f32 %v2344, %v2448
    %v2450 = vpop.f32.mrf.mxu0
    %2451 = vmatprep.mubr.f32.mxu0 0.0
    %v2452 = vand.u32 %v1320, 4294901760
    %2453 = vmatmul.mubr.f32.gmra.mxu0 %v2452
    %v2454 = vpop.f32.mrf.mxu0
    %v2455 = vadd.f32 %v2352, %v2454
    %v2456 = vpop.f32.mrf.mxu0
    %2457 = vmatprep.mubr.f32.mxu0 0.0
    %v2458 = vand.u32 %v1323, 4294901760
    %2459 = vmatmul.mubr.f32.gmra.mxu0 %v2458
    %v2460 = vpop.f32.mrf.mxu0
    %v2461 = vadd.f32 %v2360, %v2460
    %v2462 = vpop.f32.mrf.mxu0
    %2463 = vdwg.mxu0
    %2464 = vmatprep.subr.mxu0 0.0
    %2465 = vmatpush1.msra.mxu0 0.0
    %2466 = vmatprep.subr.mxu0 0.0
    %2467 = vmatpush1.msra.mxu0 0.0
    %2468 = vmatprep.subr.mxu0 0.0
    %2469 = vmatpush1.msra.mxu0 0.0
    %2470 = vmatprep.subr.mxu0 0.0
    %2471 = vmatpush1.msra.mxu0 0.0
    %2472 = vmatprep.subr.mxu0 0.0
    %2473 = vmatpush1.msra.mxu0 0.0
    %2474 = vmatprep.subr.mxu0 0.0
    %2475 = vmatpush1.msra.mxu0 0.0
    %2476 = vmatprep.subr.mxu0 0.0
    %2477 = vmatpush1.msra.mxu0 0.0
    %2478 = vmatprep.subr.mxu0 0.0
    %2479 = vmatpush1.msra.mxu0 0.0
    %2480 = vmatprep.subr.mxu0 0.0
    %2481 = vmatpush1.msra.mxu0 0.0
    %2482 = vmatprep.subr.mxu0 0.0
    %2483 = vmatpush1.msra.mxu0 0.0
    %2484 = vmatprep.subr.mxu0 0.0
    %2485 = vmatpush1.msra.mxu0 0.0
    %2486 = vmatprep.subr.mxu0 0.0
    %2487 = vmatpush1.msra.mxu0 0.0
    %2488 = vmatprep.subr.mxu0 0.0
    %v2489 = vand.u32 %v1942, 4294901760
    %2490 = vmatpush1.msra.mxu0 %v2489
    %2491 = vmatprep.subr.mxu0 0.0
    %v2492 = vand.u32 %v1941, 4294901760
    %2493 = vmatpush1.msra.mxu0 %v2492
    %2494 = vmatprep.subr.mxu0 0.0
    %v2495 = vand.u32 %v1940, 4294901760
    %2496 = vmatpush1.msra.mxu0 %v2495
    %2497 = vmatprep.subr.mxu0 0.0
    %v2498 = vand.u32 %v1939, 4294901760
    %2499 = vmatpush1.msra.mxu0 %v2498
    %2500 = vmatprep.subr.mxu0 0.0
    %2501 = vmatpush2.msra.mxu0 0.0
    %2502 = vmatprep.subr.mxu0 0.0
    %2503 = vmatpush2.msra.mxu0 0.0
    %2504 = vmatprep.subr.mxu0 0.0
    %2505 = vmatpush2.msra.mxu0 0.0
    %2506 = vmatprep.subr.mxu0 0.0
    %2507 = vmatpush2.msra.mxu0 0.0
    %2508 = vmatprep.subr.mxu0 0.0
    %2509 = vmatpush2.msra.mxu0 0.0
    %2510 = vmatprep.subr.mxu0 0.0
    %2511 = vmatpush2.msra.mxu0 0.0
    %2512 = vmatprep.subr.mxu0 0.0
    %2513 = vmatpush2.msra.mxu0 0.0
    %2514 = vmatprep.subr.mxu0 0.0
    %2515 = vmatpush2.msra.mxu0 0.0
    %2516 = vmatprep.subr.mxu0 0.0
    %2517 = vmatpush2.msra.mxu0 0.0
    %2518 = vmatprep.subr.mxu0 0.0
    %2519 = vmatpush2.msra.mxu0 0.0
    %2520 = vmatprep.subr.mxu0 0.0
    %2521 = vmatpush2.msra.mxu0 0.0
    %2522 = vmatprep.subr.mxu0 0.0
    %2523 = vmatpush2.msra.mxu0 0.0
    %2524 = vmatprep.subr.mxu0 0.0
    %2525 = vmatpush2.msra.mxu0 0.0
    %2526 = vmatprep.subr.mxu0 0.0
    %2527 = vmatpush2.msra.mxu0 0.0
    %2528 = vmatprep.subr.mxu0 0.0
    %2529 = vmatpush2.msra.mxu0 0.0
    %2530 = vmatprep.subr.mxu0 0.0
    %2531 = vmatpush2.msra.mxu0 0.0
    %2532 = vmatprep.mubr.f32.mxu0 0.0
    %v2533 = vand.u32 %v1314, 4294901760
    %2534 = vmatmul.mubr.f32.gmra.mxu0 %v2533
    %v2535 = vpop.f32.mrf.mxu0
    %v2536 = vadd.f32 %v2443, %v2535
    %v2537 = vpop.f32.mrf.mxu0
    %2538 = vmatprep.mubr.f32.mxu0 0.0
    %v2539 = vand.u32 %v1317, 4294901760
    %2540 = vmatmul.mubr.f32.gmra.mxu0 %v2539
    %v2541 = vpop.f32.mrf.mxu0
    %v2542 = vadd.f32 %v2449, %v2541
    %v2543 = vpop.f32.mrf.mxu0
    %2544 = vmatprep.mubr.f32.mxu0 0.0
    %v2545 = vand.u32 %v1320, 4294901760
    %2546 = vmatmul.mubr.f32.gmra.mxu0 %v2545
    %v2547 = vpop.f32.mrf.mxu0
    %v2548 = vadd.f32 %v2455, %v2547
    %v2549 = vpop.f32.mrf.mxu0
    %2550 = vmatprep.mubr.f32.mxu0 0.0
    %v2551 = vand.u32 %v1323, 4294901760
    %2552 = vmatmul.mubr.f32.gmra.mxu0 %v2551
    %v2553 = vpop.f32.mrf.mxu0
    %v2554 = vadd.f32 %v2461, %v2553
    %v2555 = vpop.f32.mrf.mxu0
    %2556 = vdwg.mxu0
    %v2561 = vrot.slane %v2536, 1
    %v2562 = vrot.slane %v2542, 1
    %v2563 = vsel %vm1259, %v2561, %v2562
    %v2564 = vrot.slane %v2548, 1
    %v2565 = vrot.slane %v2554, 1
    %v2566 = vsel %vm1259, %v2564, %v2565
    %v2573 = vsel %vm1259, %v2562, %v2561
    %v2574 = vsel %vm1259, %v2565, %v2564
    %v2575 = vrot.slane %v2542, 7
    %v2576 = vrot.slane %v2554, 7
    %v2579 = vrot.slane %v2536, 7
    %v2580 = vsel %vm1278, %v2579, %v2575
    %v2581 = vrot.slane %v2548, 7
    %v2582 = vsel %vm1278, %v2581, %v2576
    %v2587 = vsel %vm1278, %v2575, %v2579
    %v2588 = vsel %vm1278, %v2576, %v2581
    %v2589 = vmin.f32 %v2563, %v2587
    %v2590 = vmin.f32 %v2573, %v2580
    %v2591 = vmin.f32 %v2566, %v2588
    %v2592 = vmin.f32 %v2574, %v2582
    %v2593 = vsub.f32 %v1918, %v2589
    %v2594 = vsub.f32 %v1924, %v2590
    %v2595 = vsub.f32 %v1930, %v2591
    %v2596 = vsub.f32 %v1936, %v2592
    %v2597 = vmax.f32 %v2593, 0.0
    %v2598 = vmax.f32 %v2594, 0.0
    %v2599 = vmax.f32 %v2595, 0.0
    %v2600 = vmax.f32 %v2596, 0.0
    %v2601 = vld [vmem:[%s7] sm:$0xff]
    %v2602 = vld [vmem:[%s7 + $0x8] sm:$0xff]
    %v2603 = vld [vmem:[%s7 + $0x10] sm:$0xff]
    %v2604 = vld [vmem:[%s7 + $0x18] sm:$0xff]
    %v2605 = vld [vmem:[%s8] sm:$0xff]
    %v2606 = vld [vmem:[%s8 + $0x8] sm:$0xff]
    %v2607 = vld [vmem:[%s8 + $0x10] sm:$0xff]
    %v2608 = vld [vmem:[%s8 + $0x18] sm:$0xff]
    %v2609 = vld [vmem:[%s8 + $0x20] sm:$0xff]
    %v2610 = vld [vmem:[%s8 + $0x28] sm:$0xff]
    %v2611 = vld [vmem:[%s8 + $0x30] sm:$0xff]
    %v2612 = vld [vmem:[%s8 + $0x38] sm:$0xff]
    %vm2613 = vcmask 523264
    %v2615 = vsel %vm2613, %v2597, 0
    %v2618 = vsel %vm2613, %v2598, 0
    %v2621 = vsel %vm2613, %v2599, 0
    %v2624 = vsel %vm2613, %v2600, 0
    %2626 = vmatprep.subr.mxu0 0.0
    %2627 = vmatpush1.msra.mxu0 0.0
    %2628 = vmatprep.subr.mxu0 0.0
    %2629 = vmatpush1.msra.mxu0 0.0
    %2630 = vmatprep.subr.mxu0 0.0
    %2631 = vmatpush1.msra.mxu0 0.0
    %2632 = vmatprep.subr.mxu0 0.0
    %2633 = vmatpush1.msra.mxu0 0.0
    %2634 = vmatprep.subr.mxu0 0.0
    %2635 = vmatpush1.msra.mxu0 0.0
    %2636 = vmatprep.subr.mxu0 0.0
    %2637 = vmatpush1.msra.mxu0 0.0
    %2638 = vmatprep.subr.mxu0 0.0
    %2639 = vmatpush1.msra.mxu0 0.0
    %2640 = vmatprep.subr.mxu0 0.0
    %2641 = vmatpush1.msra.mxu0 0.0
    %2642 = vmatprep.subr.mxu0 0.0
    %v2643 = vand.u32 %v2612, 4294901760
    %2644 = vmatpush1.msra.mxu0 %v2643
    %2645 = vmatprep.subr.mxu0 0.0
    %v2646 = vand.u32 %v2611, 4294901760
    %2647 = vmatpush1.msra.mxu0 %v2646
    %2648 = vmatprep.subr.mxu0 0.0
    %v2649 = vand.u32 %v2610, 4294901760
    %2650 = vmatpush1.msra.mxu0 %v2649
    %2651 = vmatprep.subr.mxu0 0.0
    %v2652 = vand.u32 %v2609, 4294901760
    %2653 = vmatpush1.msra.mxu0 %v2652
    %2654 = vmatprep.subr.mxu0 0.0
    %v2655 = vand.u32 %v2608, 4294901760
    %2656 = vmatpush1.msra.mxu0 %v2655
    %2657 = vmatprep.subr.mxu0 0.0
    %v2658 = vand.u32 %v2607, 4294901760
    %2659 = vmatpush1.msra.mxu0 %v2658
    %2660 = vmatprep.subr.mxu0 0.0
    %v2661 = vand.u32 %v2606, 4294901760
    %2662 = vmatpush1.msra.mxu0 %v2661
    %2663 = vmatprep.subr.mxu0 0.0
    %v2664 = vand.u32 %v2605, 4294901760
    %2665 = vmatpush1.msra.mxu0 %v2664
    %2666 = vmatprep.subr.mxu0 0.0
    %2667 = vmatpush2.msra.mxu0 0.0
    %2668 = vmatprep.subr.mxu0 0.0
    %2669 = vmatpush2.msra.mxu0 0.0
    %2670 = vmatprep.subr.mxu0 0.0
    %2671 = vmatpush2.msra.mxu0 0.0
    %2672 = vmatprep.subr.mxu0 0.0
    %2673 = vmatpush2.msra.mxu0 0.0
    %2674 = vmatprep.subr.mxu0 0.0
    %2675 = vmatpush2.msra.mxu0 0.0
    %2676 = vmatprep.subr.mxu0 0.0
    %2677 = vmatpush2.msra.mxu0 0.0
    %2678 = vmatprep.subr.mxu0 0.0
    %2679 = vmatpush2.msra.mxu0 0.0
    %2680 = vmatprep.subr.mxu0 0.0
    %2681 = vmatpush2.msra.mxu0 0.0
    %2682 = vmatprep.subr.mxu0 0.0
    %2683 = vmatpush2.msra.mxu0 0.0
    %2684 = vmatprep.subr.mxu0 0.0
    %2685 = vmatpush2.msra.mxu0 0.0
    %2686 = vmatprep.subr.mxu0 0.0
    %2687 = vmatpush2.msra.mxu0 0.0
    %2688 = vmatprep.subr.mxu0 0.0
    %2689 = vmatpush2.msra.mxu0 0.0
    %2690 = vmatprep.subr.mxu0 0.0
    %2691 = vmatpush2.msra.mxu0 0.0
    %2692 = vmatprep.subr.mxu0 0.0
    %2693 = vmatpush2.msra.mxu0 0.0
    %2694 = vmatprep.subr.mxu0 0.0
    %2695 = vmatpush2.msra.mxu0 0.0
    %2696 = vmatprep.subr.mxu0 0.0
    %2697 = vmatpush2.msra.mxu0 0.0
    %2698 = vmatprep.mubr.f32.mxu0 0.0
    %v2699 = vand.u32 %v2615, 4294901760
    %v2700 = vsub.f32 %v2615, %v2699
    %v2701 = vand.u32 %v2700, 4294901760
    %v2702 = vsub.f32 %v2700, %v2701
    %v2703 = vand.u32 %v2702, 4294901760
    %2704 = vmatmul.mubr.f32.gmra.mxu0 %v2703
    %v2705 = vpop.f32.mrf.mxu0
    %v2706 = vadd.f32 0.0, %v2705
    %v2707 = vpop.f32.mrf.mxu0
    %2708 = vmatprep.mubr.f32.mxu0 0.0
    %v2709 = vand.u32 %v2618, 4294901760
    %v2710 = vsub.f32 %v2618, %v2709
    %v2711 = vand.u32 %v2710, 4294901760
    %v2712 = vsub.f32 %v2710, %v2711
    %v2713 = vand.u32 %v2712, 4294901760
    %2714 = vmatmul.mubr.f32.gmra.mxu0 %v2713
    %v2715 = vpop.f32.mrf.mxu0
    %v2716 = vadd.f32 0.0, %v2715
    %v2717 = vpop.f32.mrf.mxu0
    %2718 = vmatprep.mubr.f32.mxu0 0.0
    %v2719 = vand.u32 %v2621, 4294901760
    %v2720 = vsub.f32 %v2621, %v2719
    %v2721 = vand.u32 %v2720, 4294901760
    %v2722 = vsub.f32 %v2720, %v2721
    %v2723 = vand.u32 %v2722, 4294901760
    %2724 = vmatmul.mubr.f32.gmra.mxu0 %v2723
    %v2725 = vpop.f32.mrf.mxu0
    %v2726 = vadd.f32 0.0, %v2725
    %v2727 = vpop.f32.mrf.mxu0
    %2728 = vmatprep.mubr.f32.mxu0 0.0
    %v2729 = vand.u32 %v2624, 4294901760
    %v2730 = vsub.f32 %v2624, %v2729
    %v2731 = vand.u32 %v2730, 4294901760
    %v2732 = vsub.f32 %v2730, %v2731
    %v2733 = vand.u32 %v2732, 4294901760
    %2734 = vmatmul.mubr.f32.gmra.mxu0 %v2733
    %v2735 = vpop.f32.mrf.mxu0
    %v2736 = vadd.f32 0.0, %v2735
    %v2737 = vpop.f32.mrf.mxu0
    %2738 = vdwg.mxu0
    %2739 = vmatprep.subr.mxu0 0.0
    %2740 = vmatpush1.msra.mxu0 0.0
    %2741 = vmatprep.subr.mxu0 0.0
    %2742 = vmatpush1.msra.mxu0 0.0
    %2743 = vmatprep.subr.mxu0 0.0
    %2744 = vmatpush1.msra.mxu0 0.0
    %2745 = vmatprep.subr.mxu0 0.0
    %2746 = vmatpush1.msra.mxu0 0.0
    %2747 = vmatprep.subr.mxu0 0.0
    %2748 = vmatpush1.msra.mxu0 0.0
    %2749 = vmatprep.subr.mxu0 0.0
    %2750 = vmatpush1.msra.mxu0 0.0
    %2751 = vmatprep.subr.mxu0 0.0
    %2752 = vmatpush1.msra.mxu0 0.0
    %2753 = vmatprep.subr.mxu0 0.0
    %2754 = vmatpush1.msra.mxu0 0.0
    %2755 = vmatprep.subr.mxu0 0.0
    %v2756 = vand.u32 %v2612, 4294901760
    %v2757 = vsub.f32 %v2612, %v2756
    %v2758 = vand.u32 %v2757, 4294901760
    %v2759 = vsub.f32 %v2757, %v2758
    %v2760 = vand.u32 %v2759, 4294901760
    %2761 = vmatpush1.msra.mxu0 %v2760
    %2762 = vmatprep.subr.mxu0 0.0
    %v2763 = vand.u32 %v2611, 4294901760
    %v2764 = vsub.f32 %v2611, %v2763
    %v2765 = vand.u32 %v2764, 4294901760
    %v2766 = vsub.f32 %v2764, %v2765
    %v2767 = vand.u32 %v2766, 4294901760
    %2768 = vmatpush1.msra.mxu0 %v2767
    %2769 = vmatprep.subr.mxu0 0.0
    %v2770 = vand.u32 %v2610, 4294901760
    %v2771 = vsub.f32 %v2610, %v2770
    %v2772 = vand.u32 %v2771, 4294901760
    %v2773 = vsub.f32 %v2771, %v2772
    %v2774 = vand.u32 %v2773, 4294901760
    %2775 = vmatpush1.msra.mxu0 %v2774
    %2776 = vmatprep.subr.mxu0 0.0
    %v2777 = vand.u32 %v2609, 4294901760
    %v2778 = vsub.f32 %v2609, %v2777
    %v2779 = vand.u32 %v2778, 4294901760
    %v2780 = vsub.f32 %v2778, %v2779
    %v2781 = vand.u32 %v2780, 4294901760
    %2782 = vmatpush1.msra.mxu0 %v2781
    %2783 = vmatprep.subr.mxu0 0.0
    %v2784 = vand.u32 %v2608, 4294901760
    %v2785 = vsub.f32 %v2608, %v2784
    %v2786 = vand.u32 %v2785, 4294901760
    %v2787 = vsub.f32 %v2785, %v2786
    %v2788 = vand.u32 %v2787, 4294901760
    %2789 = vmatpush1.msra.mxu0 %v2788
    %2790 = vmatprep.subr.mxu0 0.0
    %v2791 = vand.u32 %v2607, 4294901760
    %v2792 = vsub.f32 %v2607, %v2791
    %v2793 = vand.u32 %v2792, 4294901760
    %v2794 = vsub.f32 %v2792, %v2793
    %v2795 = vand.u32 %v2794, 4294901760
    %2796 = vmatpush1.msra.mxu0 %v2795
    %2797 = vmatprep.subr.mxu0 0.0
    %v2798 = vand.u32 %v2606, 4294901760
    %v2799 = vsub.f32 %v2606, %v2798
    %v2800 = vand.u32 %v2799, 4294901760
    %v2801 = vsub.f32 %v2799, %v2800
    %v2802 = vand.u32 %v2801, 4294901760
    %2803 = vmatpush1.msra.mxu0 %v2802
    %2804 = vmatprep.subr.mxu0 0.0
    %v2805 = vand.u32 %v2605, 4294901760
    %v2806 = vsub.f32 %v2605, %v2805
    %v2807 = vand.u32 %v2806, 4294901760
    %v2808 = vsub.f32 %v2806, %v2807
    %v2809 = vand.u32 %v2808, 4294901760
    %2810 = vmatpush1.msra.mxu0 %v2809
    %2811 = vmatprep.subr.mxu0 0.0
    %2812 = vmatpush2.msra.mxu0 0.0
    %2813 = vmatprep.subr.mxu0 0.0
    %2814 = vmatpush2.msra.mxu0 0.0
    %2815 = vmatprep.subr.mxu0 0.0
    %2816 = vmatpush2.msra.mxu0 0.0
    %2817 = vmatprep.subr.mxu0 0.0
    %2818 = vmatpush2.msra.mxu0 0.0
    %2819 = vmatprep.subr.mxu0 0.0
    %2820 = vmatpush2.msra.mxu0 0.0
    %2821 = vmatprep.subr.mxu0 0.0
    %2822 = vmatpush2.msra.mxu0 0.0
    %2823 = vmatprep.subr.mxu0 0.0
    %2824 = vmatpush2.msra.mxu0 0.0
    %2825 = vmatprep.subr.mxu0 0.0
    %2826 = vmatpush2.msra.mxu0 0.0
    %2827 = vmatprep.subr.mxu0 0.0
    %2828 = vmatpush2.msra.mxu0 0.0
    %2829 = vmatprep.subr.mxu0 0.0
    %2830 = vmatpush2.msra.mxu0 0.0
    %2831 = vmatprep.subr.mxu0 0.0
    %2832 = vmatpush2.msra.mxu0 0.0
    %2833 = vmatprep.subr.mxu0 0.0
    %2834 = vmatpush2.msra.mxu0 0.0
    %2835 = vmatprep.subr.mxu0 0.0
    %2836 = vmatpush2.msra.mxu0 0.0
    %2837 = vmatprep.subr.mxu0 0.0
    %2838 = vmatpush2.msra.mxu0 0.0
    %2839 = vmatprep.subr.mxu0 0.0
    %2840 = vmatpush2.msra.mxu0 0.0
    %2841 = vmatprep.subr.mxu0 0.0
    %2842 = vmatpush2.msra.mxu0 0.0
    %2843 = vmatprep.mubr.f32.mxu0 0.0
    %v2844 = vand.u32 %v2615, 4294901760
    %2845 = vmatmul.mubr.f32.gmra.mxu0 %v2844
    %v2846 = vpop.f32.mrf.mxu0
    %v2847 = vadd.f32 %v2706, %v2846
    %v2848 = vpop.f32.mrf.mxu0
    %2849 = vmatprep.mubr.f32.mxu0 0.0
    %v2850 = vand.u32 %v2618, 4294901760
    %2851 = vmatmul.mubr.f32.gmra.mxu0 %v2850
    %v2852 = vpop.f32.mrf.mxu0
    %v2853 = vadd.f32 %v2716, %v2852
    %v2854 = vpop.f32.mrf.mxu0
    %2855 = vmatprep.mubr.f32.mxu0 0.0
    %v2856 = vand.u32 %v2621, 4294901760
    %2857 = vmatmul.mubr.f32.gmra.mxu0 %v2856
    %v2858 = vpop.f32.mrf.mxu0
    %v2859 = vadd.f32 %v2726, %v2858
    %v2860 = vpop.f32.mrf.mxu0
    %2861 = vmatprep.mubr.f32.mxu0 0.0
    %v2862 = vand.u32 %v2624, 4294901760
    %2863 = vmatmul.mubr.f32.gmra.mxu0 %v2862
    %v2864 = vpop.f32.mrf.mxu0
    %v2865 = vadd.f32 %v2736, %v2864
    %v2866 = vpop.f32.mrf.mxu0
    %2867 = vdwg.mxu0
    %2868 = vmatprep.subr.mxu0 0.0
    %2869 = vmatpush1.msra.mxu0 0.0
    %2870 = vmatprep.subr.mxu0 0.0
    %2871 = vmatpush1.msra.mxu0 0.0
    %2872 = vmatprep.subr.mxu0 0.0
    %2873 = vmatpush1.msra.mxu0 0.0
    %2874 = vmatprep.subr.mxu0 0.0
    %2875 = vmatpush1.msra.mxu0 0.0
    %2876 = vmatprep.subr.mxu0 0.0
    %2877 = vmatpush1.msra.mxu0 0.0
    %2878 = vmatprep.subr.mxu0 0.0
    %2879 = vmatpush1.msra.mxu0 0.0
    %2880 = vmatprep.subr.mxu0 0.0
    %2881 = vmatpush1.msra.mxu0 0.0
    %2882 = vmatprep.subr.mxu0 0.0
    %2883 = vmatpush1.msra.mxu0 0.0
    %2884 = vmatprep.subr.mxu0 0.0
    %v2885 = vand.u32 %v2612, 4294901760
    %v2886 = vsub.f32 %v2612, %v2885
    %2887 = vmatpush1.msra.mxu0 %v2886
    %2888 = vmatprep.subr.mxu0 0.0
    %v2889 = vand.u32 %v2611, 4294901760
    %v2890 = vsub.f32 %v2611, %v2889
    %2891 = vmatpush1.msra.mxu0 %v2890
    %2892 = vmatprep.subr.mxu0 0.0
    %v2893 = vand.u32 %v2610, 4294901760
    %v2894 = vsub.f32 %v2610, %v2893
    %2895 = vmatpush1.msra.mxu0 %v2894
    %2896 = vmatprep.subr.mxu0 0.0
    %v2897 = vand.u32 %v2609, 4294901760
    %v2898 = vsub.f32 %v2609, %v2897
    %2899 = vmatpush1.msra.mxu0 %v2898
    %2900 = vmatprep.subr.mxu0 0.0
    %v2901 = vand.u32 %v2608, 4294901760
    %v2902 = vsub.f32 %v2608, %v2901
    %2903 = vmatpush1.msra.mxu0 %v2902
    %2904 = vmatprep.subr.mxu0 0.0
    %v2905 = vand.u32 %v2607, 4294901760
    %v2906 = vsub.f32 %v2607, %v2905
    %2907 = vmatpush1.msra.mxu0 %v2906
    %2908 = vmatprep.subr.mxu0 0.0
    %v2909 = vand.u32 %v2606, 4294901760
    %v2910 = vsub.f32 %v2606, %v2909
    %2911 = vmatpush1.msra.mxu0 %v2910
    %2912 = vmatprep.subr.mxu0 0.0
    %v2913 = vand.u32 %v2605, 4294901760
    %v2914 = vsub.f32 %v2605, %v2913
    %2915 = vmatpush1.msra.mxu0 %v2914
    %2916 = vmatprep.subr.mxu0 0.0
    %2917 = vmatpush2.msra.mxu0 0.0
    %2918 = vmatprep.subr.mxu0 0.0
    %2919 = vmatpush2.msra.mxu0 0.0
    %2920 = vmatprep.subr.mxu0 0.0
    %2921 = vmatpush2.msra.mxu0 0.0
    %2922 = vmatprep.subr.mxu0 0.0
    %2923 = vmatpush2.msra.mxu0 0.0
    %2924 = vmatprep.subr.mxu0 0.0
    %2925 = vmatpush2.msra.mxu0 0.0
    %2926 = vmatprep.subr.mxu0 0.0
    %2927 = vmatpush2.msra.mxu0 0.0
    %2928 = vmatprep.subr.mxu0 0.0
    %2929 = vmatpush2.msra.mxu0 0.0
    %2930 = vmatprep.subr.mxu0 0.0
    %2931 = vmatpush2.msra.mxu0 0.0
    %2932 = vmatprep.subr.mxu0 0.0
    %2933 = vmatpush2.msra.mxu0 0.0
    %2934 = vmatprep.subr.mxu0 0.0
    %2935 = vmatpush2.msra.mxu0 0.0
    %2936 = vmatprep.subr.mxu0 0.0
    %2937 = vmatpush2.msra.mxu0 0.0
    %2938 = vmatprep.subr.mxu0 0.0
    %2939 = vmatpush2.msra.mxu0 0.0
    %2940 = vmatprep.subr.mxu0 0.0
    %2941 = vmatpush2.msra.mxu0 0.0
    %2942 = vmatprep.subr.mxu0 0.0
    %2943 = vmatpush2.msra.mxu0 0.0
    %2944 = vmatprep.subr.mxu0 0.0
    %2945 = vmatpush2.msra.mxu0 0.0
    %2946 = vmatprep.subr.mxu0 0.0
    %2947 = vmatpush2.msra.mxu0 0.0
    %2948 = vmatprep.mubr.f32.mxu0 0.0
    %v2949 = vand.u32 %v2615, 4294901760
    %v2950 = vsub.f32 %v2615, %v2949
    %2951 = vmatmul.mubr.f32.gmra.mxu0 %v2950
    %v2952 = vpop.f32.mrf.mxu0
    %v2953 = vadd.f32 %v2847, %v2952
    %v2954 = vpop.f32.mrf.mxu0
    %2955 = vmatprep.mubr.f32.mxu0 0.0
    %v2956 = vand.u32 %v2618, 4294901760
    %v2957 = vsub.f32 %v2618, %v2956
    %2958 = vmatmul.mubr.f32.gmra.mxu0 %v2957
    %v2959 = vpop.f32.mrf.mxu0
    %v2960 = vadd.f32 %v2853, %v2959
    %v2961 = vpop.f32.mrf.mxu0
    %2962 = vmatprep.mubr.f32.mxu0 0.0
    %v2963 = vand.u32 %v2621, 4294901760
    %v2964 = vsub.f32 %v2621, %v2963
    %2965 = vmatmul.mubr.f32.gmra.mxu0 %v2964
    %v2966 = vpop.f32.mrf.mxu0
    %v2967 = vadd.f32 %v2859, %v2966
    %v2968 = vpop.f32.mrf.mxu0
    %2969 = vmatprep.mubr.f32.mxu0 0.0
    %v2970 = vand.u32 %v2624, 4294901760
    %v2971 = vsub.f32 %v2624, %v2970
    %2972 = vmatmul.mubr.f32.gmra.mxu0 %v2971
    %v2973 = vpop.f32.mrf.mxu0
    %v2974 = vadd.f32 %v2865, %v2973
    %v2975 = vpop.f32.mrf.mxu0
    %2976 = vdwg.mxu0
    %2977 = vmatprep.subr.mxu0 0.0
    %2978 = vmatpush1.msra.mxu0 0.0
    %2979 = vmatprep.subr.mxu0 0.0
    %2980 = vmatpush1.msra.mxu0 0.0
    %2981 = vmatprep.subr.mxu0 0.0
    %2982 = vmatpush1.msra.mxu0 0.0
    %2983 = vmatprep.subr.mxu0 0.0
    %2984 = vmatpush1.msra.mxu0 0.0
    %2985 = vmatprep.subr.mxu0 0.0
    %2986 = vmatpush1.msra.mxu0 0.0
    %2987 = vmatprep.subr.mxu0 0.0
    %2988 = vmatpush1.msra.mxu0 0.0
    %2989 = vmatprep.subr.mxu0 0.0
    %2990 = vmatpush1.msra.mxu0 0.0
    %2991 = vmatprep.subr.mxu0 0.0
    %2992 = vmatpush1.msra.mxu0 0.0
    %2993 = vmatprep.subr.mxu0 0.0
    %v2994 = vand.u32 %v2612, 4294901760
    %2995 = vmatpush1.msra.mxu0 %v2994
    %2996 = vmatprep.subr.mxu0 0.0
    %v2997 = vand.u32 %v2611, 4294901760
    %2998 = vmatpush1.msra.mxu0 %v2997
    %2999 = vmatprep.subr.mxu0 0.0
    %v3000 = vand.u32 %v2610, 4294901760
    %3001 = vmatpush1.msra.mxu0 %v3000
    %3002 = vmatprep.subr.mxu0 0.0
    %v3003 = vand.u32 %v2609, 4294901760
    %3004 = vmatpush1.msra.mxu0 %v3003
    %3005 = vmatprep.subr.mxu0 0.0
    %v3006 = vand.u32 %v2608, 4294901760
    %3007 = vmatpush1.msra.mxu0 %v3006
    %3008 = vmatprep.subr.mxu0 0.0
    %v3009 = vand.u32 %v2607, 4294901760
    %3010 = vmatpush1.msra.mxu0 %v3009
    %3011 = vmatprep.subr.mxu0 0.0
    %v3012 = vand.u32 %v2606, 4294901760
    %3013 = vmatpush1.msra.mxu0 %v3012
    %3014 = vmatprep.subr.mxu0 0.0
    %v3015 = vand.u32 %v2605, 4294901760
    %3016 = vmatpush1.msra.mxu0 %v3015
    %3017 = vmatprep.subr.mxu0 0.0
    %3018 = vmatpush2.msra.mxu0 0.0
    %3019 = vmatprep.subr.mxu0 0.0
    %3020 = vmatpush2.msra.mxu0 0.0
    %3021 = vmatprep.subr.mxu0 0.0
    %3022 = vmatpush2.msra.mxu0 0.0
    %3023 = vmatprep.subr.mxu0 0.0
    %3024 = vmatpush2.msra.mxu0 0.0
    %3025 = vmatprep.subr.mxu0 0.0
    %3026 = vmatpush2.msra.mxu0 0.0
    %3027 = vmatprep.subr.mxu0 0.0
    %3028 = vmatpush2.msra.mxu0 0.0
    %3029 = vmatprep.subr.mxu0 0.0
    %3030 = vmatpush2.msra.mxu0 0.0
    %3031 = vmatprep.subr.mxu0 0.0
    %3032 = vmatpush2.msra.mxu0 0.0
    %3033 = vmatprep.subr.mxu0 0.0
    %3034 = vmatpush2.msra.mxu0 0.0
    %3035 = vmatprep.subr.mxu0 0.0
    %3036 = vmatpush2.msra.mxu0 0.0
    %3037 = vmatprep.subr.mxu0 0.0
    %3038 = vmatpush2.msra.mxu0 0.0
    %3039 = vmatprep.subr.mxu0 0.0
    %3040 = vmatpush2.msra.mxu0 0.0
    %3041 = vmatprep.subr.mxu0 0.0
    %3042 = vmatpush2.msra.mxu0 0.0
    %3043 = vmatprep.subr.mxu0 0.0
    %3044 = vmatpush2.msra.mxu0 0.0
    %3045 = vmatprep.subr.mxu0 0.0
    %3046 = vmatpush2.msra.mxu0 0.0
    %3047 = vmatprep.subr.mxu0 0.0
    %3048 = vmatpush2.msra.mxu0 0.0
    %3049 = vmatprep.mubr.f32.mxu0 0.0
    %v3050 = vand.u32 %v2615, 4294901760
    %v3051 = vsub.f32 %v2615, %v3050
    %v3052 = vand.u32 %v3051, 4294901760
    %3053 = vmatmul.mubr.f32.gmra.mxu0 %v3052
    %v3054 = vpop.f32.mrf.mxu0
    %v3055 = vadd.f32 %v2953, %v3054
    %v3056 = vpop.f32.mrf.mxu0
    %3057 = vmatprep.mubr.f32.mxu0 0.0
    %v3058 = vand.u32 %v2618, 4294901760
    %v3059 = vsub.f32 %v2618, %v3058
    %v3060 = vand.u32 %v3059, 4294901760
    %3061 = vmatmul.mubr.f32.gmra.mxu0 %v3060
    %v3062 = vpop.f32.mrf.mxu0
    %v3063 = vadd.f32 %v2960, %v3062
    %v3064 = vpop.f32.mrf.mxu0
    %3065 = vmatprep.mubr.f32.mxu0 0.0
    %v3066 = vand.u32 %v2621, 4294901760
    %v3067 = vsub.f32 %v2621, %v3066
    %v3068 = vand.u32 %v3067, 4294901760
    %3069 = vmatmul.mubr.f32.gmra.mxu0 %v3068
    %v3070 = vpop.f32.mrf.mxu0
    %v3071 = vadd.f32 %v2967, %v3070
    %v3072 = vpop.f32.mrf.mxu0
    %3073 = vmatprep.mubr.f32.mxu0 0.0
    %v3074 = vand.u32 %v2624, 4294901760
    %v3075 = vsub.f32 %v2624, %v3074
    %v3076 = vand.u32 %v3075, 4294901760
    %3077 = vmatmul.mubr.f32.gmra.mxu0 %v3076
    %v3078 = vpop.f32.mrf.mxu0
    %v3079 = vadd.f32 %v2974, %v3078
    %v3080 = vpop.f32.mrf.mxu0
    %3081 = vdwg.mxu0
    %3082 = vmatprep.subr.mxu0 0.0
    %3083 = vmatpush1.msra.mxu0 0.0
    %3084 = vmatprep.subr.mxu0 0.0
    %3085 = vmatpush1.msra.mxu0 0.0
    %3086 = vmatprep.subr.mxu0 0.0
    %3087 = vmatpush1.msra.mxu0 0.0
    %3088 = vmatprep.subr.mxu0 0.0
    %3089 = vmatpush1.msra.mxu0 0.0
    %3090 = vmatprep.subr.mxu0 0.0
    %3091 = vmatpush1.msra.mxu0 0.0
    %3092 = vmatprep.subr.mxu0 0.0
    %3093 = vmatpush1.msra.mxu0 0.0
    %3094 = vmatprep.subr.mxu0 0.0
    %3095 = vmatpush1.msra.mxu0 0.0
    %3096 = vmatprep.subr.mxu0 0.0
    %3097 = vmatpush1.msra.mxu0 0.0
    %3098 = vmatprep.subr.mxu0 0.0
    %v3099 = vand.u32 %v2612, 4294901760
    %v3100 = vsub.f32 %v2612, %v3099
    %v3101 = vand.u32 %v3100, 4294901760
    %3102 = vmatpush1.msra.mxu0 %v3101
    %3103 = vmatprep.subr.mxu0 0.0
    %v3104 = vand.u32 %v2611, 4294901760
    %v3105 = vsub.f32 %v2611, %v3104
    %v3106 = vand.u32 %v3105, 4294901760
    %3107 = vmatpush1.msra.mxu0 %v3106
    %3108 = vmatprep.subr.mxu0 0.0
    %v3109 = vand.u32 %v2610, 4294901760
    %v3110 = vsub.f32 %v2610, %v3109
    %v3111 = vand.u32 %v3110, 4294901760
    %3112 = vmatpush1.msra.mxu0 %v3111
    %3113 = vmatprep.subr.mxu0 0.0
    %v3114 = vand.u32 %v2609, 4294901760
    %v3115 = vsub.f32 %v2609, %v3114
    %v3116 = vand.u32 %v3115, 4294901760
    %3117 = vmatpush1.msra.mxu0 %v3116
    %3118 = vmatprep.subr.mxu0 0.0
    %v3119 = vand.u32 %v2608, 4294901760
    %v3120 = vsub.f32 %v2608, %v3119
    %v3121 = vand.u32 %v3120, 4294901760
    %3122 = vmatpush1.msra.mxu0 %v3121
    %3123 = vmatprep.subr.mxu0 0.0
    %v3124 = vand.u32 %v2607, 4294901760
    %v3125 = vsub.f32 %v2607, %v3124
    %v3126 = vand.u32 %v3125, 4294901760
    %3127 = vmatpush1.msra.mxu0 %v3126
    %3128 = vmatprep.subr.mxu0 0.0
    %v3129 = vand.u32 %v2606, 4294901760
    %v3130 = vsub.f32 %v2606, %v3129
    %v3131 = vand.u32 %v3130, 4294901760
    %3132 = vmatpush1.msra.mxu0 %v3131
    %3133 = vmatprep.subr.mxu0 0.0
    %v3134 = vand.u32 %v2605, 4294901760
    %v3135 = vsub.f32 %v2605, %v3134
    %v3136 = vand.u32 %v3135, 4294901760
    %3137 = vmatpush1.msra.mxu0 %v3136
    %3138 = vmatprep.subr.mxu0 0.0
    %3139 = vmatpush2.msra.mxu0 0.0
    %3140 = vmatprep.subr.mxu0 0.0
    %3141 = vmatpush2.msra.mxu0 0.0
    %3142 = vmatprep.subr.mxu0 0.0
    %3143 = vmatpush2.msra.mxu0 0.0
    %3144 = vmatprep.subr.mxu0 0.0
    %3145 = vmatpush2.msra.mxu0 0.0
    %3146 = vmatprep.subr.mxu0 0.0
    %3147 = vmatpush2.msra.mxu0 0.0
    %3148 = vmatprep.subr.mxu0 0.0
    %3149 = vmatpush2.msra.mxu0 0.0
    %3150 = vmatprep.subr.mxu0 0.0
    %3151 = vmatpush2.msra.mxu0 0.0
    %3152 = vmatprep.subr.mxu0 0.0
    %3153 = vmatpush2.msra.mxu0 0.0
    %3154 = vmatprep.subr.mxu0 0.0
    %3155 = vmatpush2.msra.mxu0 0.0
    %3156 = vmatprep.subr.mxu0 0.0
    %3157 = vmatpush2.msra.mxu0 0.0
    %3158 = vmatprep.subr.mxu0 0.0
    %3159 = vmatpush2.msra.mxu0 0.0
    %3160 = vmatprep.subr.mxu0 0.0
    %3161 = vmatpush2.msra.mxu0 0.0
    %3162 = vmatprep.subr.mxu0 0.0
    %3163 = vmatpush2.msra.mxu0 0.0
    %3164 = vmatprep.subr.mxu0 0.0
    %3165 = vmatpush2.msra.mxu0 0.0
    %3166 = vmatprep.subr.mxu0 0.0
    %3167 = vmatpush2.msra.mxu0 0.0
    %3168 = vmatprep.subr.mxu0 0.0
    %3169 = vmatpush2.msra.mxu0 0.0
    %3170 = vmatprep.mubr.f32.mxu0 0.0
    %v3171 = vand.u32 %v2615, 4294901760
    %3172 = vmatmul.mubr.f32.gmra.mxu0 %v3171
    %v3173 = vpop.f32.mrf.mxu0
    %v3174 = vadd.f32 %v3055, %v3173
    %v3175 = vpop.f32.mrf.mxu0
    %3176 = vmatprep.mubr.f32.mxu0 0.0
    %v3177 = vand.u32 %v2618, 4294901760
    %3178 = vmatmul.mubr.f32.gmra.mxu0 %v3177
    %v3179 = vpop.f32.mrf.mxu0
    %v3180 = vadd.f32 %v3063, %v3179
    %v3181 = vpop.f32.mrf.mxu0
    %3182 = vmatprep.mubr.f32.mxu0 0.0
    %v3183 = vand.u32 %v2621, 4294901760
    %3184 = vmatmul.mubr.f32.gmra.mxu0 %v3183
    %v3185 = vpop.f32.mrf.mxu0
    %v3186 = vadd.f32 %v3071, %v3185
    %v3187 = vpop.f32.mrf.mxu0
    %3188 = vmatprep.mubr.f32.mxu0 0.0
    %v3189 = vand.u32 %v2624, 4294901760
    %3190 = vmatmul.mubr.f32.gmra.mxu0 %v3189
    %v3191 = vpop.f32.mrf.mxu0
    %v3192 = vadd.f32 %v3079, %v3191
    %v3193 = vpop.f32.mrf.mxu0
    %3194 = vdwg.mxu0
    %3195 = vmatprep.subr.mxu0 0.0
    %3196 = vmatpush1.msra.mxu0 0.0
    %3197 = vmatprep.subr.mxu0 0.0
    %3198 = vmatpush1.msra.mxu0 0.0
    %3199 = vmatprep.subr.mxu0 0.0
    %3200 = vmatpush1.msra.mxu0 0.0
    %3201 = vmatprep.subr.mxu0 0.0
    %3202 = vmatpush1.msra.mxu0 0.0
    %3203 = vmatprep.subr.mxu0 0.0
    %3204 = vmatpush1.msra.mxu0 0.0
    %3205 = vmatprep.subr.mxu0 0.0
    %3206 = vmatpush1.msra.mxu0 0.0
    %3207 = vmatprep.subr.mxu0 0.0
    %3208 = vmatpush1.msra.mxu0 0.0
    %3209 = vmatprep.subr.mxu0 0.0
    %3210 = vmatpush1.msra.mxu0 0.0
    %3211 = vmatprep.subr.mxu0 0.0
    %v3212 = vand.u32 %v2612, 4294901760
    %3213 = vmatpush1.msra.mxu0 %v3212
    %3214 = vmatprep.subr.mxu0 0.0
    %v3215 = vand.u32 %v2611, 4294901760
    %3216 = vmatpush1.msra.mxu0 %v3215
    %3217 = vmatprep.subr.mxu0 0.0
    %v3218 = vand.u32 %v2610, 4294901760
    %3219 = vmatpush1.msra.mxu0 %v3218
    %3220 = vmatprep.subr.mxu0 0.0
    %v3221 = vand.u32 %v2609, 4294901760
    %3222 = vmatpush1.msra.mxu0 %v3221
    %3223 = vmatprep.subr.mxu0 0.0
    %v3224 = vand.u32 %v2608, 4294901760
    %3225 = vmatpush1.msra.mxu0 %v3224
    %3226 = vmatprep.subr.mxu0 0.0
    %v3227 = vand.u32 %v2607, 4294901760
    %3228 = vmatpush1.msra.mxu0 %v3227
    %3229 = vmatprep.subr.mxu0 0.0
    %v3230 = vand.u32 %v2606, 4294901760
    %3231 = vmatpush1.msra.mxu0 %v3230
    %3232 = vmatprep.subr.mxu0 0.0
    %v3233 = vand.u32 %v2605, 4294901760
    %3234 = vmatpush1.msra.mxu0 %v3233
    %3235 = vmatprep.subr.mxu0 0.0
    %3236 = vmatpush2.msra.mxu0 0.0
    %3237 = vmatprep.subr.mxu0 0.0
    %3238 = vmatpush2.msra.mxu0 0.0
    %3239 = vmatprep.subr.mxu0 0.0
    %3240 = vmatpush2.msra.mxu0 0.0
    %3241 = vmatprep.subr.mxu0 0.0
    %3242 = vmatpush2.msra.mxu0 0.0
    %3243 = vmatprep.subr.mxu0 0.0
    %3244 = vmatpush2.msra.mxu0 0.0
    %3245 = vmatprep.subr.mxu0 0.0
    %3246 = vmatpush2.msra.mxu0 0.0
    %3247 = vmatprep.subr.mxu0 0.0
    %3248 = vmatpush2.msra.mxu0 0.0
    %3249 = vmatprep.subr.mxu0 0.0
    %3250 = vmatpush2.msra.mxu0 0.0
    %3251 = vmatprep.subr.mxu0 0.0
    %3252 = vmatpush2.msra.mxu0 0.0
    %3253 = vmatprep.subr.mxu0 0.0
    %3254 = vmatpush2.msra.mxu0 0.0
    %3255 = vmatprep.subr.mxu0 0.0
    %3256 = vmatpush2.msra.mxu0 0.0
    %3257 = vmatprep.subr.mxu0 0.0
    %3258 = vmatpush2.msra.mxu0 0.0
    %3259 = vmatprep.subr.mxu0 0.0
    %3260 = vmatpush2.msra.mxu0 0.0
    %3261 = vmatprep.subr.mxu0 0.0
    %3262 = vmatpush2.msra.mxu0 0.0
    %3263 = vmatprep.subr.mxu0 0.0
    %3264 = vmatpush2.msra.mxu0 0.0
    %3265 = vmatprep.subr.mxu0 0.0
    %3266 = vmatpush2.msra.mxu0 0.0
    %3267 = vmatprep.mubr.f32.mxu0 0.0
    %v3268 = vand.u32 %v2615, 4294901760
    %3269 = vmatmul.mubr.f32.gmra.mxu0 %v3268
    %v3270 = vpop.f32.mrf.mxu0
    %v3271 = vadd.f32 %v3174, %v3270
    %v3272 = vpop.f32.mrf.mxu0
    %3273 = vmatprep.mubr.f32.mxu0 0.0
    %v3274 = vand.u32 %v2618, 4294901760
    %3275 = vmatmul.mubr.f32.gmra.mxu0 %v3274
    %v3276 = vpop.f32.mrf.mxu0
    %v3277 = vadd.f32 %v3180, %v3276
    %v3278 = vpop.f32.mrf.mxu0
    %3279 = vmatprep.mubr.f32.mxu0 0.0
    %v3280 = vand.u32 %v2621, 4294901760
    %3281 = vmatmul.mubr.f32.gmra.mxu0 %v3280
    %v3282 = vpop.f32.mrf.mxu0
    %v3283 = vadd.f32 %v3186, %v3282
    %v3284 = vpop.f32.mrf.mxu0
    %3285 = vmatprep.mubr.f32.mxu0 0.0
    %v3286 = vand.u32 %v2624, 4294901760
    %3287 = vmatmul.mubr.f32.gmra.mxu0 %v3286
    %v3288 = vpop.f32.mrf.mxu0
    %v3289 = vadd.f32 %v3192, %v3288
    %v3290 = vpop.f32.mrf.mxu0
    %3291 = vdwg.mxu0
    %3292 = vmatprep.subr.mxu0 0.0
    %3293 = vmatpush1.msra.mxu0 0.0
    %3294 = vmatprep.subr.mxu0 0.0
    %3295 = vmatpush1.msra.mxu0 0.0
    %3296 = vmatprep.subr.mxu0 0.0
    %3297 = vmatpush1.msra.mxu0 0.0
    %3298 = vmatprep.subr.mxu0 0.0
    %3299 = vmatpush1.msra.mxu0 0.0
    %3300 = vmatprep.subr.mxu0 0.0
    %3301 = vmatpush1.msra.mxu0 0.0
    %3302 = vmatprep.subr.mxu0 0.0
    %3303 = vmatpush1.msra.mxu0 0.0
    %3304 = vmatprep.subr.mxu0 0.0
    %3305 = vmatpush1.msra.mxu0 0.0
    %3306 = vmatprep.subr.mxu0 0.0
    %3307 = vmatpush1.msra.mxu0 0.0
    %3308 = vmatprep.subr.mxu0 0.0
    %3309 = vmatpush1.msra.mxu0 0.0
    %3310 = vmatprep.subr.mxu0 0.0
    %3311 = vmatpush1.msra.mxu0 0.0
    %3312 = vmatprep.subr.mxu0 0.0
    %3313 = vmatpush1.msra.mxu0 0.0
    %3314 = vmatprep.subr.mxu0 0.0
    %3315 = vmatpush1.msra.mxu0 0.0
    %3316 = vmatprep.subr.mxu0 0.0
    %v3317 = vand.u32 %v2604, 4294901760
    %3318 = vmatpush1.msra.mxu0 %v3317
    %3319 = vmatprep.subr.mxu0 0.0
    %v3320 = vand.u32 %v2603, 4294901760
    %3321 = vmatpush1.msra.mxu0 %v3320
    %3322 = vmatprep.subr.mxu0 0.0
    %v3323 = vand.u32 %v2602, 4294901760
    %3324 = vmatpush1.msra.mxu0 %v3323
    %3325 = vmatprep.subr.mxu0 0.0
    %v3326 = vand.u32 %v2601, 4294901760
    %3327 = vmatpush1.msra.mxu0 %v3326
    %3328 = vmatprep.subr.mxu0 0.0
    %3329 = vmatpush2.msra.mxu0 0.0
    %3330 = vmatprep.subr.mxu0 0.0
    %3331 = vmatpush2.msra.mxu0 0.0
    %3332 = vmatprep.subr.mxu0 0.0
    %3333 = vmatpush2.msra.mxu0 0.0
    %3334 = vmatprep.subr.mxu0 0.0
    %3335 = vmatpush2.msra.mxu0 0.0
    %3336 = vmatprep.subr.mxu0 0.0
    %3337 = vmatpush2.msra.mxu0 0.0
    %3338 = vmatprep.subr.mxu0 0.0
    %3339 = vmatpush2.msra.mxu0 0.0
    %3340 = vmatprep.subr.mxu0 0.0
    %3341 = vmatpush2.msra.mxu0 0.0
    %3342 = vmatprep.subr.mxu0 0.0
    %3343 = vmatpush2.msra.mxu0 0.0
    %3344 = vmatprep.subr.mxu0 0.0
    %3345 = vmatpush2.msra.mxu0 0.0
    %3346 = vmatprep.subr.mxu0 0.0
    %3347 = vmatpush2.msra.mxu0 0.0
    %3348 = vmatprep.subr.mxu0 0.0
    %3349 = vmatpush2.msra.mxu0 0.0
    %3350 = vmatprep.subr.mxu0 0.0
    %3351 = vmatpush2.msra.mxu0 0.0
    %3352 = vmatprep.subr.mxu0 0.0
    %3353 = vmatpush2.msra.mxu0 0.0
    %3354 = vmatprep.subr.mxu0 0.0
    %3355 = vmatpush2.msra.mxu0 0.0
    %3356 = vmatprep.subr.mxu0 0.0
    %3357 = vmatpush2.msra.mxu0 0.0
    %3358 = vmatprep.subr.mxu0 0.0
    %3359 = vmatpush2.msra.mxu0 0.0
    %3360 = vmatprep.mubr.f32.mxu0 0.0
    %v3361 = vand.u32 %v1314, 4294901760
    %v3362 = vsub.f32 %v1314, %v3361
    %v3363 = vand.u32 %v3362, 4294901760
    %v3364 = vsub.f32 %v3362, %v3363
    %v3365 = vand.u32 %v3364, 4294901760
    %3366 = vmatmul.mubr.f32.gmra.mxu0 %v3365
    %v3367 = vpop.f32.mrf.mxu0
    %v3368 = vadd.f32 %v3271, %v3367
    %v3369 = vpop.f32.mrf.mxu0
    %3370 = vmatprep.mubr.f32.mxu0 0.0
    %v3371 = vand.u32 %v1317, 4294901760
    %v3372 = vsub.f32 %v1317, %v3371
    %v3373 = vand.u32 %v3372, 4294901760
    %v3374 = vsub.f32 %v3372, %v3373
    %v3375 = vand.u32 %v3374, 4294901760
    %3376 = vmatmul.mubr.f32.gmra.mxu0 %v3375
    %v3377 = vpop.f32.mrf.mxu0
    %v3378 = vadd.f32 %v3277, %v3377
    %v3379 = vpop.f32.mrf.mxu0
    %3380 = vmatprep.mubr.f32.mxu0 0.0
    %v3381 = vand.u32 %v1320, 4294901760
    %v3382 = vsub.f32 %v1320, %v3381
    %v3383 = vand.u32 %v3382, 4294901760
    %v3384 = vsub.f32 %v3382, %v3383
    %v3385 = vand.u32 %v3384, 4294901760
    %3386 = vmatmul.mubr.f32.gmra.mxu0 %v3385
    %v3387 = vpop.f32.mrf.mxu0
    %v3388 = vadd.f32 %v3283, %v3387
    %v3389 = vpop.f32.mrf.mxu0
    %3390 = vmatprep.mubr.f32.mxu0 0.0
    %v3391 = vand.u32 %v1323, 4294901760
    %v3392 = vsub.f32 %v1323, %v3391
    %v3393 = vand.u32 %v3392, 4294901760
    %v3394 = vsub.f32 %v3392, %v3393
    %v3395 = vand.u32 %v3394, 4294901760
    %3396 = vmatmul.mubr.f32.gmra.mxu0 %v3395
    %v3397 = vpop.f32.mrf.mxu0
    %v3398 = vadd.f32 %v3289, %v3397
    %v3399 = vpop.f32.mrf.mxu0
    %3400 = vdwg.mxu0
    %3401 = vmatprep.subr.mxu0 0.0
    %3402 = vmatpush1.msra.mxu0 0.0
    %3403 = vmatprep.subr.mxu0 0.0
    %3404 = vmatpush1.msra.mxu0 0.0
    %3405 = vmatprep.subr.mxu0 0.0
    %3406 = vmatpush1.msra.mxu0 0.0
    %3407 = vmatprep.subr.mxu0 0.0
    %3408 = vmatpush1.msra.mxu0 0.0
    %3409 = vmatprep.subr.mxu0 0.0
    %3410 = vmatpush1.msra.mxu0 0.0
    %3411 = vmatprep.subr.mxu0 0.0
    %3412 = vmatpush1.msra.mxu0 0.0
    %3413 = vmatprep.subr.mxu0 0.0
    %3414 = vmatpush1.msra.mxu0 0.0
    %3415 = vmatprep.subr.mxu0 0.0
    %3416 = vmatpush1.msra.mxu0 0.0
    %3417 = vmatprep.subr.mxu0 0.0
    %3418 = vmatpush1.msra.mxu0 0.0
    %3419 = vmatprep.subr.mxu0 0.0
    %3420 = vmatpush1.msra.mxu0 0.0
    %3421 = vmatprep.subr.mxu0 0.0
    %3422 = vmatpush1.msra.mxu0 0.0
    %3423 = vmatprep.subr.mxu0 0.0
    %3424 = vmatpush1.msra.mxu0 0.0
    %3425 = vmatprep.subr.mxu0 0.0
    %v3426 = vand.u32 %v2604, 4294901760
    %v3427 = vsub.f32 %v2604, %v3426
    %v3428 = vand.u32 %v3427, 4294901760
    %v3429 = vsub.f32 %v3427, %v3428
    %v3430 = vand.u32 %v3429, 4294901760
    %3431 = vmatpush1.msra.mxu0 %v3430
    %3432 = vmatprep.subr.mxu0 0.0
    %v3433 = vand.u32 %v2603, 4294901760
    %v3434 = vsub.f32 %v2603, %v3433
    %v3435 = vand.u32 %v3434, 4294901760
    %v3436 = vsub.f32 %v3434, %v3435
    %v3437 = vand.u32 %v3436, 4294901760
    %3438 = vmatpush1.msra.mxu0 %v3437
    %3439 = vmatprep.subr.mxu0 0.0
    %v3440 = vand.u32 %v2602, 4294901760
    %v3441 = vsub.f32 %v2602, %v3440
    %v3442 = vand.u32 %v3441, 4294901760
    %v3443 = vsub.f32 %v3441, %v3442
    %v3444 = vand.u32 %v3443, 4294901760
    %3445 = vmatpush1.msra.mxu0 %v3444
    %3446 = vmatprep.subr.mxu0 0.0
    %v3447 = vand.u32 %v2601, 4294901760
    %v3448 = vsub.f32 %v2601, %v3447
    %v3449 = vand.u32 %v3448, 4294901760
    %v3450 = vsub.f32 %v3448, %v3449
    %v3451 = vand.u32 %v3450, 4294901760
    %3452 = vmatpush1.msra.mxu0 %v3451
    %3453 = vmatprep.subr.mxu0 0.0
    %3454 = vmatpush2.msra.mxu0 0.0
    %3455 = vmatprep.subr.mxu0 0.0
    %3456 = vmatpush2.msra.mxu0 0.0
    %3457 = vmatprep.subr.mxu0 0.0
    %3458 = vmatpush2.msra.mxu0 0.0
    %3459 = vmatprep.subr.mxu0 0.0
    %3460 = vmatpush2.msra.mxu0 0.0
    %3461 = vmatprep.subr.mxu0 0.0
    %3462 = vmatpush2.msra.mxu0 0.0
    %3463 = vmatprep.subr.mxu0 0.0
    %3464 = vmatpush2.msra.mxu0 0.0
    %3465 = vmatprep.subr.mxu0 0.0
    %3466 = vmatpush2.msra.mxu0 0.0
    %3467 = vmatprep.subr.mxu0 0.0
    %3468 = vmatpush2.msra.mxu0 0.0
    %3469 = vmatprep.subr.mxu0 0.0
    %3470 = vmatpush2.msra.mxu0 0.0
    %3471 = vmatprep.subr.mxu0 0.0
    %3472 = vmatpush2.msra.mxu0 0.0
    %3473 = vmatprep.subr.mxu0 0.0
    %3474 = vmatpush2.msra.mxu0 0.0
    %3475 = vmatprep.subr.mxu0 0.0
    %3476 = vmatpush2.msra.mxu0 0.0
    %3477 = vmatprep.subr.mxu0 0.0
    %3478 = vmatpush2.msra.mxu0 0.0
    %3479 = vmatprep.subr.mxu0 0.0
    %3480 = vmatpush2.msra.mxu0 0.0
    %3481 = vmatprep.subr.mxu0 0.0
    %3482 = vmatpush2.msra.mxu0 0.0
    %3483 = vmatprep.subr.mxu0 0.0
    %3484 = vmatpush2.msra.mxu0 0.0
    %3485 = vmatprep.mubr.f32.mxu0 0.0
    %v3486 = vand.u32 %v1314, 4294901760
    %3487 = vmatmul.mubr.f32.gmra.mxu0 %v3486
    %v3488 = vpop.f32.mrf.mxu0
    %v3489 = vadd.f32 %v3368, %v3488
    %v3490 = vpop.f32.mrf.mxu0
    %3491 = vmatprep.mubr.f32.mxu0 0.0
    %v3492 = vand.u32 %v1317, 4294901760
    %3493 = vmatmul.mubr.f32.gmra.mxu0 %v3492
    %v3494 = vpop.f32.mrf.mxu0
    %v3495 = vadd.f32 %v3378, %v3494
    %v3496 = vpop.f32.mrf.mxu0
    %3497 = vmatprep.mubr.f32.mxu0 0.0
    %v3498 = vand.u32 %v1320, 4294901760
    %3499 = vmatmul.mubr.f32.gmra.mxu0 %v3498
    %v3500 = vpop.f32.mrf.mxu0
    %v3501 = vadd.f32 %v3388, %v3500
    %v3502 = vpop.f32.mrf.mxu0
    %3503 = vmatprep.mubr.f32.mxu0 0.0
    %v3504 = vand.u32 %v1323, 4294901760
    %3505 = vmatmul.mubr.f32.gmra.mxu0 %v3504
    %v3506 = vpop.f32.mrf.mxu0
    %v3507 = vadd.f32 %v3398, %v3506
    %v3508 = vpop.f32.mrf.mxu0
    %3509 = vdwg.mxu0
    %3510 = vmatprep.subr.mxu0 0.0
    %3511 = vmatpush1.msra.mxu0 0.0
    %3512 = vmatprep.subr.mxu0 0.0
    %3513 = vmatpush1.msra.mxu0 0.0
    %3514 = vmatprep.subr.mxu0 0.0
    %3515 = vmatpush1.msra.mxu0 0.0
    %3516 = vmatprep.subr.mxu0 0.0
    %3517 = vmatpush1.msra.mxu0 0.0
    %3518 = vmatprep.subr.mxu0 0.0
    %3519 = vmatpush1.msra.mxu0 0.0
    %3520 = vmatprep.subr.mxu0 0.0
    %3521 = vmatpush1.msra.mxu0 0.0
    %3522 = vmatprep.subr.mxu0 0.0
    %3523 = vmatpush1.msra.mxu0 0.0
    %3524 = vmatprep.subr.mxu0 0.0
    %3525 = vmatpush1.msra.mxu0 0.0
    %3526 = vmatprep.subr.mxu0 0.0
    %3527 = vmatpush1.msra.mxu0 0.0
    %3528 = vmatprep.subr.mxu0 0.0
    %3529 = vmatpush1.msra.mxu0 0.0
    %3530 = vmatprep.subr.mxu0 0.0
    %3531 = vmatpush1.msra.mxu0 0.0
    %3532 = vmatprep.subr.mxu0 0.0
    %3533 = vmatpush1.msra.mxu0 0.0
    %3534 = vmatprep.subr.mxu0 0.0
    %v3535 = vand.u32 %v2604, 4294901760
    %v3536 = vsub.f32 %v2604, %v3535
    %3537 = vmatpush1.msra.mxu0 %v3536
    %3538 = vmatprep.subr.mxu0 0.0
    %v3539 = vand.u32 %v2603, 4294901760
    %v3540 = vsub.f32 %v2603, %v3539
    %3541 = vmatpush1.msra.mxu0 %v3540
    %3542 = vmatprep.subr.mxu0 0.0
    %v3543 = vand.u32 %v2602, 4294901760
    %v3544 = vsub.f32 %v2602, %v3543
    %3545 = vmatpush1.msra.mxu0 %v3544
    %3546 = vmatprep.subr.mxu0 0.0
    %v3547 = vand.u32 %v2601, 4294901760
    %v3548 = vsub.f32 %v2601, %v3547
    %3549 = vmatpush1.msra.mxu0 %v3548
    %3550 = vmatprep.subr.mxu0 0.0
    %3551 = vmatpush2.msra.mxu0 0.0
    %3552 = vmatprep.subr.mxu0 0.0
    %3553 = vmatpush2.msra.mxu0 0.0
    %3554 = vmatprep.subr.mxu0 0.0
    %3555 = vmatpush2.msra.mxu0 0.0
    %3556 = vmatprep.subr.mxu0 0.0
    %3557 = vmatpush2.msra.mxu0 0.0
    %3558 = vmatprep.subr.mxu0 0.0
    %3559 = vmatpush2.msra.mxu0 0.0
    %3560 = vmatprep.subr.mxu0 0.0
    %3561 = vmatpush2.msra.mxu0 0.0
    %3562 = vmatprep.subr.mxu0 0.0
    %3563 = vmatpush2.msra.mxu0 0.0
    %3564 = vmatprep.subr.mxu0 0.0
    %3565 = vmatpush2.msra.mxu0 0.0
    %3566 = vmatprep.subr.mxu0 0.0
    %3567 = vmatpush2.msra.mxu0 0.0
    %3568 = vmatprep.subr.mxu0 0.0
    %3569 = vmatpush2.msra.mxu0 0.0
    %3570 = vmatprep.subr.mxu0 0.0
    %3571 = vmatpush2.msra.mxu0 0.0
    %3572 = vmatprep.subr.mxu0 0.0
    %3573 = vmatpush2.msra.mxu0 0.0
    %3574 = vmatprep.subr.mxu0 0.0
    %3575 = vmatpush2.msra.mxu0 0.0
    %3576 = vmatprep.subr.mxu0 0.0
    %3577 = vmatpush2.msra.mxu0 0.0
    %3578 = vmatprep.subr.mxu0 0.0
    %3579 = vmatpush2.msra.mxu0 0.0
    %3580 = vmatprep.subr.mxu0 0.0
    %3581 = vmatpush2.msra.mxu0 0.0
    %3582 = vmatprep.mubr.f32.mxu0 0.0
    %v3583 = vand.u32 %v1314, 4294901760
    %v3584 = vsub.f32 %v1314, %v3583
    %3585 = vmatmul.mubr.f32.gmra.mxu0 %v3584
    %v3586 = vpop.f32.mrf.mxu0
    %v3587 = vadd.f32 %v3489, %v3586
    %v3588 = vpop.f32.mrf.mxu0
    %3589 = vmatprep.mubr.f32.mxu0 0.0
    %v3590 = vand.u32 %v1317, 4294901760
    %v3591 = vsub.f32 %v1317, %v3590
    %3592 = vmatmul.mubr.f32.gmra.mxu0 %v3591
    %v3593 = vpop.f32.mrf.mxu0
    %v3594 = vadd.f32 %v3495, %v3593
    %v3595 = vpop.f32.mrf.mxu0
    %3596 = vmatprep.mubr.f32.mxu0 0.0
    %v3597 = vand.u32 %v1320, 4294901760
    %v3598 = vsub.f32 %v1320, %v3597
    %3599 = vmatmul.mubr.f32.gmra.mxu0 %v3598
    %v3600 = vpop.f32.mrf.mxu0
    %v3601 = vadd.f32 %v3501, %v3600
    %v3602 = vpop.f32.mrf.mxu0
    %3603 = vmatprep.mubr.f32.mxu0 0.0
    %v3604 = vand.u32 %v1323, 4294901760
    %v3605 = vsub.f32 %v1323, %v3604
    %3606 = vmatmul.mubr.f32.gmra.mxu0 %v3605
    %v3607 = vpop.f32.mrf.mxu0
    %v3608 = vadd.f32 %v3507, %v3607
    %v3609 = vpop.f32.mrf.mxu0
    %3610 = vdwg.mxu0
    %3611 = vmatprep.subr.mxu0 0.0
    %3612 = vmatpush1.msra.mxu0 0.0
    %3613 = vmatprep.subr.mxu0 0.0
    %3614 = vmatpush1.msra.mxu0 0.0
    %3615 = vmatprep.subr.mxu0 0.0
    %3616 = vmatpush1.msra.mxu0 0.0
    %3617 = vmatprep.subr.mxu0 0.0
    %3618 = vmatpush1.msra.mxu0 0.0
    %3619 = vmatprep.subr.mxu0 0.0
    %3620 = vmatpush1.msra.mxu0 0.0
    %3621 = vmatprep.subr.mxu0 0.0
    %3622 = vmatpush1.msra.mxu0 0.0
    %3623 = vmatprep.subr.mxu0 0.0
    %3624 = vmatpush1.msra.mxu0 0.0
    %3625 = vmatprep.subr.mxu0 0.0
    %3626 = vmatpush1.msra.mxu0 0.0
    %3627 = vmatprep.subr.mxu0 0.0
    %3628 = vmatpush1.msra.mxu0 0.0
    %3629 = vmatprep.subr.mxu0 0.0
    %3630 = vmatpush1.msra.mxu0 0.0
    %3631 = vmatprep.subr.mxu0 0.0
    %3632 = vmatpush1.msra.mxu0 0.0
    %3633 = vmatprep.subr.mxu0 0.0
    %3634 = vmatpush1.msra.mxu0 0.0
    %3635 = vmatprep.subr.mxu0 0.0
    %v3636 = vand.u32 %v2604, 4294901760
    %3637 = vmatpush1.msra.mxu0 %v3636
    %3638 = vmatprep.subr.mxu0 0.0
    %v3639 = vand.u32 %v2603, 4294901760
    %3640 = vmatpush1.msra.mxu0 %v3639
    %3641 = vmatprep.subr.mxu0 0.0
    %v3642 = vand.u32 %v2602, 4294901760
    %3643 = vmatpush1.msra.mxu0 %v3642
    %3644 = vmatprep.subr.mxu0 0.0
    %v3645 = vand.u32 %v2601, 4294901760
    %3646 = vmatpush1.msra.mxu0 %v3645
    %3647 = vmatprep.subr.mxu0 0.0
    %3648 = vmatpush2.msra.mxu0 0.0
    %3649 = vmatprep.subr.mxu0 0.0
    %3650 = vmatpush2.msra.mxu0 0.0
    %3651 = vmatprep.subr.mxu0 0.0
    %3652 = vmatpush2.msra.mxu0 0.0
    %3653 = vmatprep.subr.mxu0 0.0
    %3654 = vmatpush2.msra.mxu0 0.0
    %3655 = vmatprep.subr.mxu0 0.0
    %3656 = vmatpush2.msra.mxu0 0.0
    %3657 = vmatprep.subr.mxu0 0.0
    %3658 = vmatpush2.msra.mxu0 0.0
    %3659 = vmatprep.subr.mxu0 0.0
    %3660 = vmatpush2.msra.mxu0 0.0
    %3661 = vmatprep.subr.mxu0 0.0
    %3662 = vmatpush2.msra.mxu0 0.0
    %3663 = vmatprep.subr.mxu0 0.0
    %3664 = vmatpush2.msra.mxu0 0.0
    %3665 = vmatprep.subr.mxu0 0.0
    %3666 = vmatpush2.msra.mxu0 0.0
    %3667 = vmatprep.subr.mxu0 0.0
    %3668 = vmatpush2.msra.mxu0 0.0
    %3669 = vmatprep.subr.mxu0 0.0
    %3670 = vmatpush2.msra.mxu0 0.0
    %3671 = vmatprep.subr.mxu0 0.0
    %3672 = vmatpush2.msra.mxu0 0.0
    %3673 = vmatprep.subr.mxu0 0.0
    %3674 = vmatpush2.msra.mxu0 0.0
    %3675 = vmatprep.subr.mxu0 0.0
    %3676 = vmatpush2.msra.mxu0 0.0
    %3677 = vmatprep.subr.mxu0 0.0
    %3678 = vmatpush2.msra.mxu0 0.0
    %3679 = vmatprep.mubr.f32.mxu0 0.0
    %v3680 = vand.u32 %v1314, 4294901760
    %v3681 = vsub.f32 %v1314, %v3680
    %v3682 = vand.u32 %v3681, 4294901760
    %3683 = vmatmul.mubr.f32.gmra.mxu0 %v3682
    %v3684 = vpop.f32.mrf.mxu0
    %v3685 = vadd.f32 %v3587, %v3684
    %v3686 = vpop.f32.mrf.mxu0
    %3687 = vmatprep.mubr.f32.mxu0 0.0
    %v3688 = vand.u32 %v1317, 4294901760
    %v3689 = vsub.f32 %v1317, %v3688
    %v3690 = vand.u32 %v3689, 4294901760
    %3691 = vmatmul.mubr.f32.gmra.mxu0 %v3690
    %v3692 = vpop.f32.mrf.mxu0
    %v3693 = vadd.f32 %v3594, %v3692
    %v3694 = vpop.f32.mrf.mxu0
    %3695 = vmatprep.mubr.f32.mxu0 0.0
    %v3696 = vand.u32 %v1320, 4294901760
    %v3697 = vsub.f32 %v1320, %v3696
    %v3698 = vand.u32 %v3697, 4294901760
    %3699 = vmatmul.mubr.f32.gmra.mxu0 %v3698
    %v3700 = vpop.f32.mrf.mxu0
    %v3701 = vadd.f32 %v3601, %v3700
    %v3702 = vpop.f32.mrf.mxu0
    %3703 = vmatprep.mubr.f32.mxu0 0.0
    %v3704 = vand.u32 %v1323, 4294901760
    %v3705 = vsub.f32 %v1323, %v3704
    %v3706 = vand.u32 %v3705, 4294901760
    %3707 = vmatmul.mubr.f32.gmra.mxu0 %v3706
    %v3708 = vpop.f32.mrf.mxu0
    %v3709 = vadd.f32 %v3608, %v3708
    %v3710 = vpop.f32.mrf.mxu0
    %3711 = vdwg.mxu0
    %3712 = vmatprep.subr.mxu0 0.0
    %3713 = vmatpush1.msra.mxu0 0.0
    %3714 = vmatprep.subr.mxu0 0.0
    %3715 = vmatpush1.msra.mxu0 0.0
    %3716 = vmatprep.subr.mxu0 0.0
    %3717 = vmatpush1.msra.mxu0 0.0
    %3718 = vmatprep.subr.mxu0 0.0
    %3719 = vmatpush1.msra.mxu0 0.0
    %3720 = vmatprep.subr.mxu0 0.0
    %3721 = vmatpush1.msra.mxu0 0.0
    %3722 = vmatprep.subr.mxu0 0.0
    %3723 = vmatpush1.msra.mxu0 0.0
    %3724 = vmatprep.subr.mxu0 0.0
    %3725 = vmatpush1.msra.mxu0 0.0
    %3726 = vmatprep.subr.mxu0 0.0
    %3727 = vmatpush1.msra.mxu0 0.0
    %3728 = vmatprep.subr.mxu0 0.0
    %3729 = vmatpush1.msra.mxu0 0.0
    %3730 = vmatprep.subr.mxu0 0.0
    %3731 = vmatpush1.msra.mxu0 0.0
    %3732 = vmatprep.subr.mxu0 0.0
    %3733 = vmatpush1.msra.mxu0 0.0
    %3734 = vmatprep.subr.mxu0 0.0
    %3735 = vmatpush1.msra.mxu0 0.0
    %3736 = vmatprep.subr.mxu0 0.0
    %v3737 = vand.u32 %v2604, 4294901760
    %v3738 = vsub.f32 %v2604, %v3737
    %v3739 = vand.u32 %v3738, 4294901760
    %3740 = vmatpush1.msra.mxu0 %v3739
    %3741 = vmatprep.subr.mxu0 0.0
    %v3742 = vand.u32 %v2603, 4294901760
    %v3743 = vsub.f32 %v2603, %v3742
    %v3744 = vand.u32 %v3743, 4294901760
    %3745 = vmatpush1.msra.mxu0 %v3744
    %3746 = vmatprep.subr.mxu0 0.0
    %v3747 = vand.u32 %v2602, 4294901760
    %v3748 = vsub.f32 %v2602, %v3747
    %v3749 = vand.u32 %v3748, 4294901760
    %3750 = vmatpush1.msra.mxu0 %v3749
    %3751 = vmatprep.subr.mxu0 0.0
    %v3752 = vand.u32 %v2601, 4294901760
    %v3753 = vsub.f32 %v2601, %v3752
    %v3754 = vand.u32 %v3753, 4294901760
    %3755 = vmatpush1.msra.mxu0 %v3754
    %3756 = vmatprep.subr.mxu0 0.0
    %3757 = vmatpush2.msra.mxu0 0.0
    %3758 = vmatprep.subr.mxu0 0.0
    %3759 = vmatpush2.msra.mxu0 0.0
    %3760 = vmatprep.subr.mxu0 0.0
    %3761 = vmatpush2.msra.mxu0 0.0
    %3762 = vmatprep.subr.mxu0 0.0
    %3763 = vmatpush2.msra.mxu0 0.0
    %3764 = vmatprep.subr.mxu0 0.0
    %3765 = vmatpush2.msra.mxu0 0.0
    %3766 = vmatprep.subr.mxu0 0.0
    %3767 = vmatpush2.msra.mxu0 0.0
    %3768 = vmatprep.subr.mxu0 0.0
    %3769 = vmatpush2.msra.mxu0 0.0
    %3770 = vmatprep.subr.mxu0 0.0
    %3771 = vmatpush2.msra.mxu0 0.0
    %3772 = vmatprep.subr.mxu0 0.0
    %3773 = vmatpush2.msra.mxu0 0.0
    %3774 = vmatprep.subr.mxu0 0.0
    %3775 = vmatpush2.msra.mxu0 0.0
    %3776 = vmatprep.subr.mxu0 0.0
    %3777 = vmatpush2.msra.mxu0 0.0
    %3778 = vmatprep.subr.mxu0 0.0
    %3779 = vmatpush2.msra.mxu0 0.0
    %3780 = vmatprep.subr.mxu0 0.0
    %3781 = vmatpush2.msra.mxu0 0.0
    %3782 = vmatprep.subr.mxu0 0.0
    %3783 = vmatpush2.msra.mxu0 0.0
    %3784 = vmatprep.subr.mxu0 0.0
    %3785 = vmatpush2.msra.mxu0 0.0
    %3786 = vmatprep.subr.mxu0 0.0
    %3787 = vmatpush2.msra.mxu0 0.0
    %3788 = vmatprep.mubr.f32.mxu0 0.0
    %v3789 = vand.u32 %v1314, 4294901760
    %3790 = vmatmul.mubr.f32.gmra.mxu0 %v3789
    %v3791 = vpop.f32.mrf.mxu0
    %v3792 = vadd.f32 %v3685, %v3791
    %v3793 = vpop.f32.mrf.mxu0
    %3794 = vmatprep.mubr.f32.mxu0 0.0
    %v3795 = vand.u32 %v1317, 4294901760
    %3796 = vmatmul.mubr.f32.gmra.mxu0 %v3795
    %v3797 = vpop.f32.mrf.mxu0
    %v3798 = vadd.f32 %v3693, %v3797
    %v3799 = vpop.f32.mrf.mxu0
    %3800 = vmatprep.mubr.f32.mxu0 0.0
    %v3801 = vand.u32 %v1320, 4294901760
    %3802 = vmatmul.mubr.f32.gmra.mxu0 %v3801
    %v3803 = vpop.f32.mrf.mxu0
    %v3804 = vadd.f32 %v3701, %v3803
    %v3805 = vpop.f32.mrf.mxu0
    %3806 = vmatprep.mubr.f32.mxu0 0.0
    %v3807 = vand.u32 %v1323, 4294901760
    %3808 = vmatmul.mubr.f32.gmra.mxu0 %v3807
    %v3809 = vpop.f32.mrf.mxu0
    %v3810 = vadd.f32 %v3709, %v3809
    %v3811 = vpop.f32.mrf.mxu0
    %3812 = vdwg.mxu0
    %3813 = vmatprep.subr.mxu0 0.0
    %3814 = vmatpush1.msra.mxu0 0.0
    %3815 = vmatprep.subr.mxu0 0.0
    %3816 = vmatpush1.msra.mxu0 0.0
    %3817 = vmatprep.subr.mxu0 0.0
    %3818 = vmatpush1.msra.mxu0 0.0
    %3819 = vmatprep.subr.mxu0 0.0
    %3820 = vmatpush1.msra.mxu0 0.0
    %3821 = vmatprep.subr.mxu0 0.0
    %3822 = vmatpush1.msra.mxu0 0.0
    %3823 = vmatprep.subr.mxu0 0.0
    %3824 = vmatpush1.msra.mxu0 0.0
    %3825 = vmatprep.subr.mxu0 0.0
    %3826 = vmatpush1.msra.mxu0 0.0
    %3827 = vmatprep.subr.mxu0 0.0
    %3828 = vmatpush1.msra.mxu0 0.0
    %3829 = vmatprep.subr.mxu0 0.0
    %3830 = vmatpush1.msra.mxu0 0.0
    %3831 = vmatprep.subr.mxu0 0.0
    %3832 = vmatpush1.msra.mxu0 0.0
    %3833 = vmatprep.subr.mxu0 0.0
    %3834 = vmatpush1.msra.mxu0 0.0
    %3835 = vmatprep.subr.mxu0 0.0
    %3836 = vmatpush1.msra.mxu0 0.0
    %3837 = vmatprep.subr.mxu0 0.0
    %v3838 = vand.u32 %v2604, 4294901760
    %3839 = vmatpush1.msra.mxu0 %v3838
    %3840 = vmatprep.subr.mxu0 0.0
    %v3841 = vand.u32 %v2603, 4294901760
    %3842 = vmatpush1.msra.mxu0 %v3841
    %3843 = vmatprep.subr.mxu0 0.0
    %v3844 = vand.u32 %v2602, 4294901760
    %3845 = vmatpush1.msra.mxu0 %v3844
    %3846 = vmatprep.subr.mxu0 0.0
    %v3847 = vand.u32 %v2601, 4294901760
    %3848 = vmatpush1.msra.mxu0 %v3847
    %3849 = vmatprep.subr.mxu0 0.0
    %3850 = vmatpush2.msra.mxu0 0.0
    %3851 = vmatprep.subr.mxu0 0.0
    %3852 = vmatpush2.msra.mxu0 0.0
    %3853 = vmatprep.subr.mxu0 0.0
    %3854 = vmatpush2.msra.mxu0 0.0
    %3855 = vmatprep.subr.mxu0 0.0
    %3856 = vmatpush2.msra.mxu0 0.0
    %3857 = vmatprep.subr.mxu0 0.0
    %3858 = vmatpush2.msra.mxu0 0.0
    %3859 = vmatprep.subr.mxu0 0.0
    %3860 = vmatpush2.msra.mxu0 0.0
    %3861 = vmatprep.subr.mxu0 0.0
    %3862 = vmatpush2.msra.mxu0 0.0
    %3863 = vmatprep.subr.mxu0 0.0
    %3864 = vmatpush2.msra.mxu0 0.0
    %3865 = vmatprep.subr.mxu0 0.0
    %3866 = vmatpush2.msra.mxu0 0.0
    %3867 = vmatprep.subr.mxu0 0.0
    %3868 = vmatpush2.msra.mxu0 0.0
    %3869 = vmatprep.subr.mxu0 0.0
    %3870 = vmatpush2.msra.mxu0 0.0
    %3871 = vmatprep.subr.mxu0 0.0
    %3872 = vmatpush2.msra.mxu0 0.0
    %3873 = vmatprep.subr.mxu0 0.0
    %3874 = vmatpush2.msra.mxu0 0.0
    %3875 = vmatprep.subr.mxu0 0.0
    %3876 = vmatpush2.msra.mxu0 0.0
    %3877 = vmatprep.subr.mxu0 0.0
    %3878 = vmatpush2.msra.mxu0 0.0
    %3879 = vmatprep.subr.mxu0 0.0
    %3880 = vmatpush2.msra.mxu0 0.0
    %3881 = vmatprep.mubr.f32.mxu0 0.0
    %v3882 = vand.u32 %v1314, 4294901760
    %3883 = vmatmul.mubr.f32.gmra.mxu0 %v3882
    %v3884 = vpop.f32.mrf.mxu0
    %v3885 = vadd.f32 %v3792, %v3884
    %v3886 = vpop.f32.mrf.mxu0
    %3887 = vmatprep.mubr.f32.mxu0 0.0
    %v3888 = vand.u32 %v1317, 4294901760
    %3889 = vmatmul.mubr.f32.gmra.mxu0 %v3888
    %v3890 = vpop.f32.mrf.mxu0
    %v3891 = vadd.f32 %v3798, %v3890
    %v3892 = vpop.f32.mrf.mxu0
    %3893 = vmatprep.mubr.f32.mxu0 0.0
    %v3894 = vand.u32 %v1320, 4294901760
    %3895 = vmatmul.mubr.f32.gmra.mxu0 %v3894
    %v3896 = vpop.f32.mrf.mxu0
    %v3897 = vadd.f32 %v3804, %v3896
    %v3898 = vpop.f32.mrf.mxu0
    %3899 = vmatprep.mubr.f32.mxu0 0.0
    %v3900 = vand.u32 %v1323, 4294901760
    %3901 = vmatmul.mubr.f32.gmra.mxu0 %v3900
    %v3902 = vpop.f32.mrf.mxu0
    %v3903 = vadd.f32 %v3810, %v3902
    %v3904 = vpop.f32.mrf.mxu0
    %3905 = vdwg.mxu0
    %v3906 = vld [vmem:[%s9] sm:$0x1]
    %v3908 = vlaneseq
    %v3909 = vshrl.u32 %v3908, 7
    %v3910 = vsub.s32 0, %v3909
    %v3911 = vrot.slane %v3906, %v3910
    %v3913 = vadd.f32 %v3885, %v3911
    %v3914 = vadd.f32 %v3891, %v3911
    %v3915 = vadd.f32 %v3897, %v3911
    %v3916 = vadd.f32 %v3903, %v3911
    %v3917 = vmax.f32 %v3913, 0.0
    %v3918 = vmax.f32 %v3914, 0.0
    %v3919 = vmax.f32 %v3915, 0.0
    %v3920 = vmax.f32 %v3916, 0.0
    %v3921 = vsel %vm2613, %v3917, -inf
    %v3922 = vsel %vm2613, %v3918, -inf
    %v3923 = vmax.f32 %v3921, %v3922
    %v3924 = vrot.slane %v3923, 4
    %v3925 = vmax.f32 %v3923, %v3924
    %v3926 = vrot.slane %v3925, 2
    %v3927 = vmax.f32 %v3925, %v3926
    %v3928 = vrot.slane %v3927, 1
    %v3929 = vmax.f32 %v3927, %v3928
    %v3930 = vsel %vm2613, %v3919, -inf
    %v3931 = vsel %vm2613, %v3920, -inf
    %v3932 = vmax.f32 %v3930, %v3931
    %v3933 = vrot.slane %v3932, 4
    %v3934 = vmax.f32 %v3932, %v3933
    %v3935 = vrot.slane %v3934, 2
    %v3936 = vmax.f32 %v3934, %v3935
    %v3937 = vrot.slane %v3936, 1
    %v3938 = vmax.f32 %v3936, %v3937
    %v3939 = vld [vmem:[%s10] sm:$0xff]
    %v3940 = vld [vmem:[%s10 + $0x8] sm:$0xff]
    %v3941 = vld [vmem:[%s10 + $0x10] sm:$0xff]
    %v3942 = vld [vmem:[%s10 + $0x18] sm:$0xff]
    %v3943 = vld [vmem:[%s10 + $0x20] sm:$0xff]
    %v3944 = vld [vmem:[%s10 + $0x28] sm:$0xff]
    %v3945 = vld [vmem:[%s10 + $0x30] sm:$0xff]
    %v3946 = vld [vmem:[%s10 + $0x38] sm:$0xff]
    %v3947 = vld [vmem:[%s11] sm:$0x1]
    %v3949 = vlaneseq
    %v3950 = vshrl.u32 %v3949, 7
    %v3951 = vsub.s32 0, %v3950
    %v3952 = vrot.slane %v3947, %v3951
    %vm3956 = vcmask 1041409
    %v3957 = vsel %vm3956, %v3938, %v3929
    %v3958 = vsel %vm2613, %v3957, 0
    %3960 = vmatprep.subr.mxu0 0.0
    %3961 = vmatpush1.msra.mxu0 0.0
    %3962 = vmatprep.subr.mxu0 0.0
    %3963 = vmatpush1.msra.mxu0 0.0
    %3964 = vmatprep.subr.mxu0 0.0
    %3965 = vmatpush1.msra.mxu0 0.0
    %3966 = vmatprep.subr.mxu0 0.0
    %3967 = vmatpush1.msra.mxu0 0.0
    %3968 = vmatprep.subr.mxu0 0.0
    %3969 = vmatpush1.msra.mxu0 0.0
    %3970 = vmatprep.subr.mxu0 0.0
    %3971 = vmatpush1.msra.mxu0 0.0
    %3972 = vmatprep.subr.mxu0 0.0
    %3973 = vmatpush1.msra.mxu0 0.0
    %3974 = vmatprep.subr.mxu0 0.0
    %3975 = vmatpush1.msra.mxu0 0.0
    %3976 = vmatprep.subr.mxu0 0.0
    %v3977 = vand.u32 %v3946, 4294901760
    %3978 = vmatpush1.msra.mxu0 %v3977
    %3979 = vmatprep.subr.mxu0 0.0
    %v3980 = vand.u32 %v3945, 4294901760
    %3981 = vmatpush1.msra.mxu0 %v3980
    %3982 = vmatprep.subr.mxu0 0.0
    %v3983 = vand.u32 %v3944, 4294901760
    %3984 = vmatpush1.msra.mxu0 %v3983
    %3985 = vmatprep.subr.mxu0 0.0
    %v3986 = vand.u32 %v3943, 4294901760
    %3987 = vmatpush1.msra.mxu0 %v3986
    %3988 = vmatprep.subr.mxu0 0.0
    %v3989 = vand.u32 %v3942, 4294901760
    %3990 = vmatpush1.msra.mxu0 %v3989
    %3991 = vmatprep.subr.mxu0 0.0
    %v3992 = vand.u32 %v3941, 4294901760
    %3993 = vmatpush1.msra.mxu0 %v3992
    %3994 = vmatprep.subr.mxu0 0.0
    %v3995 = vand.u32 %v3940, 4294901760
    %3996 = vmatpush1.msra.mxu0 %v3995
    %3997 = vmatprep.subr.mxu0 0.0
    %v3998 = vand.u32 %v3939, 4294901760
    %3999 = vmatpush1.msra.mxu0 %v3998
    %4000 = vmatprep.subr.mxu0 0.0
    %4001 = vmatpush2.msra.mxu0 0.0
    %4002 = vmatprep.subr.mxu0 0.0
    %4003 = vmatpush2.msra.mxu0 0.0
    %4004 = vmatprep.subr.mxu0 0.0
    %4005 = vmatpush2.msra.mxu0 0.0
    %4006 = vmatprep.subr.mxu0 0.0
    %4007 = vmatpush2.msra.mxu0 0.0
    %4008 = vmatprep.subr.mxu0 0.0
    %4009 = vmatpush2.msra.mxu0 0.0
    %4010 = vmatprep.subr.mxu0 0.0
    %4011 = vmatpush2.msra.mxu0 0.0
    %4012 = vmatprep.subr.mxu0 0.0
    %4013 = vmatpush2.msra.mxu0 0.0
    %4014 = vmatprep.subr.mxu0 0.0
    %4015 = vmatpush2.msra.mxu0 0.0
    %4016 = vmatprep.subr.mxu0 0.0
    %4017 = vmatpush2.msra.mxu0 0.0
    %4018 = vmatprep.subr.mxu0 0.0
    %4019 = vmatpush2.msra.mxu0 0.0
    %4020 = vmatprep.subr.mxu0 0.0
    %4021 = vmatpush2.msra.mxu0 0.0
    %4022 = vmatprep.subr.mxu0 0.0
    %4023 = vmatpush2.msra.mxu0 0.0
    %4024 = vmatprep.subr.mxu0 0.0
    %4025 = vmatpush2.msra.mxu0 0.0
    %4026 = vmatprep.subr.mxu0 0.0
    %4027 = vmatpush2.msra.mxu0 0.0
    %4028 = vmatprep.subr.mxu0 0.0
    %4029 = vmatpush2.msra.mxu0 0.0
    %4030 = vmatprep.subr.mxu0 0.0
    %4031 = vmatpush2.msra.mxu0 0.0
    %4032 = vmatprep.mubr.f32.mxu0 0.0
    %v4033 = vand.u32 %v3958, 4294901760
    %v4034 = vsub.f32 %v3958, %v4033
    %v4035 = vand.u32 %v4034, 4294901760
    %v4036 = vsub.f32 %v4034, %v4035
    %v4037 = vand.u32 %v4036, 4294901760
    %4038 = vmatmul.mubr.f32.gmra.mxu0 %v4037
    %v4039 = vpop.f32.mrf.mxu0
    %v4040 = vadd.f32 %v3952, %v4039
    %v4041 = vpop.f32.mrf.mxu0
    %4042 = vdwg.mxu0
    %4043 = vmatprep.subr.mxu0 0.0
    %4044 = vmatpush1.msra.mxu0 0.0
    %4045 = vmatprep.subr.mxu0 0.0
    %4046 = vmatpush1.msra.mxu0 0.0
    %4047 = vmatprep.subr.mxu0 0.0
    %4048 = vmatpush1.msra.mxu0 0.0
    %4049 = vmatprep.subr.mxu0 0.0
    %4050 = vmatpush1.msra.mxu0 0.0
    %4051 = vmatprep.subr.mxu0 0.0
    %4052 = vmatpush1.msra.mxu0 0.0
    %4053 = vmatprep.subr.mxu0 0.0
    %4054 = vmatpush1.msra.mxu0 0.0
    %4055 = vmatprep.subr.mxu0 0.0
    %4056 = vmatpush1.msra.mxu0 0.0
    %4057 = vmatprep.subr.mxu0 0.0
    %4058 = vmatpush1.msra.mxu0 0.0
    %4059 = vmatprep.subr.mxu0 0.0
    %v4060 = vand.u32 %v3946, 4294901760
    %v4061 = vsub.f32 %v3946, %v4060
    %v4062 = vand.u32 %v4061, 4294901760
    %v4063 = vsub.f32 %v4061, %v4062
    %v4064 = vand.u32 %v4063, 4294901760
    %4065 = vmatpush1.msra.mxu0 %v4064
    %4066 = vmatprep.subr.mxu0 0.0
    %v4067 = vand.u32 %v3945, 4294901760
    %v4068 = vsub.f32 %v3945, %v4067
    %v4069 = vand.u32 %v4068, 4294901760
    %v4070 = vsub.f32 %v4068, %v4069
    %v4071 = vand.u32 %v4070, 4294901760
    %4072 = vmatpush1.msra.mxu0 %v4071
    %4073 = vmatprep.subr.mxu0 0.0
    %v4074 = vand.u32 %v3944, 4294901760
    %v4075 = vsub.f32 %v3944, %v4074
    %v4076 = vand.u32 %v4075, 4294901760
    %v4077 = vsub.f32 %v4075, %v4076
    %v4078 = vand.u32 %v4077, 4294901760
    %4079 = vmatpush1.msra.mxu0 %v4078
    %4080 = vmatprep.subr.mxu0 0.0
    %v4081 = vand.u32 %v3943, 4294901760
    %v4082 = vsub.f32 %v3943, %v4081
    %v4083 = vand.u32 %v4082, 4294901760
    %v4084 = vsub.f32 %v4082, %v4083
    %v4085 = vand.u32 %v4084, 4294901760
    %4086 = vmatpush1.msra.mxu0 %v4085
    %4087 = vmatprep.subr.mxu0 0.0
    %v4088 = vand.u32 %v3942, 4294901760
    %v4089 = vsub.f32 %v3942, %v4088
    %v4090 = vand.u32 %v4089, 4294901760
    %v4091 = vsub.f32 %v4089, %v4090
    %v4092 = vand.u32 %v4091, 4294901760
    %4093 = vmatpush1.msra.mxu0 %v4092
    %4094 = vmatprep.subr.mxu0 0.0
    %v4095 = vand.u32 %v3941, 4294901760
    %v4096 = vsub.f32 %v3941, %v4095
    %v4097 = vand.u32 %v4096, 4294901760
    %v4098 = vsub.f32 %v4096, %v4097
    %v4099 = vand.u32 %v4098, 4294901760
    %4100 = vmatpush1.msra.mxu0 %v4099
    %4101 = vmatprep.subr.mxu0 0.0
    %v4102 = vand.u32 %v3940, 4294901760
    %v4103 = vsub.f32 %v3940, %v4102
    %v4104 = vand.u32 %v4103, 4294901760
    %v4105 = vsub.f32 %v4103, %v4104
    %v4106 = vand.u32 %v4105, 4294901760
    %4107 = vmatpush1.msra.mxu0 %v4106
    %4108 = vmatprep.subr.mxu0 0.0
    %v4109 = vand.u32 %v3939, 4294901760
    %v4110 = vsub.f32 %v3939, %v4109
    %v4111 = vand.u32 %v4110, 4294901760
    %v4112 = vsub.f32 %v4110, %v4111
    %v4113 = vand.u32 %v4112, 4294901760
    %4114 = vmatpush1.msra.mxu0 %v4113
    %4115 = vmatprep.subr.mxu0 0.0
    %4116 = vmatpush2.msra.mxu0 0.0
    %4117 = vmatprep.subr.mxu0 0.0
    %4118 = vmatpush2.msra.mxu0 0.0
    %4119 = vmatprep.subr.mxu0 0.0
    %4120 = vmatpush2.msra.mxu0 0.0
    %4121 = vmatprep.subr.mxu0 0.0
    %4122 = vmatpush2.msra.mxu0 0.0
    %4123 = vmatprep.subr.mxu0 0.0
    %4124 = vmatpush2.msra.mxu0 0.0
    %4125 = vmatprep.subr.mxu0 0.0
    %4126 = vmatpush2.msra.mxu0 0.0
    %4127 = vmatprep.subr.mxu0 0.0
    %4128 = vmatpush2.msra.mxu0 0.0
    %4129 = vmatprep.subr.mxu0 0.0
    %4130 = vmatpush2.msra.mxu0 0.0
    %4131 = vmatprep.subr.mxu0 0.0
    %4132 = vmatpush2.msra.mxu0 0.0
    %4133 = vmatprep.subr.mxu0 0.0
    %4134 = vmatpush2.msra.mxu0 0.0
    %4135 = vmatprep.subr.mxu0 0.0
    %4136 = vmatpush2.msra.mxu0 0.0
    %4137 = vmatprep.subr.mxu0 0.0
    %4138 = vmatpush2.msra.mxu0 0.0
    %4139 = vmatprep.subr.mxu0 0.0
    %4140 = vmatpush2.msra.mxu0 0.0
    %4141 = vmatprep.subr.mxu0 0.0
    %4142 = vmatpush2.msra.mxu0 0.0
    %4143 = vmatprep.subr.mxu0 0.0
    %4144 = vmatpush2.msra.mxu0 0.0
    %4145 = vmatprep.subr.mxu0 0.0
    %4146 = vmatpush2.msra.mxu0 0.0
    %4147 = vmatprep.mubr.f32.mxu0 0.0
    %v4148 = vand.u32 %v3958, 4294901760
    %4149 = vmatmul.mubr.f32.gmra.mxu0 %v4148
    %v4150 = vpop.f32.mrf.mxu0
    %v4151 = vadd.f32 %v4040, %v4150
    %v4152 = vpop.f32.mrf.mxu0
    %4153 = vdwg.mxu0
    %4154 = vmatprep.subr.mxu0 0.0
    %4155 = vmatpush1.msra.mxu0 0.0
    %4156 = vmatprep.subr.mxu0 0.0
    %4157 = vmatpush1.msra.mxu0 0.0
    %4158 = vmatprep.subr.mxu0 0.0
    %4159 = vmatpush1.msra.mxu0 0.0
    %4160 = vmatprep.subr.mxu0 0.0
    %4161 = vmatpush1.msra.mxu0 0.0
    %4162 = vmatprep.subr.mxu0 0.0
    %4163 = vmatpush1.msra.mxu0 0.0
    %4164 = vmatprep.subr.mxu0 0.0
    %4165 = vmatpush1.msra.mxu0 0.0
    %4166 = vmatprep.subr.mxu0 0.0
    %4167 = vmatpush1.msra.mxu0 0.0
    %4168 = vmatprep.subr.mxu0 0.0
    %4169 = vmatpush1.msra.mxu0 0.0
    %4170 = vmatprep.subr.mxu0 0.0
    %v4171 = vand.u32 %v3946, 4294901760
    %v4172 = vsub.f32 %v3946, %v4171
    %4173 = vmatpush1.msra.mxu0 %v4172
    %4174 = vmatprep.subr.mxu0 0.0
    %v4175 = vand.u32 %v3945, 4294901760
    %v4176 = vsub.f32 %v3945, %v4175
    %4177 = vmatpush1.msra.mxu0 %v4176
    %4178 = vmatprep.subr.mxu0 0.0
    %v4179 = vand.u32 %v3944, 4294901760
    %v4180 = vsub.f32 %v3944, %v4179
    %4181 = vmatpush1.msra.mxu0 %v4180
    %4182 = vmatprep.subr.mxu0 0.0
    %v4183 = vand.u32 %v3943, 4294901760
    %v4184 = vsub.f32 %v3943, %v4183
    %4185 = vmatpush1.msra.mxu0 %v4184
    %4186 = vmatprep.subr.mxu0 0.0
    %v4187 = vand.u32 %v3942, 4294901760
    %v4188 = vsub.f32 %v3942, %v4187
    %4189 = vmatpush1.msra.mxu0 %v4188
    %4190 = vmatprep.subr.mxu0 0.0
    %v4191 = vand.u32 %v3941, 4294901760
    %v4192 = vsub.f32 %v3941, %v4191
    %4193 = vmatpush1.msra.mxu0 %v4192
    %4194 = vmatprep.subr.mxu0 0.0
    %v4195 = vand.u32 %v3940, 4294901760
    %v4196 = vsub.f32 %v3940, %v4195
    %4197 = vmatpush1.msra.mxu0 %v4196
    %4198 = vmatprep.subr.mxu0 0.0
    %v4199 = vand.u32 %v3939, 4294901760
    %v4200 = vsub.f32 %v3939, %v4199
    %4201 = vmatpush1.msra.mxu0 %v4200
    %4202 = vmatprep.subr.mxu0 0.0
    %4203 = vmatpush2.msra.mxu0 0.0
    %4204 = vmatprep.subr.mxu0 0.0
    %4205 = vmatpush2.msra.mxu0 0.0
    %4206 = vmatprep.subr.mxu0 0.0
    %4207 = vmatpush2.msra.mxu0 0.0
    %4208 = vmatprep.subr.mxu0 0.0
    %4209 = vmatpush2.msra.mxu0 0.0
    %4210 = vmatprep.subr.mxu0 0.0
    %4211 = vmatpush2.msra.mxu0 0.0
    %4212 = vmatprep.subr.mxu0 0.0
    %4213 = vmatpush2.msra.mxu0 0.0
    %4214 = vmatprep.subr.mxu0 0.0
    %4215 = vmatpush2.msra.mxu0 0.0
    %4216 = vmatprep.subr.mxu0 0.0
    %4217 = vmatpush2.msra.mxu0 0.0
    %4218 = vmatprep.subr.mxu0 0.0
    %4219 = vmatpush2.msra.mxu0 0.0
    %4220 = vmatprep.subr.mxu0 0.0
    %4221 = vmatpush2.msra.mxu0 0.0
    %4222 = vmatprep.subr.mxu0 0.0
    %4223 = vmatpush2.msra.mxu0 0.0
    %4224 = vmatprep.subr.mxu0 0.0
    %4225 = vmatpush2.msra.mxu0 0.0
    %4226 = vmatprep.subr.mxu0 0.0
    %4227 = vmatpush2.msra.mxu0 0.0
    %4228 = vmatprep.subr.mxu0 0.0
    %4229 = vmatpush2.msra.mxu0 0.0
    %4230 = vmatprep.subr.mxu0 0.0
    %4231 = vmatpush2.msra.mxu0 0.0
    %4232 = vmatprep.subr.mxu0 0.0
    %4233 = vmatpush2.msra.mxu0 0.0
    %4234 = vmatprep.mubr.f32.mxu0 0.0
    %v4235 = vand.u32 %v3958, 4294901760
    %v4236 = vsub.f32 %v3958, %v4235
    %4237 = vmatmul.mubr.f32.gmra.mxu0 %v4236
    %v4238 = vpop.f32.mrf.mxu0
    %v4239 = vadd.f32 %v4151, %v4238
    %v4240 = vpop.f32.mrf.mxu0
    %4241 = vdwg.mxu0
    %4242 = vmatprep.subr.mxu0 0.0
    %4243 = vmatpush1.msra.mxu0 0.0
    %4244 = vmatprep.subr.mxu0 0.0
    %4245 = vmatpush1.msra.mxu0 0.0
    %4246 = vmatprep.subr.mxu0 0.0
    %4247 = vmatpush1.msra.mxu0 0.0
    %4248 = vmatprep.subr.mxu0 0.0
    %4249 = vmatpush1.msra.mxu0 0.0
    %4250 = vmatprep.subr.mxu0 0.0
    %4251 = vmatpush1.msra.mxu0 0.0
    %4252 = vmatprep.subr.mxu0 0.0
    %4253 = vmatpush1.msra.mxu0 0.0
    %4254 = vmatprep.subr.mxu0 0.0
    %4255 = vmatpush1.msra.mxu0 0.0
    %4256 = vmatprep.subr.mxu0 0.0
    %4257 = vmatpush1.msra.mxu0 0.0
    %4258 = vmatprep.subr.mxu0 0.0
    %v4259 = vand.u32 %v3946, 4294901760
    %4260 = vmatpush1.msra.mxu0 %v4259
    %4261 = vmatprep.subr.mxu0 0.0
    %v4262 = vand.u32 %v3945, 4294901760
    %4263 = vmatpush1.msra.mxu0 %v4262
    %4264 = vmatprep.subr.mxu0 0.0
    %v4265 = vand.u32 %v3944, 4294901760
    %4266 = vmatpush1.msra.mxu0 %v4265
    %4267 = vmatprep.subr.mxu0 0.0
    %v4268 = vand.u32 %v3943, 4294901760
    %4269 = vmatpush1.msra.mxu0 %v4268
    %4270 = vmatprep.subr.mxu0 0.0
    %v4271 = vand.u32 %v3942, 4294901760
    %4272 = vmatpush1.msra.mxu0 %v4271
    %4273 = vmatprep.subr.mxu0 0.0
    %v4274 = vand.u32 %v3941, 4294901760
    %4275 = vmatpush1.msra.mxu0 %v4274
    %4276 = vmatprep.subr.mxu0 0.0
    %v4277 = vand.u32 %v3940, 4294901760
    %4278 = vmatpush1.msra.mxu0 %v4277
    %4279 = vmatprep.subr.mxu0 0.0
    %v4280 = vand.u32 %v3939, 4294901760
    %4281 = vmatpush1.msra.mxu0 %v4280
    %4282 = vmatprep.subr.mxu0 0.0
    %4283 = vmatpush2.msra.mxu0 0.0
    %4284 = vmatprep.subr.mxu0 0.0
    %4285 = vmatpush2.msra.mxu0 0.0
    %4286 = vmatprep.subr.mxu0 0.0
    %4287 = vmatpush2.msra.mxu0 0.0
    %4288 = vmatprep.subr.mxu0 0.0
    %4289 = vmatpush2.msra.mxu0 0.0
    %4290 = vmatprep.subr.mxu0 0.0
    %4291 = vmatpush2.msra.mxu0 0.0
    %4292 = vmatprep.subr.mxu0 0.0
    %4293 = vmatpush2.msra.mxu0 0.0
    %4294 = vmatprep.subr.mxu0 0.0
    %4295 = vmatpush2.msra.mxu0 0.0
    %4296 = vmatprep.subr.mxu0 0.0
    %4297 = vmatpush2.msra.mxu0 0.0
    %4298 = vmatprep.subr.mxu0 0.0
    %4299 = vmatpush2.msra.mxu0 0.0
    %4300 = vmatprep.subr.mxu0 0.0
    %4301 = vmatpush2.msra.mxu0 0.0
    %4302 = vmatprep.subr.mxu0 0.0
    %4303 = vmatpush2.msra.mxu0 0.0
    %4304 = vmatprep.subr.mxu0 0.0
    %4305 = vmatpush2.msra.mxu0 0.0
    %4306 = vmatprep.subr.mxu0 0.0
    %4307 = vmatpush2.msra.mxu0 0.0
    %4308 = vmatprep.subr.mxu0 0.0
    %4309 = vmatpush2.msra.mxu0 0.0
    %4310 = vmatprep.subr.mxu0 0.0
    %4311 = vmatpush2.msra.mxu0 0.0
    %4312 = vmatprep.subr.mxu0 0.0
    %4313 = vmatpush2.msra.mxu0 0.0
    %4314 = vmatprep.mubr.f32.mxu0 0.0
    %v4315 = vand.u32 %v3958, 4294901760
    %v4316 = vsub.f32 %v3958, %v4315
    %v4317 = vand.u32 %v4316, 4294901760
    %4318 = vmatmul.mubr.f32.gmra.mxu0 %v4317
    %v4319 = vpop.f32.mrf.mxu0
    %v4320 = vadd.f32 %v4239, %v4319
    %v4321 = vpop.f32.mrf.mxu0
    %4322 = vdwg.mxu0
    %4323 = vmatprep.subr.mxu0 0.0
    %4324 = vmatpush1.msra.mxu0 0.0
    %4325 = vmatprep.subr.mxu0 0.0
    %4326 = vmatpush1.msra.mxu0 0.0
    %4327 = vmatprep.subr.mxu0 0.0
    %4328 = vmatpush1.msra.mxu0 0.0
    %4329 = vmatprep.subr.mxu0 0.0
    %4330 = vmatpush1.msra.mxu0 0.0
    %4331 = vmatprep.subr.mxu0 0.0
    %4332 = vmatpush1.msra.mxu0 0.0
    %4333 = vmatprep.subr.mxu0 0.0
    %4334 = vmatpush1.msra.mxu0 0.0
    %4335 = vmatprep.subr.mxu0 0.0
    %4336 = vmatpush1.msra.mxu0 0.0
    %4337 = vmatprep.subr.mxu0 0.0
    %4338 = vmatpush1.msra.mxu0 0.0
    %4339 = vmatprep.subr.mxu0 0.0
    %v4340 = vand.u32 %v3946, 4294901760
    %v4341 = vsub.f32 %v3946, %v4340
    %v4342 = vand.u32 %v4341, 4294901760
    %4343 = vmatpush1.msra.mxu0 %v4342
    %4344 = vmatprep.subr.mxu0 0.0
    %v4345 = vand.u32 %v3945, 4294901760
    %v4346 = vsub.f32 %v3945, %v4345
    %v4347 = vand.u32 %v4346, 4294901760
    %4348 = vmatpush1.msra.mxu0 %v4347
    %4349 = vmatprep.subr.mxu0 0.0
    %v4350 = vand.u32 %v3944, 4294901760
    %v4351 = vsub.f32 %v3944, %v4350
    %v4352 = vand.u32 %v4351, 4294901760
    %4353 = vmatpush1.msra.mxu0 %v4352
    %4354 = vmatprep.subr.mxu0 0.0
    %v4355 = vand.u32 %v3943, 4294901760
    %v4356 = vsub.f32 %v3943, %v4355
    %v4357 = vand.u32 %v4356, 4294901760
    %4358 = vmatpush1.msra.mxu0 %v4357
    %4359 = vmatprep.subr.mxu0 0.0
    %v4360 = vand.u32 %v3942, 4294901760
    %v4361 = vsub.f32 %v3942, %v4360
    %v4362 = vand.u32 %v4361, 4294901760
    %4363 = vmatpush1.msra.mxu0 %v4362
    %4364 = vmatprep.subr.mxu0 0.0
    %v4365 = vand.u32 %v3941, 4294901760
    %v4366 = vsub.f32 %v3941, %v4365
    %v4367 = vand.u32 %v4366, 4294901760
    %4368 = vmatpush1.msra.mxu0 %v4367
    %4369 = vmatprep.subr.mxu0 0.0
    %v4370 = vand.u32 %v3940, 4294901760
    %v4371 = vsub.f32 %v3940, %v4370
    %v4372 = vand.u32 %v4371, 4294901760
    %4373 = vmatpush1.msra.mxu0 %v4372
    %4374 = vmatprep.subr.mxu0 0.0
    %v4375 = vand.u32 %v3939, 4294901760
    %v4376 = vsub.f32 %v3939, %v4375
    %v4377 = vand.u32 %v4376, 4294901760
    %4378 = vmatpush1.msra.mxu0 %v4377
    %4379 = vmatprep.subr.mxu0 0.0
    %4380 = vmatpush2.msra.mxu0 0.0
    %4381 = vmatprep.subr.mxu0 0.0
    %4382 = vmatpush2.msra.mxu0 0.0
    %4383 = vmatprep.subr.mxu0 0.0
    %4384 = vmatpush2.msra.mxu0 0.0
    %4385 = vmatprep.subr.mxu0 0.0
    %4386 = vmatpush2.msra.mxu0 0.0
    %4387 = vmatprep.subr.mxu0 0.0
    %4388 = vmatpush2.msra.mxu0 0.0
    %4389 = vmatprep.subr.mxu0 0.0
    %4390 = vmatpush2.msra.mxu0 0.0
    %4391 = vmatprep.subr.mxu0 0.0
    %4392 = vmatpush2.msra.mxu0 0.0
    %4393 = vmatprep.subr.mxu0 0.0
    %4394 = vmatpush2.msra.mxu0 0.0
    %4395 = vmatprep.subr.mxu0 0.0
    %4396 = vmatpush2.msra.mxu0 0.0
    %4397 = vmatprep.subr.mxu0 0.0
    %4398 = vmatpush2.msra.mxu0 0.0
    %4399 = vmatprep.subr.mxu0 0.0
    %4400 = vmatpush2.msra.mxu0 0.0
    %4401 = vmatprep.subr.mxu0 0.0
    %4402 = vmatpush2.msra.mxu0 0.0
    %4403 = vmatprep.subr.mxu0 0.0
    %4404 = vmatpush2.msra.mxu0 0.0
    %4405 = vmatprep.subr.mxu0 0.0
    %4406 = vmatpush2.msra.mxu0 0.0
    %4407 = vmatprep.subr.mxu0 0.0
    %4408 = vmatpush2.msra.mxu0 0.0
    %4409 = vmatprep.subr.mxu0 0.0
    %4410 = vmatpush2.msra.mxu0 0.0
    %4411 = vmatprep.mubr.f32.mxu0 0.0
    %v4412 = vand.u32 %v3958, 4294901760
    %4413 = vmatmul.mubr.f32.gmra.mxu0 %v4412
    %v4414 = vpop.f32.mrf.mxu0
    %v4415 = vadd.f32 %v4320, %v4414
    %v4416 = vpop.f32.mrf.mxu0
    %4417 = vdwg.mxu0
    %4418 = vmatprep.subr.mxu0 0.0
    %4419 = vmatpush1.msra.mxu0 0.0
    %4420 = vmatprep.subr.mxu0 0.0
    %4421 = vmatpush1.msra.mxu0 0.0
    %4422 = vmatprep.subr.mxu0 0.0
    %4423 = vmatpush1.msra.mxu0 0.0
    %4424 = vmatprep.subr.mxu0 0.0
    %4425 = vmatpush1.msra.mxu0 0.0
    %4426 = vmatprep.subr.mxu0 0.0
    %4427 = vmatpush1.msra.mxu0 0.0
    %4428 = vmatprep.subr.mxu0 0.0
    %4429 = vmatpush1.msra.mxu0 0.0
    %4430 = vmatprep.subr.mxu0 0.0
    %4431 = vmatpush1.msra.mxu0 0.0
    %4432 = vmatprep.subr.mxu0 0.0
    %4433 = vmatpush1.msra.mxu0 0.0
    %4434 = vmatprep.subr.mxu0 0.0
    %v4435 = vand.u32 %v3946, 4294901760
    %4436 = vmatpush1.msra.mxu0 %v4435
    %4437 = vmatprep.subr.mxu0 0.0
    %v4438 = vand.u32 %v3945, 4294901760
    %4439 = vmatpush1.msra.mxu0 %v4438
    %4440 = vmatprep.subr.mxu0 0.0
    %v4441 = vand.u32 %v3944, 4294901760
    %4442 = vmatpush1.msra.mxu0 %v4441
    %4443 = vmatprep.subr.mxu0 0.0
    %v4444 = vand.u32 %v3943, 4294901760
    %4445 = vmatpush1.msra.mxu0 %v4444
    %4446 = vmatprep.subr.mxu0 0.0
    %v4447 = vand.u32 %v3942, 4294901760
    %4448 = vmatpush1.msra.mxu0 %v4447
    %4449 = vmatprep.subr.mxu0 0.0
    %v4450 = vand.u32 %v3941, 4294901760
    %4451 = vmatpush1.msra.mxu0 %v4450
    %4452 = vmatprep.subr.mxu0 0.0
    %v4453 = vand.u32 %v3940, 4294901760
    %4454 = vmatpush1.msra.mxu0 %v4453
    %4455 = vmatprep.subr.mxu0 0.0
    %v4456 = vand.u32 %v3939, 4294901760
    %4457 = vmatpush1.msra.mxu0 %v4456
    %4458 = vmatprep.subr.mxu0 0.0
    %4459 = vmatpush2.msra.mxu0 0.0
    %4460 = vmatprep.subr.mxu0 0.0
    %4461 = vmatpush2.msra.mxu0 0.0
    %4462 = vmatprep.subr.mxu0 0.0
    %4463 = vmatpush2.msra.mxu0 0.0
    %4464 = vmatprep.subr.mxu0 0.0
    %4465 = vmatpush2.msra.mxu0 0.0
    %4466 = vmatprep.subr.mxu0 0.0
    %4467 = vmatpush2.msra.mxu0 0.0
    %4468 = vmatprep.subr.mxu0 0.0
    %4469 = vmatpush2.msra.mxu0 0.0
    %4470 = vmatprep.subr.mxu0 0.0
    %4471 = vmatpush2.msra.mxu0 0.0
    %4472 = vmatprep.subr.mxu0 0.0
    %4473 = vmatpush2.msra.mxu0 0.0
    %4474 = vmatprep.subr.mxu0 0.0
    %4475 = vmatpush2.msra.mxu0 0.0
    %4476 = vmatprep.subr.mxu0 0.0
    %4477 = vmatpush2.msra.mxu0 0.0
    %4478 = vmatprep.subr.mxu0 0.0
    %4479 = vmatpush2.msra.mxu0 0.0
    %4480 = vmatprep.subr.mxu0 0.0
    %4481 = vmatpush2.msra.mxu0 0.0
    %4482 = vmatprep.subr.mxu0 0.0
    %4483 = vmatpush2.msra.mxu0 0.0
    %4484 = vmatprep.subr.mxu0 0.0
    %4485 = vmatpush2.msra.mxu0 0.0
    %4486 = vmatprep.subr.mxu0 0.0
    %4487 = vmatpush2.msra.mxu0 0.0
    %4488 = vmatprep.subr.mxu0 0.0
    %4489 = vmatpush2.msra.mxu0 0.0
    %4490 = vmatprep.mubr.f32.mxu0 0.0
    %v4491 = vand.u32 %v3958, 4294901760
    %4492 = vmatmul.mubr.f32.gmra.mxu0 %v4491
    %v4493 = vpop.f32.mrf.mxu0
    %v4494 = vadd.f32 %v4415, %v4493
    %v4495 = vpop.f32.mrf.mxu0
    %4496 = vdwg.mxu0
    %v4497 = vmax.f32 %v4494, 0.0
    %v4498 = vld [vmem:[%s12] sm:$0xff]
    %v4499 = vld [vmem:[%s12 + $0x8] sm:$0xff]
    %v4500 = vld [vmem:[%s12 + $0x10] sm:$0xff]
    %v4501 = vld [vmem:[%s12 + $0x18] sm:$0xff]
    %v4502 = vld [vmem:[%s13] sm:$0x1]
    %v4504 = vlaneseq
    %v4505 = vshrl.u32 %v4504, 7
    %v4506 = vsub.s32 0, %v4505
    %v4507 = vrot.slane %v4502, %v4506
    %v4510 = vsel %vm1312, %v4497, 0
    %4512 = vmatprep.subr.mxu0 0.0
    %4513 = vmatpush1.msra.mxu0 0.0
    %4514 = vmatprep.subr.mxu0 0.0
    %4515 = vmatpush1.msra.mxu0 0.0
    %4516 = vmatprep.subr.mxu0 0.0
    %4517 = vmatpush1.msra.mxu0 0.0
    %4518 = vmatprep.subr.mxu0 0.0
    %4519 = vmatpush1.msra.mxu0 0.0
    %4520 = vmatprep.subr.mxu0 0.0
    %4521 = vmatpush1.msra.mxu0 0.0
    %4522 = vmatprep.subr.mxu0 0.0
    %4523 = vmatpush1.msra.mxu0 0.0
    %4524 = vmatprep.subr.mxu0 0.0
    %4525 = vmatpush1.msra.mxu0 0.0
    %4526 = vmatprep.subr.mxu0 0.0
    %4527 = vmatpush1.msra.mxu0 0.0
    %4528 = vmatprep.subr.mxu0 0.0
    %4529 = vmatpush1.msra.mxu0 0.0
    %4530 = vmatprep.subr.mxu0 0.0
    %4531 = vmatpush1.msra.mxu0 0.0
    %4532 = vmatprep.subr.mxu0 0.0
    %4533 = vmatpush1.msra.mxu0 0.0
    %4534 = vmatprep.subr.mxu0 0.0
    %4535 = vmatpush1.msra.mxu0 0.0
    %4536 = vmatprep.subr.mxu0 0.0
    %v4537 = vand.u32 %v4501, 4294901760
    %4538 = vmatpush1.msra.mxu0 %v4537
    %4539 = vmatprep.subr.mxu0 0.0
    %v4540 = vand.u32 %v4500, 4294901760
    %4541 = vmatpush1.msra.mxu0 %v4540
    %4542 = vmatprep.subr.mxu0 0.0
    %v4543 = vand.u32 %v4499, 4294901760
    %4544 = vmatpush1.msra.mxu0 %v4543
    %4545 = vmatprep.subr.mxu0 0.0
    %v4546 = vand.u32 %v4498, 4294901760
    %4547 = vmatpush1.msra.mxu0 %v4546
    %4548 = vmatprep.subr.mxu0 0.0
    %4549 = vmatpush2.msra.mxu0 0.0
    %4550 = vmatprep.subr.mxu0 0.0
    %4551 = vmatpush2.msra.mxu0 0.0
    %4552 = vmatprep.subr.mxu0 0.0
    %4553 = vmatpush2.msra.mxu0 0.0
    %4554 = vmatprep.subr.mxu0 0.0
    %4555 = vmatpush2.msra.mxu0 0.0
    %4556 = vmatprep.subr.mxu0 0.0
    %4557 = vmatpush2.msra.mxu0 0.0
    %4558 = vmatprep.subr.mxu0 0.0
    %4559 = vmatpush2.msra.mxu0 0.0
    %4560 = vmatprep.subr.mxu0 0.0
    %4561 = vmatpush2.msra.mxu0 0.0
    %4562 = vmatprep.subr.mxu0 0.0
    %4563 = vmatpush2.msra.mxu0 0.0
    %4564 = vmatprep.subr.mxu0 0.0
    %4565 = vmatpush2.msra.mxu0 0.0
    %4566 = vmatprep.subr.mxu0 0.0
    %4567 = vmatpush2.msra.mxu0 0.0
    %4568 = vmatprep.subr.mxu0 0.0
    %4569 = vmatpush2.msra.mxu0 0.0
    %4570 = vmatprep.subr.mxu0 0.0
    %4571 = vmatpush2.msra.mxu0 0.0
    %4572 = vmatprep.subr.mxu0 0.0
    %4573 = vmatpush2.msra.mxu0 0.0
    %4574 = vmatprep.subr.mxu0 0.0
    %4575 = vmatpush2.msra.mxu0 0.0
    %4576 = vmatprep.subr.mxu0 0.0
    %4577 = vmatpush2.msra.mxu0 0.0
    %4578 = vmatprep.subr.mxu0 0.0
    %4579 = vmatpush2.msra.mxu0 0.0
    %4580 = vmatprep.mubr.f32.mxu0 0.0
    %v4581 = vand.u32 %v4510, 4294901760
    %v4582 = vsub.f32 %v4510, %v4581
    %v4583 = vand.u32 %v4582, 4294901760
    %v4584 = vsub.f32 %v4582, %v4583
    %v4585 = vand.u32 %v4584, 4294901760
    %4586 = vmatmul.mubr.f32.gmra.mxu0 %v4585
    %v4587 = vpop.f32.mrf.mxu0
    %v4588 = vadd.f32 %v4507, %v4587
    %v4589 = vpop.f32.mrf.mxu0
    %4590 = vdwg.mxu0
    %4591 = vmatprep.subr.mxu0 0.0
    %4592 = vmatpush1.msra.mxu0 0.0
    %4593 = vmatprep.subr.mxu0 0.0
    %4594 = vmatpush1.msra.mxu0 0.0
    %4595 = vmatprep.subr.mxu0 0.0
    %4596 = vmatpush1.msra.mxu0 0.0
    %4597 = vmatprep.subr.mxu0 0.0
    %4598 = vmatpush1.msra.mxu0 0.0
    %4599 = vmatprep.subr.mxu0 0.0
    %4600 = vmatpush1.msra.mxu0 0.0
    %4601 = vmatprep.subr.mxu0 0.0
    %4602 = vmatpush1.msra.mxu0 0.0
    %4603 = vmatprep.subr.mxu0 0.0
    %4604 = vmatpush1.msra.mxu0 0.0
    %4605 = vmatprep.subr.mxu0 0.0
    %4606 = vmatpush1.msra.mxu0 0.0
    %4607 = vmatprep.subr.mxu0 0.0
    %4608 = vmatpush1.msra.mxu0 0.0
    %4609 = vmatprep.subr.mxu0 0.0
    %4610 = vmatpush1.msra.mxu0 0.0
    %4611 = vmatprep.subr.mxu0 0.0
    %4612 = vmatpush1.msra.mxu0 0.0
    %4613 = vmatprep.subr.mxu0 0.0
    %4614 = vmatpush1.msra.mxu0 0.0
    %4615 = vmatprep.subr.mxu0 0.0
    %v4616 = vand.u32 %v4501, 4294901760
    %v4617 = vsub.f32 %v4501, %v4616
    %v4618 = vand.u32 %v4617, 4294901760
    %v4619 = vsub.f32 %v4617, %v4618
    %v4620 = vand.u32 %v4619, 4294901760
    %4621 = vmatpush1.msra.mxu0 %v4620
    %4622 = vmatprep.subr.mxu0 0.0
    %v4623 = vand.u32 %v4500, 4294901760
    %v4624 = vsub.f32 %v4500, %v4623
    %v4625 = vand.u32 %v4624, 4294901760
    %v4626 = vsub.f32 %v4624, %v4625
    %v4627 = vand.u32 %v4626, 4294901760
    %4628 = vmatpush1.msra.mxu0 %v4627
    %4629 = vmatprep.subr.mxu0 0.0
    %v4630 = vand.u32 %v4499, 4294901760
    %v4631 = vsub.f32 %v4499, %v4630
    %v4632 = vand.u32 %v4631, 4294901760
    %v4633 = vsub.f32 %v4631, %v4632
    %v4634 = vand.u32 %v4633, 4294901760
    %4635 = vmatpush1.msra.mxu0 %v4634
    %4636 = vmatprep.subr.mxu0 0.0
    %v4637 = vand.u32 %v4498, 4294901760
    %v4638 = vsub.f32 %v4498, %v4637
    %v4639 = vand.u32 %v4638, 4294901760
    %v4640 = vsub.f32 %v4638, %v4639
    %v4641 = vand.u32 %v4640, 4294901760
    %4642 = vmatpush1.msra.mxu0 %v4641
    %4643 = vmatprep.subr.mxu0 0.0
    %4644 = vmatpush2.msra.mxu0 0.0
    %4645 = vmatprep.subr.mxu0 0.0
    %4646 = vmatpush2.msra.mxu0 0.0
    %4647 = vmatprep.subr.mxu0 0.0
    %4648 = vmatpush2.msra.mxu0 0.0
    %4649 = vmatprep.subr.mxu0 0.0
    %4650 = vmatpush2.msra.mxu0 0.0
    %4651 = vmatprep.subr.mxu0 0.0
    %4652 = vmatpush2.msra.mxu0 0.0
    %4653 = vmatprep.subr.mxu0 0.0
    %4654 = vmatpush2.msra.mxu0 0.0
    %4655 = vmatprep.subr.mxu0 0.0
    %4656 = vmatpush2.msra.mxu0 0.0
    %4657 = vmatprep.subr.mxu0 0.0
    %4658 = vmatpush2.msra.mxu0 0.0
    %4659 = vmatprep.subr.mxu0 0.0
    %4660 = vmatpush2.msra.mxu0 0.0
    %4661 = vmatprep.subr.mxu0 0.0
    %4662 = vmatpush2.msra.mxu0 0.0
    %4663 = vmatprep.subr.mxu0 0.0
    %4664 = vmatpush2.msra.mxu0 0.0
    %4665 = vmatprep.subr.mxu0 0.0
    %4666 = vmatpush2.msra.mxu0 0.0
    %4667 = vmatprep.subr.mxu0 0.0
    %4668 = vmatpush2.msra.mxu0 0.0
    %4669 = vmatprep.subr.mxu0 0.0
    %4670 = vmatpush2.msra.mxu0 0.0
    %4671 = vmatprep.subr.mxu0 0.0
    %4672 = vmatpush2.msra.mxu0 0.0
    %4673 = vmatprep.subr.mxu0 0.0
    %4674 = vmatpush2.msra.mxu0 0.0
    %4675 = vmatprep.mubr.f32.mxu0 0.0
    %v4676 = vand.u32 %v4510, 4294901760
    %4677 = vmatmul.mubr.f32.gmra.mxu0 %v4676
    %v4678 = vpop.f32.mrf.mxu0
    %v4679 = vadd.f32 %v4588, %v4678
    %v4680 = vpop.f32.mrf.mxu0
    %4681 = vdwg.mxu0
    %4682 = vmatprep.subr.mxu0 0.0
    %4683 = vmatpush1.msra.mxu0 0.0
    %4684 = vmatprep.subr.mxu0 0.0
    %4685 = vmatpush1.msra.mxu0 0.0
    %4686 = vmatprep.subr.mxu0 0.0
    %4687 = vmatpush1.msra.mxu0 0.0
    %4688 = vmatprep.subr.mxu0 0.0
    %4689 = vmatpush1.msra.mxu0 0.0
    %4690 = vmatprep.subr.mxu0 0.0
    %4691 = vmatpush1.msra.mxu0 0.0
    %4692 = vmatprep.subr.mxu0 0.0
    %4693 = vmatpush1.msra.mxu0 0.0
    %4694 = vmatprep.subr.mxu0 0.0
    %4695 = vmatpush1.msra.mxu0 0.0
    %4696 = vmatprep.subr.mxu0 0.0
    %4697 = vmatpush1.msra.mxu0 0.0
    %4698 = vmatprep.subr.mxu0 0.0
    %4699 = vmatpush1.msra.mxu0 0.0
    %4700 = vmatprep.subr.mxu0 0.0
    %4701 = vmatpush1.msra.mxu0 0.0
    %4702 = vmatprep.subr.mxu0 0.0
    %4703 = vmatpush1.msra.mxu0 0.0
    %4704 = vmatprep.subr.mxu0 0.0
    %4705 = vmatpush1.msra.mxu0 0.0
    %4706 = vmatprep.subr.mxu0 0.0
    %v4707 = vand.u32 %v4501, 4294901760
    %v4708 = vsub.f32 %v4501, %v4707
    %4709 = vmatpush1.msra.mxu0 %v4708
    %4710 = vmatprep.subr.mxu0 0.0
    %v4711 = vand.u32 %v4500, 4294901760
    %v4712 = vsub.f32 %v4500, %v4711
    %4713 = vmatpush1.msra.mxu0 %v4712
    %4714 = vmatprep.subr.mxu0 0.0
    %v4715 = vand.u32 %v4499, 4294901760
    %v4716 = vsub.f32 %v4499, %v4715
    %4717 = vmatpush1.msra.mxu0 %v4716
    %4718 = vmatprep.subr.mxu0 0.0
    %v4719 = vand.u32 %v4498, 4294901760
    %v4720 = vsub.f32 %v4498, %v4719
    %4721 = vmatpush1.msra.mxu0 %v4720
    %4722 = vmatprep.subr.mxu0 0.0
    %4723 = vmatpush2.msra.mxu0 0.0
    %4724 = vmatprep.subr.mxu0 0.0
    %4725 = vmatpush2.msra.mxu0 0.0
    %4726 = vmatprep.subr.mxu0 0.0
    %4727 = vmatpush2.msra.mxu0 0.0
    %4728 = vmatprep.subr.mxu0 0.0
    %4729 = vmatpush2.msra.mxu0 0.0
    %4730 = vmatprep.subr.mxu0 0.0
    %4731 = vmatpush2.msra.mxu0 0.0
    %4732 = vmatprep.subr.mxu0 0.0
    %4733 = vmatpush2.msra.mxu0 0.0
    %4734 = vmatprep.subr.mxu0 0.0
    %4735 = vmatpush2.msra.mxu0 0.0
    %4736 = vmatprep.subr.mxu0 0.0
    %4737 = vmatpush2.msra.mxu0 0.0
    %4738 = vmatprep.subr.mxu0 0.0
    %4739 = vmatpush2.msra.mxu0 0.0
    %4740 = vmatprep.subr.mxu0 0.0
    %4741 = vmatpush2.msra.mxu0 0.0
    %4742 = vmatprep.subr.mxu0 0.0
    %4743 = vmatpush2.msra.mxu0 0.0
    %4744 = vmatprep.subr.mxu0 0.0
    %4745 = vmatpush2.msra.mxu0 0.0
    %4746 = vmatprep.subr.mxu0 0.0
    %4747 = vmatpush2.msra.mxu0 0.0
    %4748 = vmatprep.subr.mxu0 0.0
    %4749 = vmatpush2.msra.mxu0 0.0
    %4750 = vmatprep.subr.mxu0 0.0
    %4751 = vmatpush2.msra.mxu0 0.0
    %4752 = vmatprep.subr.mxu0 0.0
    %4753 = vmatpush2.msra.mxu0 0.0
    %4754 = vmatprep.mubr.f32.mxu0 0.0
    %v4755 = vand.u32 %v4510, 4294901760
    %v4756 = vsub.f32 %v4510, %v4755
    %4757 = vmatmul.mubr.f32.gmra.mxu0 %v4756
    %v4758 = vpop.f32.mrf.mxu0
    %v4759 = vadd.f32 %v4679, %v4758
    %v4760 = vpop.f32.mrf.mxu0
    %4761 = vdwg.mxu0
    %4762 = vmatprep.subr.mxu0 0.0
    %4763 = vmatpush1.msra.mxu0 0.0
    %4764 = vmatprep.subr.mxu0 0.0
    %4765 = vmatpush1.msra.mxu0 0.0
    %4766 = vmatprep.subr.mxu0 0.0
    %4767 = vmatpush1.msra.mxu0 0.0
    %4768 = vmatprep.subr.mxu0 0.0
    %4769 = vmatpush1.msra.mxu0 0.0
    %4770 = vmatprep.subr.mxu0 0.0
    %4771 = vmatpush1.msra.mxu0 0.0
    %4772 = vmatprep.subr.mxu0 0.0
    %4773 = vmatpush1.msra.mxu0 0.0
    %4774 = vmatprep.subr.mxu0 0.0
    %4775 = vmatpush1.msra.mxu0 0.0
    %4776 = vmatprep.subr.mxu0 0.0
    %4777 = vmatpush1.msra.mxu0 0.0
    %4778 = vmatprep.subr.mxu0 0.0
    %4779 = vmatpush1.msra.mxu0 0.0
    %4780 = vmatprep.subr.mxu0 0.0
    %4781 = vmatpush1.msra.mxu0 0.0
    %4782 = vmatprep.subr.mxu0 0.0
    %4783 = vmatpush1.msra.mxu0 0.0
    %4784 = vmatprep.subr.mxu0 0.0
    %4785 = vmatpush1.msra.mxu0 0.0
    %4786 = vmatprep.subr.mxu0 0.0
    %v4787 = vand.u32 %v4501, 4294901760
    %4788 = vmatpush1.msra.mxu0 %v4787
    %4789 = vmatprep.subr.mxu0 0.0
    %v4790 = vand.u32 %v4500, 4294901760
    %4791 = vmatpush1.msra.mxu0 %v4790
    %4792 = vmatprep.subr.mxu0 0.0
    %v4793 = vand.u32 %v4499, 4294901760
    %4794 = vmatpush1.msra.mxu0 %v4793
    %4795 = vmatprep.subr.mxu0 0.0
    %v4796 = vand.u32 %v4498, 4294901760
    %4797 = vmatpush1.msra.mxu0 %v4796
    %4798 = vmatprep.subr.mxu0 0.0
    %4799 = vmatpush2.msra.mxu0 0.0
    %4800 = vmatprep.subr.mxu0 0.0
    %4801 = vmatpush2.msra.mxu0 0.0
    %4802 = vmatprep.subr.mxu0 0.0
    %4803 = vmatpush2.msra.mxu0 0.0
    %4804 = vmatprep.subr.mxu0 0.0
    %4805 = vmatpush2.msra.mxu0 0.0
    %4806 = vmatprep.subr.mxu0 0.0
    %4807 = vmatpush2.msra.mxu0 0.0
    %4808 = vmatprep.subr.mxu0 0.0
    %4809 = vmatpush2.msra.mxu0 0.0
    %4810 = vmatprep.subr.mxu0 0.0
    %4811 = vmatpush2.msra.mxu0 0.0
    %4812 = vmatprep.subr.mxu0 0.0
    %4813 = vmatpush2.msra.mxu0 0.0
    %4814 = vmatprep.subr.mxu0 0.0
    %4815 = vmatpush2.msra.mxu0 0.0
    %4816 = vmatprep.subr.mxu0 0.0
    %4817 = vmatpush2.msra.mxu0 0.0
    %4818 = vmatprep.subr.mxu0 0.0
    %4819 = vmatpush2.msra.mxu0 0.0
    %4820 = vmatprep.subr.mxu0 0.0
    %4821 = vmatpush2.msra.mxu0 0.0
    %4822 = vmatprep.subr.mxu0 0.0
    %4823 = vmatpush2.msra.mxu0 0.0
    %4824 = vmatprep.subr.mxu0 0.0
    %4825 = vmatpush2.msra.mxu0 0.0
    %4826 = vmatprep.subr.mxu0 0.0
    %4827 = vmatpush2.msra.mxu0 0.0
    %4828 = vmatprep.subr.mxu0 0.0
    %4829 = vmatpush2.msra.mxu0 0.0
    %4830 = vmatprep.mubr.f32.mxu0 0.0
    %v4831 = vand.u32 %v4510, 4294901760
    %v4832 = vsub.f32 %v4510, %v4831
    %v4833 = vand.u32 %v4832, 4294901760
    %4834 = vmatmul.mubr.f32.gmra.mxu0 %v4833
    %v4835 = vpop.f32.mrf.mxu0
    %v4836 = vadd.f32 %v4759, %v4835
    %v4837 = vpop.f32.mrf.mxu0
    %4838 = vdwg.mxu0
    %4839 = vmatprep.subr.mxu0 0.0
    %4840 = vmatpush1.msra.mxu0 0.0
    %4841 = vmatprep.subr.mxu0 0.0
    %4842 = vmatpush1.msra.mxu0 0.0
    %4843 = vmatprep.subr.mxu0 0.0
    %4844 = vmatpush1.msra.mxu0 0.0
    %4845 = vmatprep.subr.mxu0 0.0
    %4846 = vmatpush1.msra.mxu0 0.0
    %4847 = vmatprep.subr.mxu0 0.0
    %4848 = vmatpush1.msra.mxu0 0.0
    %4849 = vmatprep.subr.mxu0 0.0
    %4850 = vmatpush1.msra.mxu0 0.0
    %4851 = vmatprep.subr.mxu0 0.0
    %4852 = vmatpush1.msra.mxu0 0.0
    %4853 = vmatprep.subr.mxu0 0.0
    %4854 = vmatpush1.msra.mxu0 0.0
    %4855 = vmatprep.subr.mxu0 0.0
    %4856 = vmatpush1.msra.mxu0 0.0
    %4857 = vmatprep.subr.mxu0 0.0
    %4858 = vmatpush1.msra.mxu0 0.0
    %4859 = vmatprep.subr.mxu0 0.0
    %4860 = vmatpush1.msra.mxu0 0.0
    %4861 = vmatprep.subr.mxu0 0.0
    %4862 = vmatpush1.msra.mxu0 0.0
    %4863 = vmatprep.subr.mxu0 0.0
    %v4864 = vand.u32 %v4501, 4294901760
    %v4865 = vsub.f32 %v4501, %v4864
    %v4866 = vand.u32 %v4865, 4294901760
    %4867 = vmatpush1.msra.mxu0 %v4866
    %4868 = vmatprep.subr.mxu0 0.0
    %v4869 = vand.u32 %v4500, 4294901760
    %v4870 = vsub.f32 %v4500, %v4869
    %v4871 = vand.u32 %v4870, 4294901760
    %4872 = vmatpush1.msra.mxu0 %v4871
    %4873 = vmatprep.subr.mxu0 0.0
    %v4874 = vand.u32 %v4499, 4294901760
    %v4875 = vsub.f32 %v4499, %v4874
    %v4876 = vand.u32 %v4875, 4294901760
    %4877 = vmatpush1.msra.mxu0 %v4876
    %4878 = vmatprep.subr.mxu0 0.0
    %v4879 = vand.u32 %v4498, 4294901760
    %v4880 = vsub.f32 %v4498, %v4879
    %v4881 = vand.u32 %v4880, 4294901760
    %4882 = vmatpush1.msra.mxu0 %v4881
    %4883 = vmatprep.subr.mxu0 0.0
    %4884 = vmatpush2.msra.mxu0 0.0
    %4885 = vmatprep.subr.mxu0 0.0
    %4886 = vmatpush2.msra.mxu0 0.0
    %4887 = vmatprep.subr.mxu0 0.0
    %4888 = vmatpush2.msra.mxu0 0.0
    %4889 = vmatprep.subr.mxu0 0.0
    %4890 = vmatpush2.msra.mxu0 0.0
    %4891 = vmatprep.subr.mxu0 0.0
    %4892 = vmatpush2.msra.mxu0 0.0
    %4893 = vmatprep.subr.mxu0 0.0
    %4894 = vmatpush2.msra.mxu0 0.0
    %4895 = vmatprep.subr.mxu0 0.0
    %4896 = vmatpush2.msra.mxu0 0.0
    %4897 = vmatprep.subr.mxu0 0.0
    %4898 = vmatpush2.msra.mxu0 0.0
    %4899 = vmatprep.subr.mxu0 0.0
    %4900 = vmatpush2.msra.mxu0 0.0
    %4901 = vmatprep.subr.mxu0 0.0
    %4902 = vmatpush2.msra.mxu0 0.0
    %4903 = vmatprep.subr.mxu0 0.0
    %4904 = vmatpush2.msra.mxu0 0.0
    %4905 = vmatprep.subr.mxu0 0.0
    %4906 = vmatpush2.msra.mxu0 0.0
    %4907 = vmatprep.subr.mxu0 0.0
    %4908 = vmatpush2.msra.mxu0 0.0
    %4909 = vmatprep.subr.mxu0 0.0
    %4910 = vmatpush2.msra.mxu0 0.0
    %4911 = vmatprep.subr.mxu0 0.0
    %4912 = vmatpush2.msra.mxu0 0.0
    %4913 = vmatprep.subr.mxu0 0.0
    %4914 = vmatpush2.msra.mxu0 0.0
    %4915 = vmatprep.mubr.f32.mxu0 0.0
    %v4916 = vand.u32 %v4510, 4294901760
    %4917 = vmatmul.mubr.f32.gmra.mxu0 %v4916
    %v4918 = vpop.f32.mrf.mxu0
    %v4919 = vadd.f32 %v4836, %v4918
    %v4920 = vpop.f32.mrf.mxu0
    %4921 = vdwg.mxu0
    %4922 = vmatprep.subr.mxu0 0.0
    %4923 = vmatpush1.msra.mxu0 0.0
    %4924 = vmatprep.subr.mxu0 0.0
    %4925 = vmatpush1.msra.mxu0 0.0
    %4926 = vmatprep.subr.mxu0 0.0
    %4927 = vmatpush1.msra.mxu0 0.0
    %4928 = vmatprep.subr.mxu0 0.0
    %4929 = vmatpush1.msra.mxu0 0.0
    %4930 = vmatprep.subr.mxu0 0.0
    %4931 = vmatpush1.msra.mxu0 0.0
    %4932 = vmatprep.subr.mxu0 0.0
    %4933 = vmatpush1.msra.mxu0 0.0
    %4934 = vmatprep.subr.mxu0 0.0
    %4935 = vmatpush1.msra.mxu0 0.0
    %4936 = vmatprep.subr.mxu0 0.0
    %4937 = vmatpush1.msra.mxu0 0.0
    %4938 = vmatprep.subr.mxu0 0.0
    %4939 = vmatpush1.msra.mxu0 0.0
    %4940 = vmatprep.subr.mxu0 0.0
    %4941 = vmatpush1.msra.mxu0 0.0
    %4942 = vmatprep.subr.mxu0 0.0
    %4943 = vmatpush1.msra.mxu0 0.0
    %4944 = vmatprep.subr.mxu0 0.0
    %4945 = vmatpush1.msra.mxu0 0.0
    %4946 = vmatprep.subr.mxu0 0.0
    %v4947 = vand.u32 %v4501, 4294901760
    %4948 = vmatpush1.msra.mxu0 %v4947
    %4949 = vmatprep.subr.mxu0 0.0
    %v4950 = vand.u32 %v4500, 4294901760
    %4951 = vmatpush1.msra.mxu0 %v4950
    %4952 = vmatprep.subr.mxu0 0.0
    %v4953 = vand.u32 %v4499, 4294901760
    %4954 = vmatpush1.msra.mxu0 %v4953
    %4955 = vmatprep.subr.mxu0 0.0
    %v4956 = vand.u32 %v4498, 4294901760
    %4957 = vmatpush1.msra.mxu0 %v4956
    %4958 = vmatprep.subr.mxu0 0.0
    %4959 = vmatpush2.msra.mxu0 0.0
    %4960 = vmatprep.subr.mxu0 0.0
    %4961 = vmatpush2.msra.mxu0 0.0
    %4962 = vmatprep.subr.mxu0 0.0
    %4963 = vmatpush2.msra.mxu0 0.0
    %4964 = vmatprep.subr.mxu0 0.0
    %4965 = vmatpush2.msra.mxu0 0.0
    %4966 = vmatprep.subr.mxu0 0.0
    %4967 = vmatpush2.msra.mxu0 0.0
    %4968 = vmatprep.subr.mxu0 0.0
    %4969 = vmatpush2.msra.mxu0 0.0
    %4970 = vmatprep.subr.mxu0 0.0
    %4971 = vmatpush2.msra.mxu0 0.0
    %4972 = vmatprep.subr.mxu0 0.0
    %4973 = vmatpush2.msra.mxu0 0.0
    %4974 = vmatprep.subr.mxu0 0.0
    %4975 = vmatpush2.msra.mxu0 0.0
    %4976 = vmatprep.subr.mxu0 0.0
    %4977 = vmatpush2.msra.mxu0 0.0
    %4978 = vmatprep.subr.mxu0 0.0
    %4979 = vmatpush2.msra.mxu0 0.0
    %4980 = vmatprep.subr.mxu0 0.0
    %4981 = vmatpush2.msra.mxu0 0.0
    %4982 = vmatprep.subr.mxu0 0.0
    %4983 = vmatpush2.msra.mxu0 0.0
    %4984 = vmatprep.subr.mxu0 0.0
    %4985 = vmatpush2.msra.mxu0 0.0
    %4986 = vmatprep.subr.mxu0 0.0
    %4987 = vmatpush2.msra.mxu0 0.0
    %4988 = vmatprep.subr.mxu0 0.0
    %4989 = vmatpush2.msra.mxu0 0.0
    %4990 = vmatprep.mubr.f32.mxu0 0.0
    %v4991 = vand.u32 %v4510, 4294901760
    %4992 = vmatmul.mubr.f32.gmra.mxu0 %v4991
    %v4993 = vpop.f32.mrf.mxu0
    %v4994 = vadd.f32 %v4919, %v4993
    %v4995 = vpop.f32.mrf.mxu0
    %4996 = vdwg.mxu0
    %vm4997 = vcmask 74752
    %4998 = vst.msk [vmem:[#allocation7] sm:$0x3] %vm4997, %v4994
    // Predicated region
    $region66: #{tpu_custom_call.1} parent=1 // pred_check
      _
    $region67: #{tpu_custom_call.1} parent=1 // pred_check_branch
      %5000 = sbr.rel (0) target = $region69
    $region68: #{tpu_custom_call.1} parent=1 // pred_region
      %s5002 = ssub.s32 32, 32
      %5003 = vsyncadd [#allocation4], %s5002
      %s5005 = sshll.u32 [#allocation7], 4
      %s5006 = int_to_ptr.vmem [resolvable:$true] %s5005
      %5008 = dma.vmem_to_hbm [thread:$0]  %s5006, 32, %s14, [#allocation4]
    $region69: #{tpu_custom_call.1} parent=1 // pred_fallthru
      _
    // Predicated region
    $region70: #{tpu_custom_call.1} parent=1 // pred_check
      _
    $region71: #{tpu_custom_call.1} parent=1 // pred_check_branch
      %5010 = sbr.rel (0) target = $region73
    $region72: #{tpu_custom_call.1} parent=1 // pred_region
      %5011 = dma.done [#allocation4], 32
    $region73: #{tpu_custom_call.1} parent=1 // pred_fallthru
      _
    %5012 = vsyncpa [#allocation3], 1
    %5013 = vsyncpa [#allocation6], 1
    %5014 = vsyncpa [#allocation4], 1

</llo_original>
